<compile_context>
chip_gen: v5e
topology: v5e:2x2
jax: 0.10.0
libtpu: 0.0.40
codegen_flags: <defaults>
</compile_context>

<pallas_src>
import numpy as np
import jax
import jax.numpy as jnp
from jax import lax
from jax.experimental import pallas as pl
from jax.experimental.pallas import tpu as pltpu


def _round_up_lanes(c, m=128):
    return ((c + m - 1) // m) * m


# ---------------------------------------------------------------------------
# Fused TCN kernel (all blocks + final 1x1 conv in one pallas_call)
# ---------------------------------------------------------------------------

def _make_fused_tcn_kernel(descs, K, L, rows, cdtype):
    """descs: static per-block info [{'dilation','has_down',...}, ...]."""

    def kernel(x_ref, *refs):
        o_ref = refs[-1]
        prefs = refs[:-1]

        # Row position within its own length-L sequence. Blocks always start at
        # a sequence boundary (rows == nb * L), so in-block index mod L is the
        # per-sequence position. Computed once, masks cached per shift.
        pos = lax.broadcasted_iota(jnp.int32, (rows, 1), 0) % L
        mask_cache = {}

        def mask_for(s):
            if s not in mask_cache:
                mask_cache[s] = pos >= s
            return mask_cache[s]

        def shift_rows(v, s):
            # causal shift: out[r] = v[r - s] within each sequence, 0 otherwise.
            # The roll wraps across sequence boundaries; the mask zeroes exactly
            # those rows (== left zero-padding + Chomp1d).
            if s == 0:
                return v
            if s >= L:
                return jnp.zeros_like(v)
            rolled = pltpu.roll(v, shift=s, axis=0)
            return jnp.where(mask_for(s), rolled, jnp.zeros_like(rolled))

        def causal_conv(v, w_ref, b_ref, d):
            # K dilated taps = K MXU matmuls accumulated in f32 (no lane-concat,
            # no im2col copy; per-tap weight slabs are tile-aligned).
            acc = jnp.dot(shift_rows(v, (K - 1) * d), w_ref[0],
                          preferred_element_type=jnp.float32)
            for j in range(1, K):
                acc += jnp.dot(shift_rows(v, (K - 1 - j) * d), w_ref[j],
                               preferred_element_type=jnp.float32)
            return acc + b_ref[...]            # bias already f32

        y = x_ref[...]                         # (rows, Cin_pad), compute dtype

        idx = 0
        for blk in descs:
            d = blk["dilation"]
            w1, b1, w2, b2 = prefs[idx], prefs[idx + 1], prefs[idx + 2], prefs[idx + 3]
            idx += 4
            # conv1 -> ReLU      (dropout1: identity at inference)
            h1 = jnp.maximum(causal_conv(y, w1, b1, d), 0.0).astype(cdtype)
            # conv2 -> ReLU      (dropout2: identity at inference)
            h2 = jnp.maximum(causal_conv(h1, w2, b2, d), 0.0)   # f32
            # residual: 1x1 downsample conv only when channel counts differ,
            # plain add otherwise (no identity-matrix matmul, no extra DMA).
            if blk["has_down"]:
                wd, bd = prefs[idx], prefs[idx + 1]
                idx += 2
                res = jnp.dot(y, wd[...], preferred_element_type=jnp.float32) + bd[...]
            else:
                res = y.astype(jnp.float32)
            y = jnp.maximum(h2 + res, 0.0).astype(cdtype)

        # fused final 1x1 conv (output channels are 128-padded -> lane-dense store)
        wf, bf = prefs[idx], prefs[idx + 1]
        out = jnp.dot(y, wf[...], preferred_element_type=jnp.float32) + bf[...]
        o_ref[...] = out.astype(o_ref.dtype)

    return kernel


# ---------------------------------------------------------------------------
# Tile selection (VMEM byte budget, >=2 grid steps for v7x's two TensorCores)
# ---------------------------------------------------------------------------

def _pick_batch_tile(N, L, bytes_per_row, vmem_act_budget=24 << 20):
    candidates = []
    for nb in range(1, N + 1):
        if N % nb:
            continue
        rows = nb * L
        if rows % 8 != 0 and nb != N:
            continue                       # (8,128): sublane-aligned row blocks
        if N >= 2 and N // nb < 2:
            continue                       # keep >=2 grid steps (v7x megacore)
        candidates.append(nb)
    if not candidates:
        return N                           # degenerate fallback: one full block
    fitting = [nb for nb in candidates if nb * L * bytes_per_row <= vmem_act_budget]
    return max(fitting) if fitting else min(candidates)
    # TODO(synk): if even nb=1 exceeds the budget (very long L), add an L-tiling
    # grid axis with a receptive-field halo instead of whole sequences per step.


# ---------------------------------------------------------------------------
# pallas_call wrapper
# ---------------------------------------------------------------------------

def tcn_forward(fast_params, x_ncw):
    """x_ncw: (N, C_in, L) like the PyTorch module; returns (N, n_outputs, L)."""
    K = fast_params["kernel_size"]
    descs = fast_params["descs"]
    dtype = fast_params["dtype"]
    wf, bf = fast_params["final"]
    cout_p = wf.shape[1]
    n_out = fast_params["n_outputs"]
    cin_p = fast_params["cin_pad"]

    N, C, L = x_ncw.shape
    # NCW -> (N*L, Cin_pad): transpose, flatten batch x length into the matmul
    # M dim, lane-pad channels. Happens exactly once per call.
    x_flat = jnp.transpose(x_ncw, (0, 2, 1)).astype(dtype).reshape(N * L, C)
    if cin_p > C:
        x_flat = jnp.pad(x_flat, ((0, 0), (0, cin_p - C)))

    # operands: input slab, then per-block weights/biases, then final conv
    operands = [x_flat]
    for blk, desc in zip(fast_params["blocks"], descs):
        names = ("w1", "b1", "w2", "b2") + (("wd", "bd") if desc["has_down"] else ())
        operands += [blk[n] for n in names]
    operands += [wf, bf]

    itemsize = jnp.dtype(dtype).itemsize
    weight_bytes = sum(int(np.prod(a.shape)) * jnp.dtype(a.dtype).itemsize
                       for a in operands[1:])

    # VMEM-budgeted row tile: ~6 live activation slabs at the widest padded
    # channel count, plus double-buffered input/output slabs.
    max_cp = max([cin_p, cout_p] + [d["cout_pad"] for d in descs])
    bytes_per_row = 6 * max_cp * 4 + 2 * (cin_p + cout_p) * itemsize
    nb = _pick_batch_tile(N, L, bytes_per_row)
    rows = nb * L
    grid = (N // nb,)

    vmem_limit = int(min(64 << 20,
                         max(32 << 20, 2 * (weight_bytes + rows * bytes_per_row))))

    # cost estimate: helps XLA schedule the surrounding transposes/pads
    total_rows = N * L
    flops = 0
    for desc in descs:
        ci, co = desc["cin_pad"], desc["cout_pad"]
        flops += 2 * total_rows * (K * ci * co + K * co * co)
        if desc["has_down"]:
            flops += 2 * total_rows * ci * co
    flops += 2 * total_rows * wf.shape[0] * cout_p
    bytes_accessed = total_rows * (cin_p + cout_p) * itemsize + weight_bytes
    cost = pl.CostEstimate(flops=int(flops), transcendentals=0,
                           bytes_accessed=int(bytes_accessed))

    kernel = _make_fused_tcn_kernel(descs, K, L, rows, dtype)

    def _const_spec(arr, single_buffer):
        zeros = (0,) * arr.ndim
        idx = lambda n, _z=zeros: _z
        if single_buffer:
            # Constant block index: single-buffer to halve resident weight VMEM.
            return pl.BlockSpec(arr.shape, idx, pipeline_mode=pl.Buffered(1))
        return pl.BlockSpec(arr.shape, idx)

    def _run(single_buffer_weights):
        in_specs = [pl.BlockSpec((rows, cin_p), lambda n: (n, 0))]
        in_specs += [_const_spec(a, single_buffer_weights) for a in operands[1:]]
        return pl.pallas_call(
            kernel,
            out_shape=jax.ShapeDtypeStruct((N * L, cout_p), dtype),
            grid=grid,
            in_specs=in_specs,
            out_specs=pl.BlockSpec((rows, cout_p), lambda n: (n, 0)),
            compiler_params=pltpu.CompilerParams(
                dimension_semantics=("parallel",),
                vmem_limit_bytes=vmem_limit),
            cost_estimate=cost,
        )(*operands)

    try:
        out_flat = _run(True)
    except Exception:
        # Fallback for jax versions without single-buffer pipeline_mode support.
        out_flat = _run(False)

    out = out_flat[:, :n_out].reshape(N, L, n_out)
    return jnp.transpose(out, (0, 2, 1))          # NLC -> NCW, once


# ---------------------------------------------------------------------------
# Parameter init (deterministic, mirrors the PyTorch module's shapes)
# ---------------------------------------------------------------------------

def _init_wn_conv(key, in_ch, out_ch, K):
    """weight_norm'd Conv1d: v ~ N(0, 0.01), g = ||v|| per out-channel, w = g*v/||v||."""
    kv, kb = jax.random.split(key)
    v = 0.01 * jax.random.normal(kv, (out_ch, in_ch, K), dtype=jnp.float32)
    norm = jnp.sqrt(jnp.sum(v * v, axis=(1, 2), keepdims=True))
    w_ocik = norm * v / norm                   # == v; reparam kept explicit for fidelity
    bound = 1.0 / np.sqrt(in_ch * K)
    b = jax.random.uniform(kb, (out_ch,), jnp.float32, -bound, bound)
    return jnp.transpose(w_ocik, (2, 1, 0)), b  # (K, Cin, Cout)


def _init_conv1x1(key, in_ch, out_ch, weight_std=None):
    kw, kb = jax.random.split(key)
    bound = 1.0 / np.sqrt(in_ch)
    if weight_std is not None:                 # downsample conv: weight.normal_(0, 0.01)
        w = weight_std * jax.random.normal(kw, (in_ch, out_ch), dtype=jnp.float32)
    else:                                      # final_conv: default uniform init
        w = jax.random.uniform(kw, (in_ch, out_ch), jnp.float32, -bound, bound)
    b = jax.random.uniform(kb, (out_ch,), jnp.float32, -bound, bound)
    return w, b


def init_tcn_params(key, n_inputs, n_outputs, n_channels, kernel_size=2):
    params = {"blocks": [], "kernel_size": kernel_size}
    for i, out_ch in enumerate(n_channels):
        in_ch = n_inputs if i == 0 else n_channels[i - 1]
        key, k1, k2, k3 = jax.random.split(key, 4)
        w1, b1 = _init_wn_conv(k1, in_ch, out_ch, kernel_size)
        w2, b2 = _init_wn_conv(k2, out_ch, out_ch, kernel_size)
        if in_ch != out_ch:
            wd, bd = _init_conv1x1(k3, in_ch, out_ch, weight_std=0.01)
        else:
            wd, bd = None, None                # identity residual: plain add
        params["blocks"].append(dict(w1=w1, b1=b1, w2=w2, b2=b2, wd=wd, bd=bd,
                                     dilation=2 ** i))
    key, kf = jax.random.split(key)
    params["final"] = _init_conv1x1(kf, n_channels[-1], n_outputs)
    return params


def prepare_fast_params(params, dtype=jnp.float32):
    """Pre-shape parameters ONCE for the fused kernel: per-tap weights kept as
    (K, Cin_pad, Cout_pad) with channels zero-padded to multiples of 128
    (full MXU lanes / lane-dense stores), biases as f32 (1, Cout_pad).
    Use dtype=jnp.bfloat16 on v6e/v7x (bf16-native VPU, halves VMEM/HBM);
    keep dtype=jnp.float32 on v5e (no bf16 VALU)."""
    K = params["kernel_size"]
    blocks, descs = [], []
    for blk in params["blocks"]:
        _, cin, cout = blk["w1"].shape
        cin_p, cout_p = _round_up_lanes(cin), _round_up_lanes(cout)
        has_down = blk["wd"] is not None
        fb = dict(
            w1=jnp.pad(blk["w1"], ((0, 0), (0, cin_p - cin), (0, cout_p - cout))
                       ).astype(dtype),
            b1=jnp.pad(blk["b1"], (0, cout_p - cout)).reshape(1, cout_p)
                 .astype(jnp.float32),
            w2=jnp.pad(blk["w2"], ((0, 0), (0, cout_p - cout), (0, cout_p - cout))
                       ).astype(dtype),
            b2=jnp.pad(blk["b2"], (0, cout_p - cout)).reshape(1, cout_p)
                 .astype(jnp.float32),
        )
        if has_down:
            fb["wd"] = jnp.pad(blk["wd"], ((0, cin_p - cin), (0, cout_p - cout))
                               ).astype(dtype)
            fb["bd"] = jnp.pad(blk["bd"], (0, cout_p - cout)).reshape(1, cout_p) \
                          .astype(jnp.float32)
        blocks.append(fb)
        descs.append(dict(cin=cin, cout=cout, cin_pad=cin_p, cout_pad=cout_p,
                          dilation=blk["dilation"], has_down=has_down))
    wf, bf = params["final"]
    clast, nout = wf.shape
    clast_p, nout_p = _round_up_lanes(clast), _round_up_lanes(nout)
    wf_p = jnp.pad(wf, ((0, clast_p - clast), (0, nout_p - nout))).astype(dtype)
    bf_p = jnp.pad(bf, (0, nout_p - nout)).reshape(1, nout_p).astype(jnp.float32)
    return dict(kernel_size=K, blocks=blocks, descs=descs, dtype=dtype,
                n_inputs=descs[0]["cin"], cin_pad=descs[0]["cin_pad"],
                n_outputs=nout, final=(wf_p, bf_p))


# ---------------------------------------------------------------------------
# Pure-JAX reference for correctness check
# ---------------------------------------------------------------------------

def ref_forward(params, x_ncw):
    K = params["kernel_size"]
    y = jnp.transpose(x_ncw, (0, 2, 1)).astype(jnp.float32)
    L = y.shape[1]

    def cconv(x, w, b, d):
        p = (K - 1) * d
        xp = jnp.pad(x, ((0, 0), (p, 0), (0, 0)))
        out = sum(jnp.einsum("nlc,cd->nld", xp[:, j * d: j * d + L, :], w[j])
                  for j in range(K))
        return out + b[None, None, :]

    for blk in params["blocks"]:
        d = blk["dilation"]
        h1 = jax.nn.relu(cconv(y, blk["w1"], blk["b1"], d))
        h2 = jax.nn.relu(cconv(h1, blk["w2"], blk["b2"], d))
        if blk["wd"] is not None:
            res = jnp.einsum("nlc,cd->nld", y, blk["wd"]) + blk["bd"][None, None, :]
        else:
            res = y
        y = jax.nn.relu(h2 + res)
    wf, bf = params["final"]
    out = jnp.einsum("nlc,cd->nld", y, wf) + bf[None, None, :]
    return jnp.transpose(out, (0, 2, 1))


if __name__ == "__main__":
    key = jax.random.PRNGKey(0)
    kp, kx = jax.random.split(key)

    N, C_in, L = 2, 4, 16
    n_channels = [8, 8]      # layer 0: 4->8 (downsample conv), layer 1: 8->8 (identity res)
    n_outputs = 6
    kernel_size = 2

    params = init_tcn_params(kp, C_in, n_outputs, n_channels, kernel_size=kernel_size)
    fast = prepare_fast_params(params, dtype=jnp.float32)
    x = jax.random.normal(kx, (N, C_in, L), dtype=jnp.float32)   # PyTorch NCW input

    out = tcn_forward(fast, x)
    out = jax.block_until_ready(out)
    assert out.shape == (N, n_outputs, L), out.shape

    ref = ref_forward(params, x)
    np.testing.assert_allclose(np.asarray(out), np.asarray(ref), rtol=1e-5, atol=1e-5)

    print("KERNEL_OK")
</pallas_src>

<mosaic_0001>
module attributes {stable_mosaic.version = 11 : i64} {
  func.func @kernel(%arg0: i32, %arg1: memref<16x128xf32, #tpu.memory_space<vmem>>, %arg2: memref<2x128x128xf32, #tpu.memory_space<vmem>>, %arg3: memref<1x128xf32, #tpu.memory_space<vmem>>, %arg4: memref<2x128x128xf32, #tpu.memory_space<vmem>>, %arg5: memref<1x128xf32, #tpu.memory_space<vmem>>, %arg6: memref<128x128xf32, #tpu.memory_space<vmem>>, %arg7: memref<1x128xf32, #tpu.memory_space<vmem>>, %arg8: memref<2x128x128xf32, #tpu.memory_space<vmem>>, %arg9: memref<1x128xf32, #tpu.memory_space<vmem>>, %arg10: memref<2x128x128xf32, #tpu.memory_space<vmem>>, %arg11: memref<1x128xf32, #tpu.memory_space<vmem>>, %arg12: memref<128x128xf32, #tpu.memory_space<vmem>>, %arg13: memref<1x128xf32, #tpu.memory_space<vmem>>, %arg14: memref<16x128xf32, #tpu.memory_space<vmem>>) attributes {dimension_semantics = [#tpu.dimension_semantics<parallel>], iteration_bounds = array<i64: 2>, scalar_prefetch = 0 : i64, scratch_operands = 0 : i64, tpu.core_type = #tpu.core_type<tc>, window_params = [{transform_indices = @transform_0, window_bounds = array<i64: 16, 128>}, {pipeline_mode = #tpu.pipeline_mode<synchronous>, transform_indices = @transform_1, window_bounds = array<i64: 2, 128, 128>}, {pipeline_mode = #tpu.pipeline_mode<synchronous>, transform_indices = @transform_2, window_bounds = array<i64: 1, 128>}, {pipeline_mode = #tpu.pipeline_mode<synchronous>, transform_indices = @transform_3, window_bounds = array<i64: 2, 128, 128>}, {pipeline_mode = #tpu.pipeline_mode<synchronous>, transform_indices = @transform_4, window_bounds = array<i64: 1, 128>}, {pipeline_mode = #tpu.pipeline_mode<synchronous>, transform_indices = @transform_5, window_bounds = array<i64: 128, 128>}, {pipeline_mode = #tpu.pipeline_mode<synchronous>, transform_indices = @transform_6, window_bounds = array<i64: 1, 128>}, {pipeline_mode = #tpu.pipeline_mode<synchronous>, transform_indices = @transform_7, window_bounds = array<i64: 2, 128, 128>}, {pipeline_mode = #tpu.pipeline_mode<synchronous>, transform_indices = @transform_8, window_bounds = array<i64: 1, 128>}, {pipeline_mode = #tpu.pipeline_mode<synchronous>, transform_indices = @transform_9, window_bounds = array<i64: 2, 128, 128>}, {pipeline_mode = #tpu.pipeline_mode<synchronous>, transform_indices = @transform_10, window_bounds = array<i64: 1, 128>}, {pipeline_mode = #tpu.pipeline_mode<synchronous>, transform_indices = @transform_11, window_bounds = array<i64: 128, 128>}, {pipeline_mode = #tpu.pipeline_mode<synchronous>, transform_indices = @transform_12, window_bounds = array<i64: 1, 128>}, {transform_indices = @transform_13, window_bounds = array<i64: 16, 128>}]} {
    %0 = tpu.iota {dimensions = array<i32: 0>} : vector<16x1xi32>
    %c16_i32 = arith.constant 16 : i32
    %c0_i32 = arith.constant 0 : i32
    %1 = arith.cmpi eq, %c16_i32, %c0_i32 : i32
    %c1_i32 = arith.constant 1 : i32
    %2 = arith.select %1, %c1_i32, %c16_i32 : i32
    %3 = vector.broadcast %2 : i32 to vector<16x1xi32>
    %4 = arith.remsi %0, %3 : vector<16x1xi32>
    %c0_i32_0 = arith.constant 0 : i32
    %5 = vector.broadcast %c0_i32_0 : i32 to vector<16x1xi32>
    %6 = arith.cmpi ne, %4, %5 : vector<16x1xi32>
    %c0_i32_1 = arith.constant 0 : i32
    %7 = vector.broadcast %c0_i32_1 : i32 to vector<16x1xi32>
    %8 = arith.cmpi slt, %4, %7 : vector<16x1xi32>
    %c0_i32_2 = arith.constant 0 : i32
    %9 = arith.cmpi slt, %2, %c0_i32_2 : i32
    %10 = vector.broadcast %9 : i1 to vector<16x1xi1>
    %11 = vector.broadcast %10 : vector<16x1xi1> to vector<16x1xi1>
    %12 = arith.xori %8, %11 : vector<16x1xi1>
    %13 = arith.andi %12, %6 : vector<16x1xi1>
    %14 = vector.broadcast %2 : i32 to vector<16x1xi32>
    %15 = arith.addi %4, %14 : vector<16x1xi32>
    %16 = arith.select %13, %15, %4 : vector<16x1xi1>, vector<16x1xi32>
    %c0 = arith.constant 0 : index
    %c0_3 = arith.constant 0 : index
    %17 = vector.load %arg1[%c0, %c0_3] : memref<16x128xf32, #tpu.memory_space<vmem>>, vector<16x128xf32>
    %c1_i32_4 = arith.constant 1 : i32
    %18 = tpu.dynamic_rotate %17 by %c1_i32_4 dim 0 : vector<16x128xf32>, i32 -> vector<16x128xf32>
    %c1_i32_5 = arith.constant 1 : i32
    %19 = vector.broadcast %c1_i32_5 : i32 to vector<16x1xi32>
    %20 = arith.cmpi sge, %16, %19 : vector<16x1xi32>
    %cst = arith.constant 0.000000e+00 : f32
    %21 = vector.broadcast %cst : f32 to vector<16x128xf32>
    %22 = vector.shape_cast %20 : vector<16x1xi1> to vector<16x1xi1>
    %23 = vector.broadcast %22 : vector<16x1xi1> to vector<16x128xi1>
    %24 = arith.select %23, %18, %21 : vector<16x128xi1>, vector<16x128xf32>
    %c0_6 = arith.constant 0 : index
    %c0_7 = arith.constant 0 : index
    %c0_8 = arith.constant 0 : index
    %25 = vector.load %arg2[%c0_6, %c0_7, %c0_8] : memref<2x128x128xf32, #tpu.memory_space<vmem>>, vector<1x128x128xf32>
    %26 = vector.shape_cast %25 : vector<1x128x128xf32> to vector<128x128xf32>
    %cst_9 = arith.constant dense<0.000000e+00> : vector<16x128xf32>
    %27 = tpu.matmul %24, %26, %cst_9 {dimension_numbers = #tpu.dot_dimension_numbers<[1], [0], [0], [1], [0, 0, 1, 1], [], []>} : vector<16x128xf32>, vector<128x128xf32>, vector<16x128xf32> -> vector<16x128xf32>
    %c1 = arith.constant 1 : index
    %c0_10 = arith.constant 0 : index
    %c0_11 = arith.constant 0 : index
    %28 = vector.load %arg2[%c1, %c0_10, %c0_11] : memref<2x128x128xf32, #tpu.memory_space<vmem>>, vector<1x128x128xf32>
    %29 = vector.shape_cast %28 : vector<1x128x128xf32> to vector<128x128xf32>
    %cst_12 = arith.constant dense<0.000000e+00> : vector<16x128xf32>
    %30 = tpu.matmul %17, %29, %cst_12 {dimension_numbers = #tpu.dot_dimension_numbers<[1], [0], [0], [1], [0, 0, 1, 1], [], []>} : vector<16x128xf32>, vector<128x128xf32>, vector<16x128xf32> -> vector<16x128xf32>
    %31 = arith.addf %27, %30 : vector<16x128xf32>
    %c0_13 = arith.constant 0 : index
    %c0_14 = arith.constant 0 : index
    %32 = vector.load %arg3[%c0_13, %c0_14] : memref<1x128xf32, #tpu.memory_space<vmem>>, vector<1x128xf32>
    %33 = vector.broadcast %32 : vector<1x128xf32> to vector<16x128xf32>
    %34 = arith.addf %31, %33 : vector<16x128xf32>
    %cst_15 = arith.constant 0.000000e+00 : f32
    %35 = vector.broadcast %cst_15 : f32 to vector<16x128xf32>
    %36 = arith.maximumf %34, %35 : vector<16x128xf32>
    %c1_i32_16 = arith.constant 1 : i32
    %37 = tpu.dynamic_rotate %36 by %c1_i32_16 dim 0 : vector<16x128xf32>, i32 -> vector<16x128xf32>
    %cst_17 = arith.constant 0.000000e+00 : f32
    %38 = vector.broadcast %cst_17 : f32 to vector<16x128xf32>
    %39 = vector.shape_cast %20 : vector<16x1xi1> to vector<16x1xi1>
    %40 = vector.broadcast %39 : vector<16x1xi1> to vector<16x128xi1>
    %41 = arith.select %40, %37, %38 : vector<16x128xi1>, vector<16x128xf32>
    %c0_18 = arith.constant 0 : index
    %c0_19 = arith.constant 0 : index
    %c0_20 = arith.constant 0 : index
    %42 = vector.load %arg4[%c0_18, %c0_19, %c0_20] : memref<2x128x128xf32, #tpu.memory_space<vmem>>, vector<1x128x128xf32>
    %43 = vector.shape_cast %42 : vector<1x128x128xf32> to vector<128x128xf32>
    %cst_21 = arith.constant dense<0.000000e+00> : vector<16x128xf32>
    %44 = tpu.matmul %41, %43, %cst_21 {dimension_numbers = #tpu.dot_dimension_numbers<[1], [0], [0], [1], [0, 0, 1, 1], [], []>} : vector<16x128xf32>, vector<128x128xf32>, vector<16x128xf32> -> vector<16x128xf32>
    %c1_22 = arith.constant 1 : index
    %c0_23 = arith.constant 0 : index
    %c0_24 = arith.constant 0 : index
    %45 = vector.load %arg4[%c1_22, %c0_23, %c0_24] : memref<2x128x128xf32, #tpu.memory_space<vmem>>, vector<1x128x128xf32>
    %46 = vector.shape_cast %45 : vector<1x128x128xf32> to vector<128x128xf32>
    %cst_25 = arith.constant dense<0.000000e+00> : vector<16x128xf32>
    %47 = tpu.matmul %36, %46, %cst_25 {dimension_numbers = #tpu.dot_dimension_numbers<[1], [0], [0], [1], [0, 0, 1, 1], [], []>} : vector<16x128xf32>, vector<128x128xf32>, vector<16x128xf32> -> vector<16x128xf32>
    %48 = arith.addf %44, %47 : vector<16x128xf32>
    %c0_26 = arith.constant 0 : index
    %c0_27 = arith.constant 0 : index
    %49 = vector.load %arg5[%c0_26, %c0_27] : memref<1x128xf32, #tpu.memory_space<vmem>>, vector<1x128xf32>
    %50 = vector.broadcast %49 : vector<1x128xf32> to vector<16x128xf32>
    %51 = arith.addf %48, %50 : vector<16x128xf32>
    %cst_28 = arith.constant 0.000000e+00 : f32
    %52 = vector.broadcast %cst_28 : f32 to vector<16x128xf32>
    %53 = arith.maximumf %51, %52 : vector<16x128xf32>
    %c0_29 = arith.constant 0 : index
    %c0_30 = arith.constant 0 : index
    %54 = vector.load %arg6[%c0_29, %c0_30] : memref<128x128xf32, #tpu.memory_space<vmem>>, vector<128x128xf32>
    %cst_31 = arith.constant dense<0.000000e+00> : vector<16x128xf32>
    %55 = tpu.matmul %17, %54, %cst_31 {dimension_numbers = #tpu.dot_dimension_numbers<[1], [0], [0], [1], [0, 0, 1, 1], [], []>} : vector<16x128xf32>, vector<128x128xf32>, vector<16x128xf32> -> vector<16x128xf32>
    %c0_32 = arith.constant 0 : index
    %c0_33 = arith.constant 0 : index
    %56 = vector.load %arg7[%c0_32, %c0_33] : memref<1x128xf32, #tpu.memory_space<vmem>>, vector<1x128xf32>
    %57 = vector.broadcast %56 : vector<1x128xf32> to vector<16x128xf32>
    %58 = arith.addf %55, %57 : vector<16x128xf32>
    %59 = arith.addf %53, %58 : vector<16x128xf32>
    %cst_34 = arith.constant 0.000000e+00 : f32
    %60 = vector.broadcast %cst_34 : f32 to vector<16x128xf32>
    %61 = arith.maximumf %59, %60 : vector<16x128xf32>
    %c2_i32 = arith.constant 2 : i32
    %62 = tpu.dynamic_rotate %61 by %c2_i32 dim 0 : vector<16x128xf32>, i32 -> vector<16x128xf32>
    %c2_i32_35 = arith.constant 2 : i32
    %63 = vector.broadcast %c2_i32_35 : i32 to vector<16x1xi32>
    %64 = arith.cmpi sge, %16, %63 : vector<16x1xi32>
    %cst_36 = arith.constant 0.000000e+00 : f32
    %65 = vector.broadcast %cst_36 : f32 to vector<16x128xf32>
    %66 = vector.shape_cast %64 : vector<16x1xi1> to vector<16x1xi1>
    %67 = vector.broadcast %66 : vector<16x1xi1> to vector<16x128xi1>
    %68 = arith.select %67, %62, %65 : vector<16x128xi1>, vector<16x128xf32>
    %c0_37 = arith.constant 0 : index
    %c0_38 = arith.constant 0 : index
    %c0_39 = arith.constant 0 : index
    %69 = vector.load %arg8[%c0_37, %c0_38, %c0_39] : memref<2x128x128xf32, #tpu.memory_space<vmem>>, vector<1x128x128xf32>
    %70 = vector.shape_cast %69 : vector<1x128x128xf32> to vector<128x128xf32>
    %cst_40 = arith.constant dense<0.000000e+00> : vector<16x128xf32>
    %71 = tpu.matmul %68, %70, %cst_40 {dimension_numbers = #tpu.dot_dimension_numbers<[1], [0], [0], [1], [0, 0, 1, 1], [], []>} : vector<16x128xf32>, vector<128x128xf32>, vector<16x128xf32> -> vector<16x128xf32>
    %c1_41 = arith.constant 1 : index
    %c0_42 = arith.constant 0 : index
    %c0_43 = arith.constant 0 : index
    %72 = vector.load %arg8[%c1_41, %c0_42, %c0_43] : memref<2x128x128xf32, #tpu.memory_space<vmem>>, vector<1x128x128xf32>
    %73 = vector.shape_cast %72 : vector<1x128x128xf32> to vector<128x128xf32>
    %cst_44 = arith.constant dense<0.000000e+00> : vector<16x128xf32>
    %74 = tpu.matmul %61, %73, %cst_44 {dimension_numbers = #tpu.dot_dimension_numbers<[1], [0], [0], [1], [0, 0, 1, 1], [], []>} : vector<16x128xf32>, vector<128x128xf32>, vector<16x128xf32> -> vector<16x128xf32>
    %75 = arith.addf %71, %74 : vector<16x128xf32>
    %c0_45 = arith.constant 0 : index
    %c0_46 = arith.constant 0 : index
    %76 = vector.load %arg9[%c0_45, %c0_46] : memref<1x128xf32, #tpu.memory_space<vmem>>, vector<1x128xf32>
    %77 = vector.broadcast %76 : vector<1x128xf32> to vector<16x128xf32>
    %78 = arith.addf %75, %77 : vector<16x128xf32>
    %cst_47 = arith.constant 0.000000e+00 : f32
    %79 = vector.broadcast %cst_47 : f32 to vector<16x128xf32>
    %80 = arith.maximumf %78, %79 : vector<16x128xf32>
    %c2_i32_48 = arith.constant 2 : i32
    %81 = tpu.dynamic_rotate %80 by %c2_i32_48 dim 0 : vector<16x128xf32>, i32 -> vector<16x128xf32>
    %cst_49 = arith.constant 0.000000e+00 : f32
    %82 = vector.broadcast %cst_49 : f32 to vector<16x128xf32>
    %83 = vector.shape_cast %64 : vector<16x1xi1> to vector<16x1xi1>
    %84 = vector.broadcast %83 : vector<16x1xi1> to vector<16x128xi1>
    %85 = arith.select %84, %81, %82 : vector<16x128xi1>, vector<16x128xf32>
    %c0_50 = arith.constant 0 : index
    %c0_51 = arith.constant 0 : index
    %c0_52 = arith.constant 0 : index
    %86 = vector.load %arg10[%c0_50, %c0_51, %c0_52] : memref<2x128x128xf32, #tpu.memory_space<vmem>>, vector<1x128x128xf32>
    %87 = vector.shape_cast %86 : vector<1x128x128xf32> to vector<128x128xf32>
    %cst_53 = arith.constant dense<0.000000e+00> : vector<16x128xf32>
    %88 = tpu.matmul %85, %87, %cst_53 {dimension_numbers = #tpu.dot_dimension_numbers<[1], [0], [0], [1], [0, 0, 1, 1], [], []>} : vector<16x128xf32>, vector<128x128xf32>, vector<16x128xf32> -> vector<16x128xf32>
    %c1_54 = arith.constant 1 : index
    %c0_55 = arith.constant 0 : index
    %c0_56 = arith.constant 0 : index
    %89 = vector.load %arg10[%c1_54, %c0_55, %c0_56] : memref<2x128x128xf32, #tpu.memory_space<vmem>>, vector<1x128x128xf32>
    %90 = vector.shape_cast %89 : vector<1x128x128xf32> to vector<128x128xf32>
    %cst_57 = arith.constant dense<0.000000e+00> : vector<16x128xf32>
    %91 = tpu.matmul %80, %90, %cst_57 {dimension_numbers = #tpu.dot_dimension_numbers<[1], [0], [0], [1], [0, 0, 1, 1], [], []>} : vector<16x128xf32>, vector<128x128xf32>, vector<16x128xf32> -> vector<16x128xf32>
    %92 = arith.addf %88, %91 : vector<16x128xf32>
    %c0_58 = arith.constant 0 : index
    %c0_59 = arith.constant 0 : index
    %93 = vector.load %arg11[%c0_58, %c0_59] : memref<1x128xf32, #tpu.memory_space<vmem>>, vector<1x128xf32>
    %94 = vector.broadcast %93 : vector<1x128xf32> to vector<16x128xf32>
    %95 = arith.addf %92, %94 : vector<16x128xf32>
    %cst_60 = arith.constant 0.000000e+00 : f32
    %96 = vector.broadcast %cst_60 : f32 to vector<16x128xf32>
    %97 = arith.maximumf %95, %96 : vector<16x128xf32>
    %98 = arith.addf %97, %61 : vector<16x128xf32>
    %cst_61 = arith.constant 0.000000e+00 : f32
    %99 = vector.broadcast %cst_61 : f32 to vector<16x128xf32>
    %100 = arith.maximumf %98, %99 : vector<16x128xf32>
    %c0_62 = arith.constant 0 : index
    %c0_63 = arith.constant 0 : index
    %101 = vector.load %arg12[%c0_62, %c0_63] : memref<128x128xf32, #tpu.memory_space<vmem>>, vector<128x128xf32>
    %cst_64 = arith.constant dense<0.000000e+00> : vector<16x128xf32>
    %102 = tpu.matmul %100, %101, %cst_64 {dimension_numbers = #tpu.dot_dimension_numbers<[1], [0], [0], [1], [0, 0, 1, 1], [], []>} : vector<16x128xf32>, vector<128x128xf32>, vector<16x128xf32> -> vector<16x128xf32>
    %c0_65 = arith.constant 0 : index
    %c0_66 = arith.constant 0 : index
    %103 = vector.load %arg13[%c0_65, %c0_66] : memref<1x128xf32, #tpu.memory_space<vmem>>, vector<1x128xf32>
    %104 = vector.broadcast %103 : vector<1x128xf32> to vector<16x128xf32>
    %105 = arith.addf %102, %104 : vector<16x128xf32>
    %c0_67 = arith.constant 0 : index
    %c0_68 = arith.constant 0 : index
    %106 = vector.load %arg14[%c0_67, %c0_68] : memref<16x128xf32, #tpu.memory_space<vmem>>, vector<16x128xf32>
    tpu.vector_store %arg14[%c0_67, %c0_68], %105 {strides = array<i32>} : memref<16x128xf32, #tpu.memory_space<vmem>>, vector<16x128xf32>,
    return
  }
  func.func @transform_0(%arg0: i32) -> (i32, i32) {
    %c0_i32 = arith.constant 0 : i32
    %c0_i32_0 = arith.constant 0 : i32
    return %arg0, %c0_i32 : i32, i32
  }
  func.func @transform_1(%arg0: i32) -> (i32, i32, i32) {
    %c0_i32 = arith.constant 0 : i32
    %c0_i32_0 = arith.constant 0 : i32
    %c0_i32_1 = arith.constant 0 : i32
    %c0_i32_2 = arith.constant 0 : i32
    return %c0_i32, %c0_i32_0, %c0_i32_1 : i32, i32, i32
  }
  func.func @transform_2(%arg0: i32) -> (i32, i32) {
    %c0_i32 = arith.constant 0 : i32
    %c0_i32_0 = arith.constant 0 : i32
    %c0_i32_1 = arith.constant 0 : i32
    return %c0_i32, %c0_i32_0 : i32, i32
  }
  func.func @transform_3(%arg0: i32) -> (i32, i32, i32) {
    %c0_i32 = arith.constant 0 : i32
    %c0_i32_0 = arith.constant 0 : i32
    %c0_i32_1 = arith.constant 0 : i32
    %c0_i32_2 = arith.constant 0 : i32
    return %c0_i32, %c0_i32_0, %c0_i32_1 : i32, i32, i32
  }
  func.func @transform_4(%arg0: i32) -> (i32, i32) {
    %c0_i32 = arith.constant 0 : i32
    %c0_i32_0 = arith.constant 0 : i32
    %c0_i32_1 = arith.constant 0 : i32
    return %c0_i32, %c0_i32_0 : i32, i32
  }
  func.func @transform_5(%arg0: i32) -> (i32, i32) {
    %c0_i32 = arith.constant 0 : i32
    %c0_i32_0 = arith.constant 0 : i32
    %c0_i32_1 = arith.constant 0 : i32
    return %c0_i32, %c0_i32_0 : i32, i32
  }
  func.func @transform_6(%arg0: i32) -> (i32, i32) {
    %c0_i32 = arith.constant 0 : i32
    %c0_i32_0 = arith.constant 0 : i32
    %c0_i32_1 = arith.constant 0 : i32
    return %c0_i32, %c0_i32_0 : i32, i32
  }
  func.func @transform_7(%arg0: i32) -> (i32, i32, i32) {
    %c0_i32 = arith.constant 0 : i32
    %c0_i32_0 = arith.constant 0 : i32
    %c0_i32_1 = arith.constant 0 : i32
    %c0_i32_2 = arith.constant 0 : i32
    return %c0_i32, %c0_i32_0, %c0_i32_1 : i32, i32, i32
  }
  func.func @transform_8(%arg0: i32) -> (i32, i32) {
    %c0_i32 = arith.constant 0 : i32
    %c0_i32_0 = arith.constant 0 : i32
    %c0_i32_1 = arith.constant 0 : i32
    return %c0_i32, %c0_i32_0 : i32, i32
  }
  func.func @transform_9(%arg0: i32) -> (i32, i32, i32) {
    %c0_i32 = arith.constant 0 : i32
    %c0_i32_0 = arith.constant 0 : i32
    %c0_i32_1 = arith.constant 0 : i32
    %c0_i32_2 = arith.constant 0 : i32
    return %c0_i32, %c0_i32_0, %c0_i32_1 : i32, i32, i32
  }
  func.func @transform_10(%arg0: i32) -> (i32, i32) {
    %c0_i32 = arith.constant 0 : i32
    %c0_i32_0 = arith.constant 0 : i32
    %c0_i32_1 = arith.constant 0 : i32
    return %c0_i32, %c0_i32_0 : i32, i32
  }
  func.func @transform_11(%arg0: i32) -> (i32, i32) {
    %c0_i32 = arith.constant 0 : i32
    %c0_i32_0 = arith.constant 0 : i32
    %c0_i32_1 = arith.constant 0 : i32
    return %c0_i32, %c0_i32_0 : i32, i32
  }
  func.func @transform_12(%arg0: i32) -> (i32, i32) {
    %c0_i32 = arith.constant 0 : i32
    %c0_i32_0 = arith.constant 0 : i32
    %c0_i32_1 = arith.constant 0 : i32
    return %c0_i32, %c0_i32_0 : i32, i32
  }
  func.func @transform_13(%arg0: i32) -> (i32, i32) {
    %c0_i32 = arith.constant 0 : i32
    %c0_i32_0 = arith.constant 0 : i32
    return %arg0, %c0_i32 : i32, i32
  }
}

module attributes {stable_mosaic.version = 11 : i64} {
  func.func @kernel(%arg0: i32, %arg1: memref<16x128xf32, #tpu.memory_space<vmem>>, %arg2: memref<2x128x128xf32, #tpu.memory_space<vmem>>, %arg3: memref<1x128xf32, #tpu.memory_space<vmem>>, %arg4: memref<2x128x128xf32, #tpu.memory_space<vmem>>, %arg5: memref<1x128xf32, #tpu.memory_space<vmem>>, %arg6: memref<128x128xf32, #tpu.memory_space<vmem>>, %arg7: memref<1x128xf32, #tpu.memory_space<vmem>>, %arg8: memref<2x128x128xf32, #tpu.memory_space<vmem>>, %arg9: memref<1x128xf32, #tpu.memory_space<vmem>>, %arg10: memref<2x128x128xf32, #tpu.memory_space<vmem>>, %arg11: memref<1x128xf32, #tpu.memory_space<vmem>>, %arg12: memref<128x128xf32, #tpu.memory_space<vmem>>, %arg13: memref<1x128xf32, #tpu.memory_space<vmem>>, %arg14: memref<16x128xf32, #tpu.memory_space<vmem>>) attributes {dimension_semantics = [#tpu.dimension_semantics<parallel>], iteration_bounds = array<i64: 2>, scalar_prefetch = 0 : i64, scratch_operands = 0 : i64, tpu.core_type = #tpu.core_type<tc>, window_params = [{transform_indices = @transform_0, window_bounds = array<i64: 16, 128>}, {pipeline_mode = #tpu.pipeline_mode<synchronous>, transform_indices = @transform_1, window_bounds = array<i64: 2, 128, 128>}, {pipeline_mode = #tpu.pipeline_mode<synchronous>, transform_indices = @transform_2, window_bounds = array<i64: 1, 128>}, {pipeline_mode = #tpu.pipeline_mode<synchronous>, transform_indices = @transform_3, window_bounds = array<i64: 2, 128, 128>}, {pipeline_mode = #tpu.pipeline_mode<synchronous>, transform_indices = @transform_4, window_bounds = array<i64: 1, 128>}, {pipeline_mode = #tpu.pipeline_mode<synchronous>, transform_indices = @transform_5, window_bounds = array<i64: 128, 128>}, {pipeline_mode = #tpu.pipeline_mode<synchronous>, transform_indices = @transform_6, window_bounds = array<i64: 1, 128>}, {pipeline_mode = #tpu.pipeline_mode<synchronous>, transform_indices = @transform_7, window_bounds = array<i64: 2, 128, 128>}, {pipeline_mode = #tpu.pipeline_mode<synchronous>, transform_indices = @transform_8, window_bounds = array<i64: 1, 128>}, {pipeline_mode = #tpu.pipeline_mode<synchronous>, transform_indices = @transform_9, window_bounds = array<i64: 2, 128, 128>}, {pipeline_mode = #tpu.pipeline_mode<synchronous>, transform_indices = @transform_10, window_bounds = array<i64: 1, 128>}, {pipeline_mode = #tpu.pipeline_mode<synchronous>, transform_indices = @transform_11, window_bounds = array<i64: 128, 128>}, {pipeline_mode = #tpu.pipeline_mode<synchronous>, transform_indices = @transform_12, window_bounds = array<i64: 1, 128>}, {transform_indices = @transform_13, window_bounds = array<i64: 16, 128>}]} {
    %0 = tpu.iota {dimensions = array<i32: 0>} : vector<16x1xi32>
    %c16_i32 = arith.constant 16 : i32
    %c0_i32 = arith.constant 0 : i32
    %1 = arith.cmpi eq, %c16_i32, %c0_i32 : i32
    %c1_i32 = arith.constant 1 : i32
    %2 = arith.select %1, %c1_i32, %c16_i32 : i32
    %3 = vector.broadcast %2 : i32 to vector<16x1xi32>
    %4 = arith.remsi %0, %3 : vector<16x1xi32>
    %c0_i32_0 = arith.constant 0 : i32
    %5 = vector.broadcast %c0_i32_0 : i32 to vector<16x1xi32>
    %6 = arith.cmpi ne, %4, %5 : vector<16x1xi32>
    %c0_i32_1 = arith.constant 0 : i32
    %7 = vector.broadcast %c0_i32_1 : i32 to vector<16x1xi32>
    %8 = arith.cmpi slt, %4, %7 : vector<16x1xi32>
    %c0_i32_2 = arith.constant 0 : i32
    %9 = arith.cmpi slt, %2, %c0_i32_2 : i32
    %10 = vector.broadcast %9 : i1 to vector<16x1xi1>
    %11 = vector.broadcast %10 : vector<16x1xi1> to vector<16x1xi1>
    %12 = arith.xori %8, %11 : vector<16x1xi1>
    %13 = arith.andi %12, %6 : vector<16x1xi1>
    %14 = vector.broadcast %2 : i32 to vector<16x1xi32>
    %15 = arith.addi %4, %14 : vector<16x1xi32>
    %16 = arith.select %13, %15, %4 : vector<16x1xi1>, vector<16x1xi32>
    %c0 = arith.constant 0 : index
    %c0_3 = arith.constant 0 : index
    %17 = vector.load %arg1[%c0, %c0_3] : memref<16x128xf32, #tpu.memory_space<vmem>>, vector<16x128xf32>
    %c1_i32_4 = arith.constant 1 : i32
    %18 = tpu.dynamic_rotate %17 by %c1_i32_4 dim 0 : vector<16x128xf32>, i32 -> vector<16x128xf32>
    %c1_i32_5 = arith.constant 1 : i32
    %19 = vector.broadcast %c1_i32_5 : i32 to vector<16x1xi32>
    %20 = arith.cmpi sge, %16, %19 : vector<16x1xi32>
    %cst = arith.constant 0.000000e+00 : f32
    %21 = vector.broadcast %cst : f32 to vector<16x128xf32>
    %22 = vector.shape_cast %20 : vector<16x1xi1> to vector<16x1xi1>
    %23 = vector.broadcast %22 : vector<16x1xi1> to vector<16x128xi1>
    %24 = arith.select %23, %18, %21 : vector<16x128xi1>, vector<16x128xf32>
    %c0_6 = arith.constant 0 : index
    %c0_7 = arith.constant 0 : index
    %c0_8 = arith.constant 0 : index
    %25 = vector.load %arg2[%c0_6, %c0_7, %c0_8] : memref<2x128x128xf32, #tpu.memory_space<vmem>>, vector<1x128x128xf32>
    %26 = vector.shape_cast %25 : vector<1x128x128xf32> to vector<128x128xf32>
    %cst_9 = arith.constant dense<0.000000e+00> : vector<16x128xf32>
    %27 = tpu.matmul %24, %26, %cst_9 {dimension_numbers = #tpu.dot_dimension_numbers<[1], [0], [0], [1], [0, 0, 1, 1], [], []>} : vector<16x128xf32>, vector<128x128xf32>, vector<16x128xf32> -> vector<16x128xf32>
    %c1 = arith.constant 1 : index
    %c0_10 = arith.constant 0 : index
    %c0_11 = arith.constant 0 : index
    %28 = vector.load %arg2[%c1, %c0_10, %c0_11] : memref<2x128x128xf32, #tpu.memory_space<vmem>>, vector<1x128x128xf32>
    %29 = vector.shape_cast %28 : vector<1x128x128xf32> to vector<128x128xf32>
    %cst_12 = arith.constant dense<0.000000e+00> : vector<16x128xf32>
    %30 = tpu.matmul %17, %29, %cst_12 {dimension_numbers = #tpu.dot_dimension_numbers<[1], [0], [0], [1], [0, 0, 1, 1], [], []>} : vector<16x128xf32>, vector<128x128xf32>, vector<16x128xf32> -> vector<16x128xf32>
    %31 = arith.addf %27, %30 : vector<16x128xf32>
    %c0_13 = arith.constant 0 : index
    %c0_14 = arith.constant 0 : index
    %32 = vector.load %arg3[%c0_13, %c0_14] : memref<1x128xf32, #tpu.memory_space<vmem>>, vector<1x128xf32>
    %33 = vector.broadcast %32 : vector<1x128xf32> to vector<16x128xf32>
    %34 = arith.addf %31, %33 : vector<16x128xf32>
    %cst_15 = arith.constant 0.000000e+00 : f32
    %35 = vector.broadcast %cst_15 : f32 to vector<16x128xf32>
    %36 = arith.maximumf %34, %35 : vector<16x128xf32>
    %c1_i32_16 = arith.constant 1 : i32
    %37 = tpu.dynamic_rotate %36 by %c1_i32_16 dim 0 : vector<16x128xf32>, i32 -> vector<16x128xf32>
    %cst_17 = arith.constant 0.000000e+00 : f32
    %38 = vector.broadcast %cst_17 : f32 to vector<16x128xf32>
    %39 = vector.shape_cast %20 : vector<16x1xi1> to vector<16x1xi1>
    %40 = vector.broadcast %39 : vector<16x1xi1> to vector<16x128xi1>
    %41 = arith.select %40, %37, %38 : vector<16x128xi1>, vector<16x128xf32>
    %c0_18 = arith.constant 0 : index
    %c0_19 = arith.constant 0 : index
    %c0_20 = arith.constant 0 : index
    %42 = vector.load %arg4[%c0_18, %c0_19, %c0_20] : memref<2x128x128xf32, #tpu.memory_space<vmem>>, vector<1x128x128xf32>
    %43 = vector.shape_cast %42 : vector<1x128x128xf32> to vector<128x128xf32>
    %cst_21 = arith.constant dense<0.000000e+00> : vector<16x128xf32>
    %44 = tpu.matmul %41, %43, %cst_21 {dimension_numbers = #tpu.dot_dimension_numbers<[1], [0], [0], [1], [0, 0, 1, 1], [], []>} : vector<16x128xf32>, vector<128x128xf32>, vector<16x128xf32> -> vector<16x128xf32>
    %c1_22 = arith.constant 1 : index
    %c0_23 = arith.constant 0 : index
    %c0_24 = arith.constant 0 : index
    %45 = vector.load %arg4[%c1_22, %c0_23, %c0_24] : memref<2x128x128xf32, #tpu.memory_space<vmem>>, vector<1x128x128xf32>
    %46 = vector.shape_cast %45 : vector<1x128x128xf32> to vector<128x128xf32>
    %cst_25 = arith.constant dense<0.000000e+00> : vector<16x128xf32>
    %47 = tpu.matmul %36, %46, %cst_25 {dimension_numbers = #tpu.dot_dimension_numbers<[1], [0], [0], [1], [0, 0, 1, 1], [], []>} : vector<16x128xf32>, vector<128x128xf32>, vector<16x128xf32> -> vector<16x128xf32>
    %48 = arith.addf %44, %47 : vector<16x128xf32>
    %c0_26 = arith.constant 0 : index
    %c0_27 = arith.constant 0 : index
    %49 = vector.load %arg5[%c0_26, %c0_27] : memref<1x128xf32, #tpu.memory_space<vmem>>, vector<1x128xf32>
    %50 = vector.broadcast %49 : vector<1x128xf32> to vector<16x128xf32>
    %51 = arith.addf %48, %50 : vector<16x128xf32>
    %cst_28 = arith.constant 0.000000e+00 : f32
    %52 = vector.broadcast %cst_28 : f32 to vector<16x128xf32>
    %53 = arith.maximumf %51, %52 : vector<16x128xf32>
    %c0_29 = arith.constant 0 : index
    %c0_30 = arith.constant 0 : index
    %54 = vector.load %arg6[%c0_29, %c0_30] : memref<128x128xf32, #tpu.memory_space<vmem>>, vector<128x128xf32>
    %cst_31 = arith.constant dense<0.000000e+00> : vector<16x128xf32>
    %55 = tpu.matmul %17, %54, %cst_31 {dimension_numbers = #tpu.dot_dimension_numbers<[1], [0], [0], [1], [0, 0, 1, 1], [], []>} : vector<16x128xf32>, vector<128x128xf32>, vector<16x128xf32> -> vector<16x128xf32>
    %c0_32 = arith.constant 0 : index
    %c0_33 = arith.constant 0 : index
    %56 = vector.load %arg7[%c0_32, %c0_33] : memref<1x128xf32, #tpu.memory_space<vmem>>, vector<1x128xf32>
    %57 = vector.broadcast %56 : vector<1x128xf32> to vector<16x128xf32>
    %58 = arith.addf %55, %57 : vector<16x128xf32>
    %59 = arith.addf %53, %58 : vector<16x128xf32>
    %cst_34 = arith.constant 0.000000e+00 : f32
    %60 = vector.broadcast %cst_34 : f32 to vector<16x128xf32>
    %61 = arith.maximumf %59, %60 : vector<16x128xf32>
    %c2_i32 = arith.constant 2 : i32
    %62 = tpu.dynamic_rotate %61 by %c2_i32 dim 0 : vector<16x128xf32>, i32 -> vector<16x128xf32>
    %c2_i32_35 = arith.constant 2 : i32
    %63 = vector.broadcast %c2_i32_35 : i32 to vector<16x1xi32>
    %64 = arith.cmpi sge, %16, %63 : vector<16x1xi32>
    %cst_36 = arith.constant 0.000000e+00 : f32
    %65 = vector.broadcast %cst_36 : f32 to vector<16x128xf32>
    %66 = vector.shape_cast %64 : vector<16x1xi1> to vector<16x1xi1>
    %67 = vector.broadcast %66 : vector<16x1xi1> to vector<16x128xi1>
    %68 = arith.select %67, %62, %65 : vector<16x128xi1>, vector<16x128xf32>
    %c0_37 = arith.constant 0 : index
    %c0_38 = arith.constant 0 : index
    %c0_39 = arith.constant 0 : index
    %69 = vector.load %arg8[%c0_37, %c0_38, %c0_39] : memref<2x128x128xf32, #tpu.memory_space<vmem>>, vector<1x128x128xf32>
    %70 = vector.shape_cast %69 : vector<1x128x128xf32> to vector<128x128xf32>
    %cst_40 = arith.constant dense<0.000000e+00> : vector<16x128xf32>
    %71 = tpu.matmul %68, %70, %cst_40 {dimension_numbers = #tpu.dot_dimension_numbers<[1], [0], [0], [1], [0, 0, 1, 1], [], []>} : vector<16x128xf32>, vector<128x128xf32>, vector<16x128xf32> -> vector<16x128xf32>
    %c1_41 = arith.constant 1 : index
    %c0_42 = arith.constant 0 : index
    %c0_43 = arith.constant 0 : index
    %72 = vector.load %arg8[%c1_41, %c0_42, %c0_43] : memref<2x128x128xf32, #tpu.memory_space<vmem>>, vector<1x128x128xf32>
    %73 = vector.shape_cast %72 : vector<1x128x128xf32> to vector<128x128xf32>
    %cst_44 = arith.constant dense<0.000000e+00> : vector<16x128xf32>
    %74 = tpu.matmul %61, %73, %cst_44 {dimension_numbers = #tpu.dot_dimension_numbers<[1], [0], [0], [1], [0, 0, 1, 1], [], []>} : vector<16x128xf32>, vector<128x128xf32>, vector<16x128xf32> -> vector<16x128xf32>
    %75 = arith.addf %71, %74 : vector<16x128xf32>
    %c0_45 = arith.constant 0 : index
    %c0_46 = arith.constant 0 : index
    %76 = vector.load %arg9[%c0_45, %c0_46] : memref<1x128xf32, #tpu.memory_space<vmem>>, vector<1x128xf32>
    %77 = vector.broadcast %76 : vector<1x128xf32> to vector<16x128xf32>
    %78 = arith.addf %75, %77 : vector<16x128xf32>
    %cst_47 = arith.constant 0.000000e+00 : f32
    %79 = vector.broadcast %cst_47 : f32 to vector<16x128xf32>
    %80 = arith.maximumf %78, %79 : vector<16x128xf32>
    %c2_i32_48 = arith.constant 2 : i32
    %81 = tpu.dynamic_rotate %80 by %c2_i32_48 dim 0 : vector<16x128xf32>, i32 -> vector<16x128xf32>
    %cst_49 = arith.constant 0.000000e+00 : f32
    %82 = vector.broadcast %cst_49 : f32 to vector<16x128xf32>
    %83 = vector.shape_cast %64 : vector<16x1xi1> to vector<16x1xi1>
    %84 = vector.broadcast %83 : vector<16x1xi1> to vector<16x128xi1>
    %85 = arith.select %84, %81, %82 : vector<16x128xi1>, vector<16x128xf32>
    %c0_50 = arith.constant 0 : index
    %c0_51 = arith.constant 0 : index
    %c0_52 = arith.constant 0 : index
    %86 = vector.load %arg10[%c0_50, %c0_51, %c0_52] : memref<2x128x128xf32, #tpu.memory_space<vmem>>, vector<1x128x128xf32>
    %87 = vector.shape_cast %86 : vector<1x128x128xf32> to vector<128x128xf32>
    %cst_53 = arith.constant dense<0.000000e+00> : vector<16x128xf32>
    %88 = tpu.matmul %85, %87, %cst_53 {dimension_numbers = #tpu.dot_dimension_numbers<[1], [0], [0], [1], [0, 0, 1, 1], [], []>} : vector<16x128xf32>, vector<128x128xf32>, vector<16x128xf32> -> vector<16x128xf32>
    %c1_54 = arith.constant 1 : index
    %c0_55 = arith.constant 0 : index
    %c0_56 = arith.constant 0 : index
    %89 = vector.load %arg10[%c1_54, %c0_55, %c0_56] : memref<2x128x128xf32, #tpu.memory_space<vmem>>, vector<1x128x128xf32>
    %90 = vector.shape_cast %89 : vector<1x128x128xf32> to vector<128x128xf32>
    %cst_57 = arith.constant dense<0.000000e+00> : vector<16x128xf32>
    %91 = tpu.matmul %80, %90, %cst_57 {dimension_numbers = #tpu.dot_dimension_numbers<[1], [0], [0], [1], [0, 0, 1, 1], [], []>} : vector<16x128xf32>, vector<128x128xf32>, vector<16x128xf32> -> vector<16x128xf32>
    %92 = arith.addf %88, %91 : vector<16x128xf32>
    %c0_58 = arith.constant 0 : index
    %c0_59 = arith.constant 0 : index
    %93 = vector.load %arg11[%c0_58, %c0_59] : memref<1x128xf32, #tpu.memory_space<vmem>>, vector<1x128xf32>
    %94 = vector.broadcast %93 : vector<1x128xf32> to vector<16x128xf32>
    %95 = arith.addf %92, %94 : vector<16x128xf32>
    %cst_60 = arith.constant 0.000000e+00 : f32
    %96 = vector.broadcast %cst_60 : f32 to vector<16x128xf32>
    %97 = arith.maximumf %95, %96 : vector<16x128xf32>
    %98 = arith.addf %97, %61 : vector<16x128xf32>
    %cst_61 = arith.constant 0.000000e+00 : f32
    %99 = vector.broadcast %cst_61 : f32 to vector<16x128xf32>
    %100 = arith.maximumf %98, %99 : vector<16x128xf32>
    %c0_62 = arith.constant 0 : index
    %c0_63 = arith.constant 0 : index
    %101 = vector.load %arg12[%c0_62, %c0_63] : memref<128x128xf32, #tpu.memory_space<vmem>>, vector<128x128xf32>
    %cst_64 = arith.constant dense<0.000000e+00> : vector<16x128xf32>
    %102 = tpu.matmul %100, %101, %cst_64 {dimension_numbers = #tpu.dot_dimension_numbers<[1], [0], [0], [1], [0, 0, 1, 1], [], []>} : vector<16x128xf32>, vector<128x128xf32>, vector<16x128xf32> -> vector<16x128xf32>
    %c0_65 = arith.constant 0 : index
    %c0_66 = arith.constant 0 : index
    %103 = vector.load %arg13[%c0_65, %c0_66] : memref<1x128xf32, #tpu.memory_space<vmem>>, vector<1x128xf32>
    %104 = vector.broadcast %103 : vector<1x128xf32> to vector<16x128xf32>
    %105 = arith.addf %102, %104 : vector<16x128xf32>
    %c0_67 = arith.constant 0 : index
    %c0_68 = arith.constant 0 : index
    %106 = vector.load %arg14[%c0_67, %c0_68] : memref<16x128xf32, #tpu.memory_space<vmem>>, vector<16x128xf32>
    tpu.vector_store %arg14[%c0_67, %c0_68], %105 {strides = array<i32>} : memref<16x128xf32, #tpu.memory_space<vmem>>, vector<16x128xf32>,
    return
  }
  func.func @transform_0(%arg0: i32) -> (i32, i32) {
    %c0_i32 = arith.constant 0 : i32
    %c0_i32_0 = arith.constant 0 : i32
    return %arg0, %c0_i32 : i32, i32
  }
  func.func @transform_1(%arg0: i32) -> (i32, i32, i32) {
    %c0_i32 = arith.constant 0 : i32
    %c0_i32_0 = arith.constant 0 : i32
    %c0_i32_1 = arith.constant 0 : i32
    %c0_i32_2 = arith.constant 0 : i32
    return %c0_i32, %c0_i32_0, %c0_i32_1 : i32, i32, i32
  }
  func.func @transform_2(%arg0: i32) -> (i32, i32) {
    %c0_i32 = arith.constant 0 : i32
    %c0_i32_0 = arith.constant 0 : i32
    %c0_i32_1 = arith.constant 0 : i32
    return %c0_i32, %c0_i32_0 : i32, i32
  }
  func.func @transform_3(%arg0: i32) -> (i32, i32, i32) {
    %c0_i32 = arith.constant 0 : i32
    %c0_i32_0 = arith.constant 0 : i32
    %c0_i32_1 = arith.constant 0 : i32
    %c0_i32_2 = arith.constant 0 : i32
    return %c0_i32, %c0_i32_0, %c0_i32_1 : i32, i32, i32
  }
  func.func @transform_4(%arg0: i32) -> (i32, i32) {
    %c0_i32 = arith.constant 0 : i32
    %c0_i32_0 = arith.constant 0 : i32
    %c0_i32_1 = arith.constant 0 : i32
    return %c0_i32, %c0_i32_0 : i32, i32
  }
  func.func @transform_5(%arg0: i32) -> (i32, i32) {
    %c0_i32 = arith.constant 0 : i32
    %c0_i32_0 = arith.constant 0 : i32
    %c0_i32_1 = arith.constant 0 : i32
    return %c0_i32, %c0_i32_0 : i32, i32
  }
  func.func @transform_6(%arg0: i32) -> (i32, i32) {
    %c0_i32 = arith.constant 0 : i32
    %c0_i32_0 = arith.constant 0 : i32
    %c0_i32_1 = arith.constant 0 : i32
    return %c0_i32, %c0_i32_0 : i32, i32
  }
  func.func @transform_7(%arg0: i32) -> (i32, i32, i32) {
    %c0_i32 = arith.constant 0 : i32
    %c0_i32_0 = arith.constant 0 : i32
    %c0_i32_1 = arith.constant 0 : i32
    %c0_i32_2 = arith.constant 0 : i32
    return %c0_i32, %c0_i32_0, %c0_i32_1 : i32, i32, i32
  }
  func.func @transform_8(%arg0: i32) -> (i32, i32) {
    %c0_i32 = arith.constant 0 : i32
    %c0_i32_0 = arith.constant 0 : i32
    %c0_i32_1 = arith.constant 0 : i32
    return %c0_i32, %c0_i32_0 : i32, i32
  }
  func.func @transform_9(%arg0: i32) -> (i32, i32, i32) {
    %c0_i32 = arith.constant 0 : i32
    %c0_i32_0 = arith.constant 0 : i32
    %c0_i32_1 = arith.constant 0 : i32
    %c0_i32_2 = arith.constant 0 : i32
    return %c0_i32, %c0_i32_0, %c0_i32_1 : i32, i32, i32
  }
  func.func @transform_10(%arg0: i32) -> (i32, i32) {
    %c0_i32 = arith.constant 0 : i32
    %c0_i32_0 = arith.constant 0 : i32
    %c0_i32_1 = arith.constant 0 : i32
    return %c0_i32, %c0_i32_0 : i32, i32
  }
  func.func @transform_11(%arg0: i32) -> (i32, i32) {
    %c0_i32 = arith.constant 0 : i32
    %c0_i32_0 = arith.constant 0 : i32
    %c0_i32_1 = arith.constant 0 : i32
    return %c0_i32, %c0_i32_0 : i32, i32
  }
  func.func @transform_12(%arg0: i32) -> (i32, i32) {
    %c0_i32 = arith.constant 0 : i32
    %c0_i32_0 = arith.constant 0 : i32
    %c0_i32_1 = arith.constant 0 : i32
    return %c0_i32, %c0_i32_0 : i32, i32
  }
  func.func @transform_13(%arg0: i32) -> (i32, i32) {
    %c0_i32 = arith.constant 0 : i32
    %c0_i32_0 = arith.constant 0 : i32
    return %arg0, %c0_i32 : i32, i32
  }
}

</mosaic_0001>

<llo_original>
// kernel: tpu_custom_call.1
$region0: #{tpu_custom_call.1}
  #allocation0 [shape = 'u32[]', space=smem, size = 0x4, offset = 0x4, fixed_abs, tag = 'smem constant byte address 0x4 - core index']
  #allocation1 [shape = 'u32[72,128]{1,0:T(1,128)}', space=vmem, size = 0x9000, scoped, tag = 'internal scratch']
  %s0 = inlined_call_operand.hbm [shape: f32[32,128], index: 0, kind: input, shape index: {}]
  %s1 = inlined_call_operand.hbm [shape: f32[2,128,128], index: 1, kind: input, shape index: {}]
  %s2 = inlined_call_operand.vmem [shape: f32[1,128], index: 2, kind: input, shape index: {}]
  %s3 = inlined_call_operand.hbm [shape: f32[2,128,128], index: 3, kind: input, shape index: {}]
  %s4 = inlined_call_operand.vmem [shape: f32[1,128], index: 4, kind: input, shape index: {}]
  %s5 = inlined_call_operand.hbm [shape: f32[128,128], index: 5, kind: input, shape index: {}]
  %s6 = inlined_call_operand.vmem [shape: f32[1,128], index: 6, kind: input, shape index: {}]
  %s7 = inlined_call_operand.hbm [shape: f32[2,128,128], index: 7, kind: input, shape index: {}]
  %s8 = inlined_call_operand.vmem [shape: f32[1,128], index: 8, kind: input, shape index: {}]
  %s9 = inlined_call_operand.hbm [shape: f32[2,128,128], index: 9, kind: input, shape index: {}]
  %s10 = inlined_call_operand.vmem [shape: f32[1,128], index: 10, kind: input, shape index: {}]
  %s11 = inlined_call_operand.hbm [shape: f32[128,128], index: 11, kind: input, shape index: {}]
  %s12 = inlined_call_operand.vmem [shape: f32[1,128], index: 12, kind: input, shape index: {}]
  %s13 = inlined_call_operand.hbm [shape: f32[32,128], index: 13, kind: output, shape index: {}]
  %s14 = sld [smem:[#allocation0]]
  $region113: #{tpu_custom_call.1} parent=0
    _
  %s16 = ssub.s32 1, %s14
  %s17 = scalar_select 0, %s16, %s14
  $region1: #{tpu_custom_call.1} parent=0
    #allocation2 [shape = 'u8[16384]{0}', space=vmem, size = 0x4000, scoped, tag = 'input window, operand 0']
    #allocation3 [shape = 's32[2]{0}', space=sflag, size = 0x8, scoped, tag = 'scoped memory for tpu_custom_call.1']
    #allocation4 [shape = 's32[2]{0}', space=sflag, size = 0x8, scoped, tag = 'scoped memory for tpu_custom_call.1']
    #allocation5 [shape = 'u8[131072]{0}', space=vmem, size = 0x20000, scoped, tag = 'input window, operand 1, single buffered']
    #allocation6 [shape = 's32[1]{0}', space=sflag, size = 0x4, scoped, tag = 'scoped memory for tpu_custom_call.1']
    #allocation7 [shape = 'u8[131072]{0}', space=vmem, size = 0x20000, scoped, tag = 'input window, operand 3, single buffered']
    #allocation8 [shape = 'u8[65536]{0}', space=vmem, size = 0x10000, scoped, tag = 'input window, operand 5, single buffered']
    #allocation9 [shape = 's32[1]{0}', space=sflag, size = 0x4, scoped, tag = 'scoped memory for tpu_custom_call.1']
    #allocation10 [shape = 'u8[131072]{0}', space=vmem, size = 0x20000, scoped, tag = 'input window, operand 7, single buffered']
    #allocation11 [shape = 'u8[131072]{0}', space=vmem, size = 0x20000, scoped, tag = 'input window, operand 9, single buffered']
    #allocation12 [shape = 's32[1]{0}', space=sflag, size = 0x4, scoped, tag = 'scoped memory for tpu_custom_call.1']
    #allocation13 [shape = 'u8[65536]{0}', space=vmem, size = 0x10000, scoped, tag = 'input window, operand 11, single buffered']
    #allocation14 [shape = 'u8[16384]{0}', space=vmem, size = 0x4000, scoped, tag = 'output window, operand 0']
    %18 = vsyncpa [#allocation3], 0
    %s19 = scalar_lea.sflag [#allocation3], 1
    %20 = vsyncpa %s19, 0
    %21 = vsyncpa [#allocation6], 0
    %22 = vsyncpa [#allocation9], 0
    %23 = vsyncpa [#allocation12], 0
    %24 = vsyncpa [#allocation4], 0
    %s25 = scalar_lea.sflag [#allocation4], 1
    %26 = vsyncpa %s25, 0
    loop: start=0, step=1, limit=4
    $region2: #{tpu_custom_call.1} parent=1 // loop_pre_header
      _
    $region3: #{tpu_custom_call.1} parent=1 // loop_header
      %s28 = sphi 0, %s32
      %p29 = scmp.ge.s32.totalorder %s28, 4
      %s38 = sphi 0, %s40
      %s41 = sphi 0, %s38
      %s42 = sphi 0, %s41
      %s58 = sphi 0, %s42
      %s62 = sphi 0, %s62
      %s64 = sphi 0, %s62
      %s65 = sphi 0, %s64
      %s79 = sphi 0, %s65
      %s83 = sphi 0, %s83
      %s85 = sphi 0, %s83
      %s86 = sphi 0, %s85
      %s100 = sphi 0, %s86
      %s104 = sphi 0, %s104
      %s106 = sphi 0, %s104
      %s107 = sphi 0, %s106
      %s121 = sphi 0, %s107
      %s125 = sphi 0, %s125
      %s127 = sphi 0, %s125
      %s128 = sphi 0, %s127
      %s142 = sphi 0, %s128
      %s146 = sphi 0, %s146
      %s148 = sphi 0, %s146
      %s149 = sphi 0, %s148
      %s163 = sphi 0, %s149
      %s167 = sphi 0, %s167
      %s169 = sphi 0, %s167
      %s170 = sphi 0, %s169
      %s184 = sphi 0, %s170
      %s188 = sphi 0, %s188
      %s190 = sphi 0, %s188
      %s191 = sphi 0, %s190
      %s205 = sphi 0, %s191
      %s209 = sphi 0, %s209
      %s211 = sphi 0, %s209
      %s212 = sphi 0, %s211
      %s226 = sphi 0, %s212
      %s230 = sphi 0, %s230
      %s232 = sphi 0, %s230
      %s233 = sphi 0, %s232
      %s247 = sphi 0, %s233
      %s251 = sphi 0, %s251
      %s253 = sphi 0, %s251
      %s254 = sphi 0, %s253
      %s268 = sphi 0, %s254
      %s272 = sphi 0, %s272
      %s274 = sphi 0, %s272
      %s275 = sphi 0, %s274
      %s289 = sphi 0, %s275
      %s293 = sphi 0, %s293
      %s295 = sphi 0, %s293
      %s296 = sphi 0, %s295
      %s310 = sphi 0, %s296
      %s316 = sphi 0, %s318
      %s319 = sphi 0, %s316
      %s320 = sphi 0, %s319
      %s336 = sphi 0, %s320
    $region4: #{tpu_custom_call.1} parent=1 // loop_header_branch
      %31 = sbr.rel (%p29) target = $region8
    $region5: #{tpu_custom_call.1} parent=1 // loop_body
      %s33 = ssub.s32 %s28, 1
      %s34 = ssub.s32 %s28, 2
      %s35 = sadd.s32 %s28, 1
      %s36 = ssub.s32 %s28, %s35
      %p37 = scmp.eq.s32.totalorder %s36, 0
      %s39 = sadd.s32 %s38, 1
      %s40 = scalar_select %p37, %s38, %s39
      %p43 = pneg %p37
      %p44 = scmp.eq.s32.totalorder %s28, 1
      %p45 = por %p43, %p44
      %p46 = scmp.ne.s32.totalorder %s38, %s41
      %p47 = scmp.eq.s32.totalorder %s28, 0
      %p48 = por %p46, %p47
      %p49 = scmp.ne.s32.totalorder %s38, %s41
      %p50 = scmp.eq.s32.totalorder %s33, 1
      %p51 = por %p49, %p50
      %p52 = scmp.ne.s32.totalorder %s41, %s42
      %p53 = scmp.eq.s32.totalorder %s33, 0
      %p54 = por %p52, %p53
      %p55 = scmp.ne.s32.totalorder %s41, %s42
      %p56 = scmp.eq.s32.totalorder %s34, 1
      %p57 = por %p55, %p56
      %p59 = scmp.ne.s32.totalorder %s42, %s58
      %p60 = scmp.eq.s32.totalorder %s34, 0
      %p61 = por %p59, %p60
      %s63 = sadd.s32 %s62, 1
      %p66 = scmp.eq.s32.totalorder %s28, 1
      %p67 = scmp.ne.s32.totalorder %s62, %s64
      %p68 = scmp.eq.s32.totalorder %s28, 0
      %p69 = por %p67, %p68
      %p70 = scmp.ne.s32.totalorder %s62, %s64
      %p71 = scmp.eq.s32.totalorder %s33, 1
      %p72 = por %p70, %p71
      %p73 = scmp.ne.s32.totalorder %s64, %s65
      %p74 = scmp.eq.s32.totalorder %s33, 0
      %p75 = por %p73, %p74
      %p76 = scmp.ne.s32.totalorder %s64, %s65
      %p77 = scmp.eq.s32.totalorder %s34, 1
      %p78 = por %p76, %p77
      %p80 = scmp.ne.s32.totalorder %s65, %s79
      %p81 = scmp.eq.s32.totalorder %s34, 0
      %p82 = por %p80, %p81
      %s84 = sadd.s32 %s83, 1
      %p87 = scmp.eq.s32.totalorder %s28, 1
      %p88 = scmp.ne.s32.totalorder %s83, %s85
      %p89 = scmp.eq.s32.totalorder %s28, 0
      %p90 = por %p88, %p89
      %p91 = scmp.ne.s32.totalorder %s83, %s85
      %p92 = scmp.eq.s32.totalorder %s33, 1
      %p93 = por %p91, %p92
      %p94 = scmp.ne.s32.totalorder %s85, %s86
      %p95 = scmp.eq.s32.totalorder %s33, 0
      %p96 = por %p94, %p95
      %p97 = scmp.ne.s32.totalorder %s85, %s86
      %p98 = scmp.eq.s32.totalorder %s34, 1
      %p99 = por %p97, %p98
      %p101 = scmp.ne.s32.totalorder %s86, %s100
      %p102 = scmp.eq.s32.totalorder %s34, 0
      %p103 = por %p101, %p102
      %s105 = sadd.s32 %s104, 1
      %p108 = scmp.eq.s32.totalorder %s28, 1
      %p109 = scmp.ne.s32.totalorder %s104, %s106
      %p110 = scmp.eq.s32.totalorder %s28, 0
      %p111 = por %p109, %p110
      %p112 = scmp.ne.s32.totalorder %s104, %s106
      %p113 = scmp.eq.s32.totalorder %s33, 1
      %p114 = por %p112, %p113
      %p115 = scmp.ne.s32.totalorder %s106, %s107
      %p116 = scmp.eq.s32.totalorder %s33, 0
      %p117 = por %p115, %p116
      %p118 = scmp.ne.s32.totalorder %s106, %s107
      %p119 = scmp.eq.s32.totalorder %s34, 1
      %p120 = por %p118, %p119
      %p122 = scmp.ne.s32.totalorder %s107, %s121
      %p123 = scmp.eq.s32.totalorder %s34, 0
      %p124 = por %p122, %p123
      %s126 = sadd.s32 %s125, 1
      %p129 = scmp.eq.s32.totalorder %s28, 1
      %p130 = scmp.ne.s32.totalorder %s125, %s127
      %p131 = scmp.eq.s32.totalorder %s28, 0
      %p132 = por %p130, %p131
      %p133 = scmp.ne.s32.totalorder %s125, %s127
      %p134 = scmp.eq.s32.totalorder %s33, 1
      %p135 = por %p133, %p134
      %p136 = scmp.ne.s32.totalorder %s127, %s128
      %p137 = scmp.eq.s32.totalorder %s33, 0
      %p138 = por %p136, %p137
      %p139 = scmp.ne.s32.totalorder %s127, %s128
      %p140 = scmp.eq.s32.totalorder %s34, 1
      %p141 = por %p139, %p140
      %p143 = scmp.ne.s32.totalorder %s128, %s142
      %p144 = scmp.eq.s32.totalorder %s34, 0
      %p145 = por %p143, %p144
      %s147 = sadd.s32 %s146, 1
      %p150 = scmp.eq.s32.totalorder %s28, 1
      %p151 = scmp.ne.s32.totalorder %s146, %s148
      %p152 = scmp.eq.s32.totalorder %s28, 0
      %p153 = por %p151, %p152
      %p154 = scmp.ne.s32.totalorder %s146, %s148
      %p155 = scmp.eq.s32.totalorder %s33, 1
      %p156 = por %p154, %p155
      %p157 = scmp.ne.s32.totalorder %s148, %s149
      %p158 = scmp.eq.s32.totalorder %s33, 0
      %p159 = por %p157, %p158
      %p160 = scmp.ne.s32.totalorder %s148, %s149
      %p161 = scmp.eq.s32.totalorder %s34, 1
      %p162 = por %p160, %p161
      %p164 = scmp.ne.s32.totalorder %s149, %s163
      %p165 = scmp.eq.s32.totalorder %s34, 0
      %p166 = por %p164, %p165
      %s168 = sadd.s32 %s167, 1
      %p171 = scmp.eq.s32.totalorder %s28, 1
      %p172 = scmp.ne.s32.totalorder %s167, %s169
      %p173 = scmp.eq.s32.totalorder %s28, 0
      %p174 = por %p172, %p173
      %p175 = scmp.ne.s32.totalorder %s167, %s169
      %p176 = scmp.eq.s32.totalorder %s33, 1
      %p177 = por %p175, %p176
      %p178 = scmp.ne.s32.totalorder %s169, %s170
      %p179 = scmp.eq.s32.totalorder %s33, 0
      %p180 = por %p178, %p179
      %p181 = scmp.ne.s32.totalorder %s169, %s170
      %p182 = scmp.eq.s32.totalorder %s34, 1
      %p183 = por %p181, %p182
      %p185 = scmp.ne.s32.totalorder %s170, %s184
      %p186 = scmp.eq.s32.totalorder %s34, 0
      %p187 = por %p185, %p186
      %s189 = sadd.s32 %s188, 1
      %p192 = scmp.eq.s32.totalorder %s28, 1
      %p193 = scmp.ne.s32.totalorder %s188, %s190
      %p194 = scmp.eq.s32.totalorder %s28, 0
      %p195 = por %p193, %p194
      %p196 = scmp.ne.s32.totalorder %s188, %s190
      %p197 = scmp.eq.s32.totalorder %s33, 1
      %p198 = por %p196, %p197
      %p199 = scmp.ne.s32.totalorder %s190, %s191
      %p200 = scmp.eq.s32.totalorder %s33, 0
      %p201 = por %p199, %p200
      %p202 = scmp.ne.s32.totalorder %s190, %s191
      %p203 = scmp.eq.s32.totalorder %s34, 1
      %p204 = por %p202, %p203
      %p206 = scmp.ne.s32.totalorder %s191, %s205
      %p207 = scmp.eq.s32.totalorder %s34, 0
      %p208 = por %p206, %p207
      %s210 = sadd.s32 %s209, 1
      %p213 = scmp.eq.s32.totalorder %s28, 1
      %p214 = scmp.ne.s32.totalorder %s209, %s211
      %p215 = scmp.eq.s32.totalorder %s28, 0
      %p216 = por %p214, %p215
      %p217 = scmp.ne.s32.totalorder %s209, %s211
      %p218 = scmp.eq.s32.totalorder %s33, 1
      %p219 = por %p217, %p218
      %p220 = scmp.ne.s32.totalorder %s211, %s212
      %p221 = scmp.eq.s32.totalorder %s33, 0
      %p222 = por %p220, %p221
      %p223 = scmp.ne.s32.totalorder %s211, %s212
      %p224 = scmp.eq.s32.totalorder %s34, 1
      %p225 = por %p223, %p224
      %p227 = scmp.ne.s32.totalorder %s212, %s226
      %p228 = scmp.eq.s32.totalorder %s34, 0
      %p229 = por %p227, %p228
      %s231 = sadd.s32 %s230, 1
      %p234 = scmp.eq.s32.totalorder %s28, 1
      %p235 = scmp.ne.s32.totalorder %s230, %s232
      %p236 = scmp.eq.s32.totalorder %s28, 0
      %p237 = por %p235, %p236
      %p238 = scmp.ne.s32.totalorder %s230, %s232
      %p239 = scmp.eq.s32.totalorder %s33, 1
      %p240 = por %p238, %p239
      %p241 = scmp.ne.s32.totalorder %s232, %s233
      %p242 = scmp.eq.s32.totalorder %s33, 0
      %p243 = por %p241, %p242
      %p244 = scmp.ne.s32.totalorder %s232, %s233
      %p245 = scmp.eq.s32.totalorder %s34, 1
      %p246 = por %p244, %p245
      %p248 = scmp.ne.s32.totalorder %s233, %s247
      %p249 = scmp.eq.s32.totalorder %s34, 0
      %p250 = por %p248, %p249
      %s252 = sadd.s32 %s251, 1
      %p255 = scmp.eq.s32.totalorder %s28, 1
      %p256 = scmp.ne.s32.totalorder %s251, %s253
      %p257 = scmp.eq.s32.totalorder %s28, 0
      %p258 = por %p256, %p257
      %p259 = scmp.ne.s32.totalorder %s251, %s253
      %p260 = scmp.eq.s32.totalorder %s33, 1
      %p261 = por %p259, %p260
      %p262 = scmp.ne.s32.totalorder %s253, %s254
      %p263 = scmp.eq.s32.totalorder %s33, 0
      %p264 = por %p262, %p263
      %p265 = scmp.ne.s32.totalorder %s253, %s254
      %p266 = scmp.eq.s32.totalorder %s34, 1
      %p267 = por %p265, %p266
      %p269 = scmp.ne.s32.totalorder %s254, %s268
      %p270 = scmp.eq.s32.totalorder %s34, 0
      %p271 = por %p269, %p270
      %s273 = sadd.s32 %s272, 1
      %p276 = scmp.eq.s32.totalorder %s28, 1
      %p277 = scmp.ne.s32.totalorder %s272, %s274
      %p278 = scmp.eq.s32.totalorder %s28, 0
      %p279 = por %p277, %p278
      %p280 = scmp.ne.s32.totalorder %s272, %s274
      %p281 = scmp.eq.s32.totalorder %s33, 1
      %p282 = por %p280, %p281
      %p283 = scmp.ne.s32.totalorder %s274, %s275
      %p284 = scmp.eq.s32.totalorder %s33, 0
      %p285 = por %p283, %p284
      %p286 = scmp.ne.s32.totalorder %s274, %s275
      %p287 = scmp.eq.s32.totalorder %s34, 1
      %p288 = por %p286, %p287
      %p290 = scmp.ne.s32.totalorder %s275, %s289
      %p291 = scmp.eq.s32.totalorder %s34, 0
      %p292 = por %p290, %p291
      %s294 = sadd.s32 %s293, 1
      %p297 = scmp.eq.s32.totalorder %s28, 1
      %p298 = scmp.ne.s32.totalorder %s293, %s295
      %p299 = scmp.eq.s32.totalorder %s28, 0
      %p300 = por %p298, %p299
      %p301 = scmp.ne.s32.totalorder %s293, %s295
      %p302 = scmp.eq.s32.totalorder %s33, 1
      %p303 = por %p301, %p302
      %p304 = scmp.ne.s32.totalorder %s295, %s296
      %p305 = scmp.eq.s32.totalorder %s33, 0
      %p306 = por %p304, %p305
      %p307 = scmp.ne.s32.totalorder %s295, %s296
      %p308 = scmp.eq.s32.totalorder %s34, 1
      %p309 = por %p307, %p308
      %p311 = scmp.ne.s32.totalorder %s296, %s310
      %p312 = scmp.eq.s32.totalorder %s34, 0
      %p313 = por %p311, %p312
      %s314 = ssub.s32 %s28, %s35
      %p315 = scmp.eq.s32.totalorder %s314, 0
      %s317 = sadd.s32 %s316, 1
      %s318 = scalar_select %p315, %s316, %s317
      %p321 = pneg %p315
      %p322 = scmp.eq.s32.totalorder %s28, 1
      %p323 = por %p321, %p322
      %p324 = scmp.ne.s32.totalorder %s316, %s319
      %p325 = scmp.eq.s32.totalorder %s28, 0
      %p326 = por %p324, %p325
      %p327 = scmp.ne.s32.totalorder %s316, %s319
      %p328 = scmp.eq.s32.totalorder %s33, 1
      %p329 = por %p327, %p328
      %p330 = scmp.ne.s32.totalorder %s319, %s320
      %p331 = scmp.eq.s32.totalorder %s33, 0
      %p332 = por %p330, %p331
      %p333 = scmp.ne.s32.totalorder %s319, %s320
      %p334 = scmp.eq.s32.totalorder %s34, 1
      %p335 = por %p333, %p334
      %p337 = scmp.ne.s32.totalorder %s320, %s336
      %p338 = scmp.eq.s32.totalorder %s34, 0
      %p339 = por %p337, %p338
      %p340 = scmp.le.s32.totalorder 1, %s28
      %p341 = scmp.lt.s32.totalorder %s28, 3
      %p342 = pnand %p340, %p341
      %p343 = pneg %p342
      // Predicated region
      $region9: #{tpu_custom_call.1} parent=5 // pred_check
        _
      $region10: #{tpu_custom_call.1} parent=5 // pred_check_branch
        %345 = sbr.rel (%p342) target = $region12
      $region11: #{tpu_custom_call.1} parent=5 // pred_region
        %s346 = ssub.s32 %s28, 1
        // Predicated region
        $region13: #{tpu_custom_call.1} parent=11 // pred_check
          %p347 = pneg %p75
        $region14: #{tpu_custom_call.1} parent=11 // pred_check_branch
          %349 = sbr.rel (%p347) target = $region16
        $region15: #{tpu_custom_call.1} parent=11 // pred_region
          %351 = vsyncadd [#allocation6], 0
          %s352 = sshll.u32 %s1, 4
          %s353 = int_to_ptr.hbm [resolvable:$true] %s352
          %s354 = sshll.u32 [#allocation5], 4
          %s355 = int_to_ptr.vmem [resolvable:$true] %s354
          %360 = dma.hbm_to_vmem [thread:$0]  %s353, 4096, %s355, [#allocation6], 128, 128, 8
        $region16: #{tpu_custom_call.1} parent=11 // pred_fallthru
          _
        // Predicated region
        $region17: #{tpu_custom_call.1} parent=11 // pred_check
          %p361 = pneg %p96
        $region18: #{tpu_custom_call.1} parent=11 // pred_check_branch
          %363 = sbr.rel (%p361) target = $region20
        $region19: #{tpu_custom_call.1} parent=11 // pred_region
          _
        $region20: #{tpu_custom_call.1} parent=11 // pred_fallthru
          _
        // Predicated region
        $region21: #{tpu_custom_call.1} parent=11 // pred_check
          %p364 = pneg %p117
        $region22: #{tpu_custom_call.1} parent=11 // pred_check_branch
          %366 = sbr.rel (%p364) target = $region24
        $region23: #{tpu_custom_call.1} parent=11 // pred_region
          %368 = vsyncadd [#allocation6], 0
          %s369 = sshll.u32 %s3, 4
          %s370 = int_to_ptr.hbm [resolvable:$true] %s369
          %s371 = sshll.u32 [#allocation7], 4
          %s372 = int_to_ptr.vmem [resolvable:$true] %s371
          %377 = dma.hbm_to_vmem [thread:$0]  %s370, 4096, %s372, [#allocation6], 128, 128, 8
        $region24: #{tpu_custom_call.1} parent=11 // pred_fallthru
          _
        // Predicated region
        $region25: #{tpu_custom_call.1} parent=11 // pred_check
          %p378 = pneg %p138
        $region26: #{tpu_custom_call.1} parent=11 // pred_check_branch
          %380 = sbr.rel (%p378) target = $region28
        $region27: #{tpu_custom_call.1} parent=11 // pred_region
          _
        $region28: #{tpu_custom_call.1} parent=11 // pred_fallthru
          _
        // Predicated region
        $region29: #{tpu_custom_call.1} parent=11 // pred_check
          %p381 = pneg %p159
        $region30: #{tpu_custom_call.1} parent=11 // pred_check_branch
          %383 = sbr.rel (%p381) target = $region32
        $region31: #{tpu_custom_call.1} parent=11 // pred_region
          %385 = vsyncadd [#allocation9], 0
          %s386 = sshll.u32 %s5, 4
          %s387 = int_to_ptr.hbm [resolvable:$true] %s386
          %s388 = sshll.u32 [#allocation8], 4
          %s389 = int_to_ptr.vmem [resolvable:$true] %s388
          %394 = dma.hbm_to_vmem [thread:$0]  %s387, 2048, %s389, [#allocation9], 128, 128, 8
        $region32: #{tpu_custom_call.1} parent=11 // pred_fallthru
          _
        // Predicated region
        $region33: #{tpu_custom_call.1} parent=11 // pred_check
          %p395 = pneg %p180
        $region34: #{tpu_custom_call.1} parent=11 // pred_check_branch
          %397 = sbr.rel (%p395) target = $region36
        $region35: #{tpu_custom_call.1} parent=11 // pred_region
          _
        $region36: #{tpu_custom_call.1} parent=11 // pred_fallthru
          _
        // Predicated region
        $region37: #{tpu_custom_call.1} parent=11 // pred_check
          %p398 = pneg %p201
        $region38: #{tpu_custom_call.1} parent=11 // pred_check_branch
          %400 = sbr.rel (%p398) target = $region40
        $region39: #{tpu_custom_call.1} parent=11 // pred_region
          %402 = vsyncadd [#allocation9], 0
          %s403 = sshll.u32 %s7, 4
          %s404 = int_to_ptr.hbm [resolvable:$true] %s403
          %s405 = sshll.u32 [#allocation10], 4
          %s406 = int_to_ptr.vmem [resolvable:$true] %s405
          %411 = dma.hbm_to_vmem [thread:$0]  %s404, 4096, %s406, [#allocation9], 128, 128, 8
        $region40: #{tpu_custom_call.1} parent=11 // pred_fallthru
          _
        // Predicated region
        $region41: #{tpu_custom_call.1} parent=11 // pred_check
          %p412 = pneg %p222
        $region42: #{tpu_custom_call.1} parent=11 // pred_check_branch
          %414 = sbr.rel (%p412) target = $region44
        $region43: #{tpu_custom_call.1} parent=11 // pred_region
          _
        $region44: #{tpu_custom_call.1} parent=11 // pred_fallthru
          _
        // Predicated region
        $region45: #{tpu_custom_call.1} parent=11 // pred_check
          %p415 = pneg %p243
        $region46: #{tpu_custom_call.1} parent=11 // pred_check_branch
          %417 = sbr.rel (%p415) target = $region48
        $region47: #{tpu_custom_call.1} parent=11 // pred_region
          %419 = vsyncadd [#allocation12], 0
          %s420 = sshll.u32 %s9, 4
          %s421 = int_to_ptr.hbm [resolvable:$true] %s420
          %s422 = sshll.u32 [#allocation11], 4
          %s423 = int_to_ptr.vmem [resolvable:$true] %s422
          %428 = dma.hbm_to_vmem [thread:$0]  %s421, 4096, %s423, [#allocation12], 128, 128, 8
        $region48: #{tpu_custom_call.1} parent=11 // pred_fallthru
          _
        // Predicated region
        $region49: #{tpu_custom_call.1} parent=11 // pred_check
          %p429 = pneg %p264
        $region50: #{tpu_custom_call.1} parent=11 // pred_check_branch
          %431 = sbr.rel (%p429) target = $region52
        $region51: #{tpu_custom_call.1} parent=11 // pred_region
          _
        $region52: #{tpu_custom_call.1} parent=11 // pred_fallthru
          _
        // Predicated region
        $region53: #{tpu_custom_call.1} parent=11 // pred_check
          %p432 = pneg %p285
        $region54: #{tpu_custom_call.1} parent=11 // pred_check_branch
          %434 = sbr.rel (%p432) target = $region56
        $region55: #{tpu_custom_call.1} parent=11 // pred_region
          %436 = vsyncadd [#allocation12], 0
          %s437 = sshll.u32 %s11, 4
          %s438 = int_to_ptr.hbm [resolvable:$true] %s437
          %s439 = sshll.u32 [#allocation13], 4
          %s440 = int_to_ptr.vmem [resolvable:$true] %s439
          %445 = dma.hbm_to_vmem [thread:$0]  %s438, 2048, %s440, [#allocation12], 128, 128, 8
        $region56: #{tpu_custom_call.1} parent=11 // pred_fallthru
          _
        // Predicated region
        $region57: #{tpu_custom_call.1} parent=11 // pred_check
          %p446 = pneg %p306
        $region58: #{tpu_custom_call.1} parent=11 // pred_check_branch
          %448 = sbr.rel (%p446) target = $region60
        $region59: #{tpu_custom_call.1} parent=11 // pred_region
          _
        $region60: #{tpu_custom_call.1} parent=11 // pred_fallthru
          _
      $region12: #{tpu_custom_call.1} parent=5 // pred_fallthru
        _
      %p449 = scmp.lt.s32.totalorder %s28, 2
      // Predicated region
      $region61: #{tpu_custom_call.1} parent=5 // pred_check
        %p450 = pneg %p449
      $region62: #{tpu_custom_call.1} parent=5 // pred_check_branch
        %452 = sbr.rel (%p450) target = $region64
      $region63: #{tpu_custom_call.1} parent=5 // pred_region
        // Predicated region
        $region65: #{tpu_custom_call.1} parent=63 // pred_check
          %p453 = pneg %p48
        $region66: #{tpu_custom_call.1} parent=63 // pred_check_branch
          %455 = sbr.rel (%p453) target = $region68
        $region67: #{tpu_custom_call.1} parent=63 // pred_region
          %s456 = sand.u32 %s38, 1
          %s457 = scalar_lea.sflag [#allocation3], %s456
          %s458 = sand.u32 %s38, 1
          %s459 = smul.addr %s458, 16
          %s460 = scalar_lea.vmem [#allocation2], %s459
          %s461 = smul.u32 2, %s28
          %463 = vsyncadd %s457, 0
          %s464 = smul.addr %s461, 8
          %s465 = scalar_lea.hbm %s0, %s464
          %s466 = sshll.u32 %s465, 4
          %s467 = int_to_ptr.hbm [resolvable:$true] %s466
          %s468 = sshll.u32 %s460, 4
          %s469 = int_to_ptr.vmem [resolvable:$true] %s468
          %474 = dma.hbm_to_vmem [thread:$0]  %s467, 256, %s469, %s457, 128, 128, 8
        $region68: #{tpu_custom_call.1} parent=63 // pred_fallthru
          _
      $region64: #{tpu_custom_call.1} parent=5 // pred_fallthru
        _
      %p475 = scmp.le.s32.totalorder 1, %s28
      %p476 = scmp.lt.s32.totalorder %s28, 3
      %p477 = pnand %p475, %p476
      %p478 = pneg %p477
      // Predicated region
      $region69: #{tpu_custom_call.1} parent=5 // pred_check
        _
      $region70: #{tpu_custom_call.1} parent=5 // pred_check_branch
        %480 = sbr.rel (%p477) target = $region72
      $region71: #{tpu_custom_call.1} parent=5 // pred_region
        %s481 = ssub.s32 %s28, 1
        %s482 = sand.u32 %s41, 1
        %s483 = scalar_lea.sflag [#allocation3], %s482
        %s484 = sand.u32 %s41, 1
        %s485 = smul.addr %s484, 16
        %s486 = scalar_lea.vmem [#allocation2], %s485
        // Predicated region
        $region73: #{tpu_custom_call.1} parent=71 // pred_check
          %p487 = pneg %p54
        $region74: #{tpu_custom_call.1} parent=71 // pred_check_branch
          %489 = sbr.rel (%p487) target = $region76
        $region75: #{tpu_custom_call.1} parent=71 // pred_region
          %491 = dma.done %s483, 256
        $region76: #{tpu_custom_call.1} parent=71 // pred_fallthru
          _
        // Predicated region
        $region77: #{tpu_custom_call.1} parent=71 // pred_check
          %p492 = pneg %p75
        $region78: #{tpu_custom_call.1} parent=71 // pred_check_branch
          %494 = sbr.rel (%p492) target = $region80
        $region79: #{tpu_custom_call.1} parent=71 // pred_region
          %496 = dma.done [#allocation6], 4096
        $region80: #{tpu_custom_call.1} parent=71 // pred_fallthru
          _
        // Predicated region
        $region81: #{tpu_custom_call.1} parent=71 // pred_check
          %p497 = pneg %p117
        $region82: #{tpu_custom_call.1} parent=71 // pred_check_branch
          %499 = sbr.rel (%p497) target = $region84
        $region83: #{tpu_custom_call.1} parent=71 // pred_region
          %501 = dma.done [#allocation6], 4096
        $region84: #{tpu_custom_call.1} parent=71 // pred_fallthru
          _
        // Predicated region
        $region85: #{tpu_custom_call.1} parent=71 // pred_check
          %p502 = pneg %p159
        $region86: #{tpu_custom_call.1} parent=71 // pred_check_branch
          %504 = sbr.rel (%p502) target = $region88
        $region87: #{tpu_custom_call.1} parent=71 // pred_region
          %506 = dma.done [#allocation9], 2048
        $region88: #{tpu_custom_call.1} parent=71 // pred_fallthru
          _
        // Predicated region
        $region89: #{tpu_custom_call.1} parent=71 // pred_check
          %p507 = pneg %p201
        $region90: #{tpu_custom_call.1} parent=71 // pred_check_branch
          %509 = sbr.rel (%p507) target = $region92
        $region91: #{tpu_custom_call.1} parent=71 // pred_region
          %511 = dma.done [#allocation9], 4096
        $region92: #{tpu_custom_call.1} parent=71 // pred_fallthru
          _
        // Predicated region
        $region93: #{tpu_custom_call.1} parent=71 // pred_check
          %p512 = pneg %p243
        $region94: #{tpu_custom_call.1} parent=71 // pred_check_branch
          %514 = sbr.rel (%p512) target = $region96
        $region95: #{tpu_custom_call.1} parent=71 // pred_region
          %516 = dma.done [#allocation12], 4096
        $region96: #{tpu_custom_call.1} parent=71 // pred_fallthru
          _
        // Predicated region
        $region97: #{tpu_custom_call.1} parent=71 // pred_check
          %p517 = pneg %p285
        $region98: #{tpu_custom_call.1} parent=71 // pred_check_branch
          %519 = sbr.rel (%p517) target = $region100
        $region99: #{tpu_custom_call.1} parent=71 // pred_region
          %521 = dma.done [#allocation12], 2048
        $region100: #{tpu_custom_call.1} parent=71 // pred_fallthru
          _
        %s522 = sand.u32 %s41, 1
        %s523 = scalar_lea.sflag [#allocation3], %s522
        %s524 = sand.u32 %s41, 1
        %s525 = smul.addr %s524, 16
        %s526 = scalar_lea.vmem [#allocation2], %s525
        %p527 = pneg %p54
        %p528 = pneg %p51
        %p529 = pneg %p75
        %p530 = pneg %p72
        %p531 = pneg %p96
        %p532 = pneg %p93
        %p533 = pneg %p117
        %p534 = pneg %p114
        %p535 = pneg %p138
        %p536 = pneg %p135
        %p537 = pneg %p159
        %p538 = pneg %p156
        %p539 = pneg %p180
        %p540 = pneg %p177
        %p541 = pneg %p201
        %p542 = pneg %p198
        %p543 = pneg %p222
        %p544 = pneg %p219
        %p545 = pneg %p243
        %p546 = pneg %p240
        %p547 = pneg %p264
        %p548 = pneg %p261
        %p549 = pneg %p285
        %p550 = pneg %p282
        %p551 = pneg %p306
        %p552 = pneg %p303
        %p553 = pneg %p332
        %p554 = pneg %p329
        %s555 = sand.u32 %s319, 1
        %s556 = scalar_lea.sflag [#allocation4], %s555
        %s557 = sand.u32 %s319, 1
        %s558 = smul.addr %s557, 16
        %s559 = scalar_lea.vmem [#allocation14], %s558
        %s560 = smul.u32 2, %s33
        %s561 = smul.u32 2, %s33
        %v562 = vlaneseq
        %v563 = vshrl.u32 %v562, 7
        %v564 = vadd.s32 %v563, 8
        %vm565 = vcmp.lt.s32.totalorder %v563, 0
        %v566 = vsub.s32 0, %v563
        %v567 = vsel %vm565, %v566, %v563
        %v568 = vshrl.u32 %v567, 4
        %v569 = vand.u32 %v567, 15
        %v570 = vsub.s32 0, %v569
        %v571 = vsel %vm565, %v570, %v569
        %vm572 = vcmp.lt.s32.totalorder %v564, 0
        %v573 = vsub.s32 0, %v564
        %v574 = vsel %vm572, %v573, %v564
        %v575 = vshrl.u32 %v574, 4
        %v576 = vand.u32 %v574, 15
        %v577 = vsub.s32 0, %v576
        %v578 = vsel %vm572, %v577, %v576
        %vm579 = vcmp.ne.s32.totalorder %v571, 0
        %vm580 = vcmp.ne.s32.totalorder %v578, 0
        %vm581 = vcmp.lt.s32.totalorder %v571, 0
        %vm582 = vcmp.lt.s32.totalorder %v578, 0
        %vm583 = vmand %vm581, %vm579
        %vm584 = vmand %vm582, %vm580
        %v585 = vadd.s32 %v571, 16
        %v586 = vadd.s32 %v578, 16
        %v587 = vsel %vm583, %v585, %v571
        %v588 = vsel %vm584, %v586, %v578
        %v589 = vld [vmem:[%s486] sm:$0xff]
        %v590 = vld [vmem:[%s486 + $0x8] sm:$0xff]
        %v591 = vrot.slane %v589, 7
        %v592 = vrot.slane %v590, 7
        %vm593 = vcmp.lt.s32.totalorder %v563, 1
        %v594 = vsel %vm593, %v591, %v592
        %v595 = vsel %vm593, %v592, %v591
        %vm596 = vcmp.ge.s32.totalorder %v587, 1
        %vm597 = vcmp.ge.s32.totalorder %v588, 1
        %v598 = vsel %vm596, 1, 0
        %v599 = vsel %vm597, 1, 0
        %vm600 = vcmp.eq.s32.totalorder %v598, 1
        %vm601 = vcmp.eq.s32.totalorder %v599, 1
        %v602 = vsel %vm600, %v595, 0.0
        %v603 = vsel %vm601, %v594, 0.0
        %v604 = vld [vmem:[#allocation5] sm:$0xff]
        %v605 = vld [vmem:[#allocation5 + $0x8] sm:$0xff]
        %v606 = vld [vmem:[#allocation5 + $0x10] sm:$0xff]
        %v607 = vld [vmem:[#allocation5 + $0x18] sm:$0xff]
        %v608 = vld [vmem:[#allocation5 + $0x20] sm:$0xff]
        %v609 = vld [vmem:[#allocation5 + $0x28] sm:$0xff]
        %v610 = vld [vmem:[#allocation5 + $0x30] sm:$0xff]
        %v611 = vld [vmem:[#allocation5 + $0x38] sm:$0xff]
        %v612 = vld [vmem:[#allocation5 + $0x40] sm:$0xff]
        %v613 = vld [vmem:[#allocation5 + $0x48] sm:$0xff]
        %v614 = vld [vmem:[#allocation5 + $0x50] sm:$0xff]
        %v615 = vld [vmem:[#allocation5 + $0x58] sm:$0xff]
        %v616 = vld [vmem:[#allocation5 + $0x60] sm:$0xff]
        %v617 = vld [vmem:[#allocation5 + $0x68] sm:$0xff]
        %v618 = vld [vmem:[#allocation5 + $0x70] sm:$0xff]
        %v619 = vld [vmem:[#allocation5 + $0x78] sm:$0xff]
        %s620 = scalar_lea.vmem [#allocation5], 128
        %v621 = vld [vmem:[%s620] sm:$0xff]
        %v622 = vld [vmem:[%s620 + $0x8] sm:$0xff]
        %v623 = vld [vmem:[%s620 + $0x10] sm:$0xff]
        %v624 = vld [vmem:[%s620 + $0x18] sm:$0xff]
        %v625 = vld [vmem:[%s620 + $0x20] sm:$0xff]
        %v626 = vld [vmem:[%s620 + $0x28] sm:$0xff]
        %v627 = vld [vmem:[%s620 + $0x30] sm:$0xff]
        %v628 = vld [vmem:[%s620 + $0x38] sm:$0xff]
        %v629 = vld [vmem:[%s620 + $0x40] sm:$0xff]
        %v630 = vld [vmem:[%s620 + $0x48] sm:$0xff]
        %v631 = vld [vmem:[%s620 + $0x50] sm:$0xff]
        %v632 = vld [vmem:[%s620 + $0x58] sm:$0xff]
        %v633 = vld [vmem:[%s620 + $0x60] sm:$0xff]
        %v634 = vld [vmem:[%s620 + $0x68] sm:$0xff]
        %v635 = vld [vmem:[%s620 + $0x70] sm:$0xff]
        %v636 = vld [vmem:[%s620 + $0x78] sm:$0xff]
        %637 = vmatpush.msra.mxu0 %v636
        %638 = vmatpush.msra.mxu0 %v635
        %639 = vmatpush.msra.mxu0 %v634
        %640 = vmatpush.msra.mxu0 %v633
        %641 = vmatpush.msra.mxu0 %v632
        %642 = vmatpush.msra.mxu0 %v631
        %643 = vmatpush.msra.mxu0 %v630
        %644 = vmatpush.msra.mxu0 %v629
        %645 = vmatpush.msra.mxu0 %v628
        %646 = vmatpush.msra.mxu0 %v627
        %647 = vmatpush.msra.mxu0 %v626
        %648 = vmatpush.msra.mxu0 %v625
        %649 = vmatpush.msra.mxu0 %v624
        %650 = vmatpush.msra.mxu0 %v623
        %651 = vmatpush.msra.mxu0 %v622
        %652 = vmatpush.msra.mxu0 %v621
        %653 = vmatmul.f32.gmra.mxu0 %v589
        %v654 = vpop.f32.mrf.mxu0
        %v655 = vadd.f32 0.0, %v654
        %656 = vmatmul.f32.gmra.mxu0 %v590
        %v657 = vpop.f32.mrf.mxu0
        %v658 = vadd.f32 0.0, %v657
        %659 = vdwg.mxu0
        %660 = vmatpush.msra.mxu0 %v619
        %661 = vmatpush.msra.mxu0 %v618
        %662 = vmatpush.msra.mxu0 %v617
        %663 = vmatpush.msra.mxu0 %v616
        %664 = vmatpush.msra.mxu0 %v615
        %665 = vmatpush.msra.mxu0 %v614
        %666 = vmatpush.msra.mxu0 %v613
        %667 = vmatpush.msra.mxu0 %v612
        %668 = vmatpush.msra.mxu0 %v611
        %669 = vmatpush.msra.mxu0 %v610
        %670 = vmatpush.msra.mxu0 %v609
        %671 = vmatpush.msra.mxu0 %v608
        %672 = vmatpush.msra.mxu0 %v607
        %673 = vmatpush.msra.mxu0 %v606
        %674 = vmatpush.msra.mxu0 %v605
        %675 = vmatpush.msra.mxu0 %v604
        %676 = vmatmul.f32.gmra.mxu0 %v602
        %v677 = vpop.f32.mrf.mxu0
        %v678 = vadd.f32 %v655, %v677
        %679 = vmatmul.f32.gmra.mxu0 %v603
        %v680 = vpop.f32.mrf.mxu0
        %v681 = vadd.f32 %v658, %v680
        %682 = vdwg.mxu0
        %v683 = vld [vmem:[%s2] sm:$0x1]
        %v685 = vperm.slane %v683, 0
        %v687 = vadd.f32 %v678, %v685
        %v688 = vadd.f32 %v681, %v685
        %v689 = vmax.f32 %v687, 0.0
        %v690 = vmax.f32 %v688, 0.0
        %v691 = vrot.slane %v689, 7
        %v692 = vrot.slane %v690, 7
        %v693 = vsel %vm593, %v691, %v692
        %v694 = vsel %vm593, %v692, %v691
        %v695 = vsel %vm600, %v694, 0.0
        %v696 = vsel %vm601, %v693, 0.0
        %v697 = vld [vmem:[#allocation7] sm:$0xff]
        %v698 = vld [vmem:[#allocation7 + $0x8] sm:$0xff]
        %v699 = vld [vmem:[#allocation7 + $0x10] sm:$0xff]
        %v700 = vld [vmem:[#allocation7 + $0x18] sm:$0xff]
        %v701 = vld [vmem:[#allocation7 + $0x20] sm:$0xff]
        %v702 = vld [vmem:[#allocation7 + $0x28] sm:$0xff]
        %v703 = vld [vmem:[#allocation7 + $0x30] sm:$0xff]
        %v704 = vld [vmem:[#allocation7 + $0x38] sm:$0xff]
        %v705 = vld [vmem:[#allocation7 + $0x40] sm:$0xff]
        %v706 = vld [vmem:[#allocation7 + $0x48] sm:$0xff]
        %v707 = vld [vmem:[#allocation7 + $0x50] sm:$0xff]
        %v708 = vld [vmem:[#allocation7 + $0x58] sm:$0xff]
        %v709 = vld [vmem:[#allocation7 + $0x60] sm:$0xff]
        %v710 = vld [vmem:[#allocation7 + $0x68] sm:$0xff]
        %v711 = vld [vmem:[#allocation7 + $0x70] sm:$0xff]
        %v712 = vld [vmem:[#allocation7 + $0x78] sm:$0xff]
        %s713 = scalar_lea.vmem [#allocation7], 128
        %v714 = vld [vmem:[%s713] sm:$0xff]
        %v715 = vld [vmem:[%s713 + $0x8] sm:$0xff]
        %v716 = vld [vmem:[%s713 + $0x10] sm:$0xff]
        %v717 = vld [vmem:[%s713 + $0x18] sm:$0xff]
        %v718 = vld [vmem:[%s713 + $0x20] sm:$0xff]
        %v719 = vld [vmem:[%s713 + $0x28] sm:$0xff]
        %v720 = vld [vmem:[%s713 + $0x30] sm:$0xff]
        %v721 = vld [vmem:[%s713 + $0x38] sm:$0xff]
        %v722 = vld [vmem:[%s713 + $0x40] sm:$0xff]
        %v723 = vld [vmem:[%s713 + $0x48] sm:$0xff]
        %v724 = vld [vmem:[%s713 + $0x50] sm:$0xff]
        %v725 = vld [vmem:[%s713 + $0x58] sm:$0xff]
        %v726 = vld [vmem:[%s713 + $0x60] sm:$0xff]
        %v727 = vld [vmem:[%s713 + $0x68] sm:$0xff]
        %v728 = vld [vmem:[%s713 + $0x70] sm:$0xff]
        %v729 = vld [vmem:[%s713 + $0x78] sm:$0xff]
        %730 = vmatpush.msra.mxu0 %v729
        %731 = vmatpush.msra.mxu0 %v728
        %732 = vmatpush.msra.mxu0 %v727
        %733 = vmatpush.msra.mxu0 %v726
        %734 = vmatpush.msra.mxu0 %v725
        %735 = vmatpush.msra.mxu0 %v724
        %736 = vmatpush.msra.mxu0 %v723
        %737 = vmatpush.msra.mxu0 %v722
        %738 = vmatpush.msra.mxu0 %v721
        %739 = vmatpush.msra.mxu0 %v720
        %740 = vmatpush.msra.mxu0 %v719
        %741 = vmatpush.msra.mxu0 %v718
        %742 = vmatpush.msra.mxu0 %v717
        %743 = vmatpush.msra.mxu0 %v716
        %744 = vmatpush.msra.mxu0 %v715
        %745 = vmatpush.msra.mxu0 %v714
        %746 = vmatmul.f32.gmra.mxu0 %v689
        %v747 = vpop.f32.mrf.mxu0
        %v748 = vadd.f32 0.0, %v747
        %749 = vmatmul.f32.gmra.mxu0 %v690
        %v750 = vpop.f32.mrf.mxu0
        %v751 = vadd.f32 0.0, %v750
        %752 = vdwg.mxu0
        %753 = vmatpush.msra.mxu0 %v712
        %754 = vmatpush.msra.mxu0 %v711
        %755 = vmatpush.msra.mxu0 %v710
        %756 = vmatpush.msra.mxu0 %v709
        %757 = vmatpush.msra.mxu0 %v708
        %758 = vmatpush.msra.mxu0 %v707
        %759 = vmatpush.msra.mxu0 %v706
        %760 = vmatpush.msra.mxu0 %v705
        %761 = vmatpush.msra.mxu0 %v704
        %762 = vmatpush.msra.mxu0 %v703
        %763 = vmatpush.msra.mxu0 %v702
        %764 = vmatpush.msra.mxu0 %v701
        %765 = vmatpush.msra.mxu0 %v700
        %766 = vmatpush.msra.mxu0 %v699
        %767 = vmatpush.msra.mxu0 %v698
        %768 = vmatpush.msra.mxu0 %v697
        %769 = vmatmul.f32.gmra.mxu0 %v695
        %v770 = vpop.f32.mrf.mxu0
        %v771 = vadd.f32 %v748, %v770
        %772 = vmatmul.f32.gmra.mxu0 %v696
        %v773 = vpop.f32.mrf.mxu0
        %v774 = vadd.f32 %v751, %v773
        %775 = vdwg.mxu0
        %v776 = vld [vmem:[%s4] sm:$0x1]
        %v778 = vperm.slane %v776, 0
        %v780 = vadd.f32 %v771, %v778
        %v781 = vadd.f32 %v774, %v778
        %v782 = vmax.f32 %v780, 0.0
        %v783 = vmax.f32 %v781, 0.0
        %v784 = vld [vmem:[#allocation8] sm:$0xff]
        %v785 = vld [vmem:[#allocation8 + $0x8] sm:$0xff]
        %v786 = vld [vmem:[#allocation8 + $0x10] sm:$0xff]
        %v787 = vld [vmem:[#allocation8 + $0x18] sm:$0xff]
        %v788 = vld [vmem:[#allocation8 + $0x20] sm:$0xff]
        %v789 = vld [vmem:[#allocation8 + $0x28] sm:$0xff]
        %v790 = vld [vmem:[#allocation8 + $0x30] sm:$0xff]
        %v791 = vld [vmem:[#allocation8 + $0x38] sm:$0xff]
        %v792 = vld [vmem:[#allocation8 + $0x40] sm:$0xff]
        %v793 = vld [vmem:[#allocation8 + $0x48] sm:$0xff]
        %v794 = vld [vmem:[#allocation8 + $0x50] sm:$0xff]
        %v795 = vld [vmem:[#allocation8 + $0x58] sm:$0xff]
        %v796 = vld [vmem:[#allocation8 + $0x60] sm:$0xff]
        %v797 = vld [vmem:[#allocation8 + $0x68] sm:$0xff]
        %v798 = vld [vmem:[#allocation8 + $0x70] sm:$0xff]
        %v799 = vld [vmem:[#allocation8 + $0x78] sm:$0xff]
        %v800 = vld [vmem:[%s6] sm:$0x1]
        %v802 = vperm.slane %v800, 0
        %804 = vmatpush.msra.mxu0 %v799
        %805 = vmatpush.msra.mxu0 %v798
        %806 = vmatpush.msra.mxu0 %v797
        %807 = vmatpush.msra.mxu0 %v796
        %808 = vmatpush.msra.mxu0 %v795
        %809 = vmatpush.msra.mxu0 %v794
        %810 = vmatpush.msra.mxu0 %v793
        %811 = vmatpush.msra.mxu0 %v792
        %812 = vmatpush.msra.mxu0 %v791
        %813 = vmatpush.msra.mxu0 %v790
        %814 = vmatpush.msra.mxu0 %v789
        %815 = vmatpush.msra.mxu0 %v788
        %816 = vmatpush.msra.mxu0 %v787
        %817 = vmatpush.msra.mxu0 %v786
        %818 = vmatpush.msra.mxu0 %v785
        %819 = vmatpush.msra.mxu0 %v784
        %820 = vmatmul.f32.gmra.mxu0 %v589
        %v821 = vpop.f32.mrf.mxu0
        %v822 = vadd.f32 %v802, %v821
        %823 = vmatmul.f32.gmra.mxu0 %v590
        %v824 = vpop.f32.mrf.mxu0
        %v825 = vadd.f32 %v802, %v824
        %826 = vdwg.mxu0
        %v827 = vadd.f32 %v782, %v822
        %v828 = vadd.f32 %v783, %v825
        %v829 = vmax.f32 %v827, 0.0
        %v830 = vmax.f32 %v828, 0.0
        %v831 = vrot.slane %v829, 6
        %v832 = vrot.slane %v830, 6
        %vm833 = vcmp.lt.s32.totalorder %v563, 2
        %v834 = vsel %vm833, %v831, %v832
        %v835 = vsel %vm833, %v832, %v831
        %vm836 = vcmp.ge.s32.totalorder %v587, 2
        %vm837 = vcmp.ge.s32.totalorder %v588, 2
        %v838 = vsel %vm836, 1, 0
        %v839 = vsel %vm837, 1, 0
        %vm840 = vcmp.eq.s32.totalorder %v838, 1
        %vm841 = vcmp.eq.s32.totalorder %v839, 1
        %v842 = vsel %vm840, %v835, 0.0
        %v843 = vsel %vm841, %v834, 0.0
        %v844 = vld [vmem:[#allocation10] sm:$0xff]
        %v845 = vld [vmem:[#allocation10 + $0x8] sm:$0xff]
        %v846 = vld [vmem:[#allocation10 + $0x10] sm:$0xff]
        %v847 = vld [vmem:[#allocation10 + $0x18] sm:$0xff]
        %v848 = vld [vmem:[#allocation10 + $0x20] sm:$0xff]
        %v849 = vld [vmem:[#allocation10 + $0x28] sm:$0xff]
        %v850 = vld [vmem:[#allocation10 + $0x30] sm:$0xff]
        %v851 = vld [vmem:[#allocation10 + $0x38] sm:$0xff]
        %v852 = vld [vmem:[#allocation10 + $0x40] sm:$0xff]
        %v853 = vld [vmem:[#allocation10 + $0x48] sm:$0xff]
        %v854 = vld [vmem:[#allocation10 + $0x50] sm:$0xff]
        %v855 = vld [vmem:[#allocation10 + $0x58] sm:$0xff]
        %v856 = vld [vmem:[#allocation10 + $0x60] sm:$0xff]
        %v857 = vld [vmem:[#allocation10 + $0x68] sm:$0xff]
        %v858 = vld [vmem:[#allocation10 + $0x70] sm:$0xff]
        %v859 = vld [vmem:[#allocation10 + $0x78] sm:$0xff]
        %s860 = scalar_lea.vmem [#allocation10], 128
        %v861 = vld [vmem:[%s860] sm:$0xff]
        %v862 = vld [vmem:[%s860 + $0x8] sm:$0xff]
        %v863 = vld [vmem:[%s860 + $0x10] sm:$0xff]
        %v864 = vld [vmem:[%s860 + $0x18] sm:$0xff]
        %v865 = vld [vmem:[%s860 + $0x20] sm:$0xff]
        %v866 = vld [vmem:[%s860 + $0x28] sm:$0xff]
        %v867 = vld [vmem:[%s860 + $0x30] sm:$0xff]
        %v868 = vld [vmem:[%s860 + $0x38] sm:$0xff]
        %v869 = vld [vmem:[%s860 + $0x40] sm:$0xff]
        %v870 = vld [vmem:[%s860 + $0x48] sm:$0xff]
        %v871 = vld [vmem:[%s860 + $0x50] sm:$0xff]
        %v872 = vld [vmem:[%s860 + $0x58] sm:$0xff]
        %v873 = vld [vmem:[%s860 + $0x60] sm:$0xff]
        %v874 = vld [vmem:[%s860 + $0x68] sm:$0xff]
        %v875 = vld [vmem:[%s860 + $0x70] sm:$0xff]
        %v876 = vld [vmem:[%s860 + $0x78] sm:$0xff]
        %877 = vmatpush.msra.mxu0 %v876
        %878 = vmatpush.msra.mxu0 %v875
        %879 = vmatpush.msra.mxu0 %v874
        %880 = vmatpush.msra.mxu0 %v873
        %881 = vmatpush.msra.mxu0 %v872
        %882 = vmatpush.msra.mxu0 %v871
        %883 = vmatpush.msra.mxu0 %v870
        %884 = vmatpush.msra.mxu0 %v869
        %885 = vmatpush.msra.mxu0 %v868
        %886 = vmatpush.msra.mxu0 %v867
        %887 = vmatpush.msra.mxu0 %v866
        %888 = vmatpush.msra.mxu0 %v865
        %889 = vmatpush.msra.mxu0 %v864
        %890 = vmatpush.msra.mxu0 %v863
        %891 = vmatpush.msra.mxu0 %v862
        %892 = vmatpush.msra.mxu0 %v861
        %893 = vmatmul.f32.gmra.mxu0 %v829
        %v894 = vpop.f32.mrf.mxu0
        %v895 = vadd.f32 0.0, %v894
        %896 = vmatmul.f32.gmra.mxu0 %v830
        %v897 = vpop.f32.mrf.mxu0
        %v898 = vadd.f32 0.0, %v897
        %899 = vdwg.mxu0
        %900 = vmatpush.msra.mxu0 %v859
        %901 = vmatpush.msra.mxu0 %v858
        %902 = vmatpush.msra.mxu0 %v857
        %903 = vmatpush.msra.mxu0 %v856
        %904 = vmatpush.msra.mxu0 %v855
        %905 = vmatpush.msra.mxu0 %v854
        %906 = vmatpush.msra.mxu0 %v853
        %907 = vmatpush.msra.mxu0 %v852
        %908 = vmatpush.msra.mxu0 %v851
        %909 = vmatpush.msra.mxu0 %v850
        %910 = vmatpush.msra.mxu0 %v849
        %911 = vmatpush.msra.mxu0 %v848
        %912 = vmatpush.msra.mxu0 %v847
        %913 = vmatpush.msra.mxu0 %v846
        %914 = vmatpush.msra.mxu0 %v845
        %915 = vmatpush.msra.mxu0 %v844
        %916 = vmatmul.f32.gmra.mxu0 %v842
        %v917 = vpop.f32.mrf.mxu0
        %v918 = vadd.f32 %v895, %v917
        %919 = vmatmul.f32.gmra.mxu0 %v843
        %v920 = vpop.f32.mrf.mxu0
        %v921 = vadd.f32 %v898, %v920
        %922 = vdwg.mxu0
        %v923 = vld [vmem:[%s8] sm:$0x1]
        %v925 = vperm.slane %v923, 0
        %v927 = vadd.f32 %v918, %v925
        %v928 = vadd.f32 %v921, %v925
        %v929 = vmax.f32 %v927, 0.0
        %v930 = vmax.f32 %v928, 0.0
        %v931 = vrot.slane %v929, 6
        %v932 = vrot.slane %v930, 6
        %v933 = vsel %vm833, %v931, %v932
        %v934 = vsel %vm833, %v932, %v931
        %v935 = vsel %vm840, %v934, 0.0
        %v936 = vsel %vm841, %v933, 0.0
        %v937 = vld [vmem:[#allocation11] sm:$0xff]
        %v938 = vld [vmem:[#allocation11 + $0x8] sm:$0xff]
        %v939 = vld [vmem:[#allocation11 + $0x10] sm:$0xff]
        %v940 = vld [vmem:[#allocation11 + $0x18] sm:$0xff]
        %v941 = vld [vmem:[#allocation11 + $0x20] sm:$0xff]
        %v942 = vld [vmem:[#allocation11 + $0x28] sm:$0xff]
        %v943 = vld [vmem:[#allocation11 + $0x30] sm:$0xff]
        %v944 = vld [vmem:[#allocation11 + $0x38] sm:$0xff]
        %v945 = vld [vmem:[#allocation11 + $0x40] sm:$0xff]
        %v946 = vld [vmem:[#allocation11 + $0x48] sm:$0xff]
        %v947 = vld [vmem:[#allocation11 + $0x50] sm:$0xff]
        %v948 = vld [vmem:[#allocation11 + $0x58] sm:$0xff]
        %v949 = vld [vmem:[#allocation11 + $0x60] sm:$0xff]
        %v950 = vld [vmem:[#allocation11 + $0x68] sm:$0xff]
        %v951 = vld [vmem:[#allocation11 + $0x70] sm:$0xff]
        %v952 = vld [vmem:[#allocation11 + $0x78] sm:$0xff]
        %s953 = scalar_lea.vmem [#allocation11], 128
        %v954 = vld [vmem:[%s953] sm:$0xff]
        %v955 = vld [vmem:[%s953 + $0x8] sm:$0xff]
        %v956 = vld [vmem:[%s953 + $0x10] sm:$0xff]
        %v957 = vld [vmem:[%s953 + $0x18] sm:$0xff]
        %v958 = vld [vmem:[%s953 + $0x20] sm:$0xff]
        %v959 = vld [vmem:[%s953 + $0x28] sm:$0xff]
        %v960 = vld [vmem:[%s953 + $0x30] sm:$0xff]
        %v961 = vld [vmem:[%s953 + $0x38] sm:$0xff]
        %v962 = vld [vmem:[%s953 + $0x40] sm:$0xff]
        %v963 = vld [vmem:[%s953 + $0x48] sm:$0xff]
        %v964 = vld [vmem:[%s953 + $0x50] sm:$0xff]
        %v965 = vld [vmem:[%s953 + $0x58] sm:$0xff]
        %v966 = vld [vmem:[%s953 + $0x60] sm:$0xff]
        %v967 = vld [vmem:[%s953 + $0x68] sm:$0xff]
        %v968 = vld [vmem:[%s953 + $0x70] sm:$0xff]
        %v969 = vld [vmem:[%s953 + $0x78] sm:$0xff]
        %970 = vmatpush.msra.mxu0 %v969
        %971 = vmatpush.msra.mxu0 %v968
        %972 = vmatpush.msra.mxu0 %v967
        %973 = vmatpush.msra.mxu0 %v966
        %974 = vmatpush.msra.mxu0 %v965
        %975 = vmatpush.msra.mxu0 %v964
        %976 = vmatpush.msra.mxu0 %v963
        %977 = vmatpush.msra.mxu0 %v962
        %978 = vmatpush.msra.mxu0 %v961
        %979 = vmatpush.msra.mxu0 %v960
        %980 = vmatpush.msra.mxu0 %v959
        %981 = vmatpush.msra.mxu0 %v958
        %982 = vmatpush.msra.mxu0 %v957
        %983 = vmatpush.msra.mxu0 %v956
        %984 = vmatpush.msra.mxu0 %v955
        %985 = vmatpush.msra.mxu0 %v954
        %986 = vmatmul.f32.gmra.mxu0 %v929
        %v987 = vpop.f32.mrf.mxu0
        %v988 = vadd.f32 0.0, %v987
        %989 = vmatmul.f32.gmra.mxu0 %v930
        %v990 = vpop.f32.mrf.mxu0
        %v991 = vadd.f32 0.0, %v990
        %992 = vdwg.mxu0
        %993 = vmatpush.msra.mxu0 %v952
        %994 = vmatpush.msra.mxu0 %v951
        %995 = vmatpush.msra.mxu0 %v950
        %996 = vmatpush.msra.mxu0 %v949
        %997 = vmatpush.msra.mxu0 %v948
        %998 = vmatpush.msra.mxu0 %v947
        %999 = vmatpush.msra.mxu0 %v946
        %1000 = vmatpush.msra.mxu0 %v945
        %1001 = vmatpush.msra.mxu0 %v944
        %1002 = vmatpush.msra.mxu0 %v943
        %1003 = vmatpush.msra.mxu0 %v942
        %1004 = vmatpush.msra.mxu0 %v941
        %1005 = vmatpush.msra.mxu0 %v940
        %1006 = vmatpush.msra.mxu0 %v939
        %1007 = vmatpush.msra.mxu0 %v938
        %1008 = vmatpush.msra.mxu0 %v937
        %1009 = vmatmul.f32.gmra.mxu0 %v935
        %v1010 = vpop.f32.mrf.mxu0
        %v1011 = vadd.f32 %v988, %v1010
        %1012 = vmatmul.f32.gmra.mxu0 %v936
        %v1013 = vpop.f32.mrf.mxu0
        %v1014 = vadd.f32 %v991, %v1013
        %1015 = vdwg.mxu0
        %v1016 = vld [vmem:[%s10] sm:$0x1]
        %v1018 = vperm.slane %v1016, 0
        %v1020 = vadd.f32 %v1011, %v1018
        %v1021 = vadd.f32 %v1014, %v1018
        %v1022 = vmax.f32 %v1020, 0.0
        %v1023 = vmax.f32 %v1021, 0.0
        %v1024 = vadd.f32 %v1022, %v829
        %v1025 = vadd.f32 %v1023, %v830
        %v1026 = vmax.f32 %v1024, 0.0
        %v1027 = vmax.f32 %v1025, 0.0
        %v1028 = vld [vmem:[#allocation13] sm:$0xff]
        %v1029 = vld [vmem:[#allocation13 + $0x8] sm:$0xff]
        %v1030 = vld [vmem:[#allocation13 + $0x10] sm:$0xff]
        %v1031 = vld [vmem:[#allocation13 + $0x18] sm:$0xff]
        %v1032 = vld [vmem:[#allocation13 + $0x20] sm:$0xff]
        %v1033 = vld [vmem:[#allocation13 + $0x28] sm:$0xff]
        %v1034 = vld [vmem:[#allocation13 + $0x30] sm:$0xff]
        %v1035 = vld [vmem:[#allocation13 + $0x38] sm:$0xff]
        %v1036 = vld [vmem:[#allocation13 + $0x40] sm:$0xff]
        %v1037 = vld [vmem:[#allocation13 + $0x48] sm:$0xff]
        %v1038 = vld [vmem:[#allocation13 + $0x50] sm:$0xff]
        %v1039 = vld [vmem:[#allocation13 + $0x58] sm:$0xff]
        %v1040 = vld [vmem:[#allocation13 + $0x60] sm:$0xff]
        %v1041 = vld [vmem:[#allocation13 + $0x68] sm:$0xff]
        %v1042 = vld [vmem:[#allocation13 + $0x70] sm:$0xff]
        %v1043 = vld [vmem:[#allocation13 + $0x78] sm:$0xff]
        %v1044 = vld [vmem:[%s12] sm:$0x1]
        %v1046 = vperm.slane %v1044, 0
        %1048 = vmatpush.msra.mxu0 %v1043
        %1049 = vmatpush.msra.mxu0 %v1042
        %1050 = vmatpush.msra.mxu0 %v1041
        %1051 = vmatpush.msra.mxu0 %v1040
        %1052 = vmatpush.msra.mxu0 %v1039
        %1053 = vmatpush.msra.mxu0 %v1038
        %1054 = vmatpush.msra.mxu0 %v1037
        %1055 = vmatpush.msra.mxu0 %v1036
        %1056 = vmatpush.msra.mxu0 %v1035
        %1057 = vmatpush.msra.mxu0 %v1034
        %1058 = vmatpush.msra.mxu0 %v1033
        %1059 = vmatpush.msra.mxu0 %v1032
        %1060 = vmatpush.msra.mxu0 %v1031
        %1061 = vmatpush.msra.mxu0 %v1030
        %1062 = vmatpush.msra.mxu0 %v1029
        %1063 = vmatpush.msra.mxu0 %v1028
        %1064 = vmatmul.f32.gmra.mxu0 %v1026
        %v1065 = vpop.f32.mrf.mxu0
        %v1066 = vadd.f32 %v1046, %v1065
        %1067 = vmatmul.f32.gmra.mxu0 %v1027
        %v1068 = vpop.f32.mrf.mxu0
        %v1069 = vadd.f32 %v1046, %v1068
        %1070 = vdwg.mxu0
        %1071 = vst [vmem:[%s559] sm:$0xff] %v1066
        %1072 = vst [vmem:[%s559 + $0x8] sm:$0xff] %v1069
        %s1073 = sand.u32 %s319, 1
        %s1074 = scalar_lea.sflag [#allocation4], %s1073
        %s1075 = sand.u32 %s319, 1
        %s1076 = smul.addr %s1075, 16
        %s1077 = scalar_lea.vmem [#allocation14], %s1076
        // Predicated region
        $region101: #{tpu_custom_call.1} parent=71 // pred_check
          %p1078 = pneg %p329
        $region102: #{tpu_custom_call.1} parent=71 // pred_check_branch
          %1080 = sbr.rel (%p1078) target = $region104
        $region103: #{tpu_custom_call.1} parent=71 // pred_region
          %s1081 = smul.u32 2, %s33
          %1083 = vsyncadd %s1074, 0
          %s1084 = smul.addr %s1081, 8
          %s1085 = scalar_lea.hbm %s13, %s1084
          %s1086 = sshll.u32 %s1077, 4
          %s1087 = int_to_ptr.vmem [resolvable:$true] %s1086
          %s1088 = sshll.u32 %s1085, 4
          %s1089 = int_to_ptr.hbm [resolvable:$true] %s1088
          %1094 = dma.vmem_to_hbm [thread:$0]  %s1087, 256, %s1089, %s1074, 128, 128, 8
        $region104: #{tpu_custom_call.1} parent=71 // pred_fallthru
          _
      $region72: #{tpu_custom_call.1} parent=5 // pred_fallthru
        _
      %p1095 = scmp.le.s32.totalorder 2, %s28
      // Predicated region
      $region105: #{tpu_custom_call.1} parent=5 // pred_check
        %p1096 = pneg %p1095
      $region106: #{tpu_custom_call.1} parent=5 // pred_check_branch
        %1098 = sbr.rel (%p1096) target = $region108
      $region107: #{tpu_custom_call.1} parent=5 // pred_region
        %s1099 = ssub.s32 %s28, 2
        // Predicated region
        $region109: #{tpu_custom_call.1} parent=107 // pred_check
          %p1100 = pneg %p335
        $region110: #{tpu_custom_call.1} parent=107 // pred_check_branch
          %1102 = sbr.rel (%p1100) target = $region112
        $region111: #{tpu_custom_call.1} parent=107 // pred_region
          %s1103 = sand.u32 %s320, 1
          %s1104 = scalar_lea.sflag [#allocation4], %s1103
          %s1105 = sand.u32 %s320, 1
          %s1106 = smul.addr %s1105, 16
          %s1107 = scalar_lea.vmem [#allocation14], %s1106
          %1109 = dma.done %s1104, 256
        $region112: #{tpu_custom_call.1} parent=107 // pred_fallthru
          _
      $region108: #{tpu_custom_call.1} parent=5 // pred_fallthru
        _
    $region6: #{tpu_custom_call.1} parent=1 // loop_footer
      %s32 = sadd.s32 1, %s28
    $region7: #{tpu_custom_call.1} parent=1 // loop_footer_branch
      %27 = sbr.rel target = $region3
    $region8: #{tpu_custom_call.1} parent=1 // loop_exit
      _
    %1110 = vsyncpa [#allocation3], 1
    %s1111 = scalar_lea.sflag [#allocation3], 1
    %1112 = vsyncpa %s1111, 1
    %1113 = vsyncpa [#allocation6], 1
    %1114 = vsyncpa [#allocation9], 1
    %1115 = vsyncpa [#allocation12], 1
    %1116 = vsyncpa [#allocation4], 1
    %s1117 = scalar_lea.sflag [#allocation4], 1
    %1118 = vsyncpa %s1117, 1

// kernel: tpu_custom_call.1
$region0: #{tpu_custom_call.1}
  #allocation0 [shape = 'u32[]', space=smem, size = 0x4, offset = 0x4, fixed_abs, tag = 'smem constant byte address 0x4 - core index']
  #allocation1 [shape = 'u32[72,128]{1,0:T(1,128)}', space=vmem, size = 0x9000, scoped, tag = 'internal scratch']
  %s0 = inlined_call_operand.hbm [shape: f32[32,128], index: 0, kind: input, shape index: {}]
  %s1 = inlined_call_operand.hbm [shape: f32[2,128,128], index: 1, kind: input, shape index: {}]
  %s2 = inlined_call_operand.vmem [shape: f32[1,128], index: 2, kind: input, shape index: {}]
  %s3 = inlined_call_operand.hbm [shape: f32[2,128,128], index: 3, kind: input, shape index: {}]
  %s4 = inlined_call_operand.vmem [shape: f32[1,128], index: 4, kind: input, shape index: {}]
  %s5 = inlined_call_operand.hbm [shape: f32[128,128], index: 5, kind: input, shape index: {}]
  %s6 = inlined_call_operand.vmem [shape: f32[1,128], index: 6, kind: input, shape index: {}]
  %s7 = inlined_call_operand.hbm [shape: f32[2,128,128], index: 7, kind: input, shape index: {}]
  %s8 = inlined_call_operand.vmem [shape: f32[1,128], index: 8, kind: input, shape index: {}]
  %s9 = inlined_call_operand.hbm [shape: f32[2,128,128], index: 9, kind: input, shape index: {}]
  %s10 = inlined_call_operand.vmem [shape: f32[1,128], index: 10, kind: input, shape index: {}]
  %s11 = inlined_call_operand.hbm [shape: f32[128,128], index: 11, kind: input, shape index: {}]
  %s12 = inlined_call_operand.vmem [shape: f32[1,128], index: 12, kind: input, shape index: {}]
  %s13 = inlined_call_operand.hbm [shape: f32[32,128], index: 13, kind: output, shape index: {}]
  %s14 = sld [smem:[#allocation0]]
  $region113: #{tpu_custom_call.1} parent=0
    _
  %s16 = ssub.s32 1, %s14
  %s17 = scalar_select 0, %s16, %s14
  $region1: #{tpu_custom_call.1} parent=0
    #allocation2 [shape = 'u8[16384]{0}', space=vmem, size = 0x4000, scoped, tag = 'input window, operand 0']
    #allocation3 [shape = 's32[2]{0}', space=sflag, size = 0x8, scoped, tag = 'scoped memory for tpu_custom_call.1']
    #allocation4 [shape = 's32[2]{0}', space=sflag, size = 0x8, scoped, tag = 'scoped memory for tpu_custom_call.1']
    #allocation5 [shape = 'u8[131072]{0}', space=vmem, size = 0x20000, scoped, tag = 'input window, operand 1, single buffered']
    #allocation6 [shape = 's32[1]{0}', space=sflag, size = 0x4, scoped, tag = 'scoped memory for tpu_custom_call.1']
    #allocation7 [shape = 'u8[131072]{0}', space=vmem, size = 0x20000, scoped, tag = 'input window, operand 3, single buffered']
    #allocation8 [shape = 'u8[65536]{0}', space=vmem, size = 0x10000, scoped, tag = 'input window, operand 5, single buffered']
    #allocation9 [shape = 's32[1]{0}', space=sflag, size = 0x4, scoped, tag = 'scoped memory for tpu_custom_call.1']
    #allocation10 [shape = 'u8[131072]{0}', space=vmem, size = 0x20000, scoped, tag = 'input window, operand 7, single buffered']
    #allocation11 [shape = 'u8[131072]{0}', space=vmem, size = 0x20000, scoped, tag = 'input window, operand 9, single buffered']
    #allocation12 [shape = 's32[1]{0}', space=sflag, size = 0x4, scoped, tag = 'scoped memory for tpu_custom_call.1']
    #allocation13 [shape = 'u8[65536]{0}', space=vmem, size = 0x10000, scoped, tag = 'input window, operand 11, single buffered']
    #allocation14 [shape = 'u8[16384]{0}', space=vmem, size = 0x4000, scoped, tag = 'output window, operand 0']
    %18 = vsyncpa [#allocation3], 0
    %s19 = scalar_lea.sflag [#allocation3], 1
    %20 = vsyncpa %s19, 0
    %21 = vsyncpa [#allocation6], 0
    %22 = vsyncpa [#allocation9], 0
    %23 = vsyncpa [#allocation12], 0
    %24 = vsyncpa [#allocation4], 0
    %s25 = scalar_lea.sflag [#allocation4], 1
    %26 = vsyncpa %s25, 0
    loop: start=0, step=1, limit=4
    $region2: #{tpu_custom_call.1} parent=1 // loop_pre_header
      _
    $region3: #{tpu_custom_call.1} parent=1 // loop_header
      %s28 = sphi 0, %s32
      %p29 = scmp.ge.s32.totalorder %s28, 4
      %s38 = sphi 0, %s40
      %s41 = sphi 0, %s38
      %s42 = sphi 0, %s41
      %s58 = sphi 0, %s42
      %s62 = sphi 0, %s62
      %s64 = sphi 0, %s62
      %s65 = sphi 0, %s64
      %s79 = sphi 0, %s65
      %s83 = sphi 0, %s83
      %s85 = sphi 0, %s83
      %s86 = sphi 0, %s85
      %s100 = sphi 0, %s86
      %s104 = sphi 0, %s104
      %s106 = sphi 0, %s104
      %s107 = sphi 0, %s106
      %s121 = sphi 0, %s107
      %s125 = sphi 0, %s125
      %s127 = sphi 0, %s125
      %s128 = sphi 0, %s127
      %s142 = sphi 0, %s128
      %s146 = sphi 0, %s146
      %s148 = sphi 0, %s146
      %s149 = sphi 0, %s148
      %s163 = sphi 0, %s149
      %s167 = sphi 0, %s167
      %s169 = sphi 0, %s167
      %s170 = sphi 0, %s169
      %s184 = sphi 0, %s170
      %s188 = sphi 0, %s188
      %s190 = sphi 0, %s188
      %s191 = sphi 0, %s190
      %s205 = sphi 0, %s191
      %s209 = sphi 0, %s209
      %s211 = sphi 0, %s209
      %s212 = sphi 0, %s211
      %s226 = sphi 0, %s212
      %s230 = sphi 0, %s230
      %s232 = sphi 0, %s230
      %s233 = sphi 0, %s232
      %s247 = sphi 0, %s233
      %s251 = sphi 0, %s251
      %s253 = sphi 0, %s251
      %s254 = sphi 0, %s253
      %s268 = sphi 0, %s254
      %s272 = sphi 0, %s272
      %s274 = sphi 0, %s272
      %s275 = sphi 0, %s274
      %s289 = sphi 0, %s275
      %s293 = sphi 0, %s293
      %s295 = sphi 0, %s293
      %s296 = sphi 0, %s295
      %s310 = sphi 0, %s296
      %s316 = sphi 0, %s318
      %s319 = sphi 0, %s316
      %s320 = sphi 0, %s319
      %s336 = sphi 0, %s320
    $region4: #{tpu_custom_call.1} parent=1 // loop_header_branch
      %31 = sbr.rel (%p29) target = $region8
    $region5: #{tpu_custom_call.1} parent=1 // loop_body
      %s33 = ssub.s32 %s28, 1
      %s34 = ssub.s32 %s28, 2
      %s35 = sadd.s32 %s28, 1
      %s36 = ssub.s32 %s28, %s35
      %p37 = scmp.eq.s32.totalorder %s36, 0
      %s39 = sadd.s32 %s38, 1
      %s40 = scalar_select %p37, %s38, %s39
      %p43 = pneg %p37
      %p44 = scmp.eq.s32.totalorder %s28, 1
      %p45 = por %p43, %p44
      %p46 = scmp.ne.s32.totalorder %s38, %s41
      %p47 = scmp.eq.s32.totalorder %s28, 0
      %p48 = por %p46, %p47
      %p49 = scmp.ne.s32.totalorder %s38, %s41
      %p50 = scmp.eq.s32.totalorder %s33, 1
      %p51 = por %p49, %p50
      %p52 = scmp.ne.s32.totalorder %s41, %s42
      %p53 = scmp.eq.s32.totalorder %s33, 0
      %p54 = por %p52, %p53
      %p55 = scmp.ne.s32.totalorder %s41, %s42
      %p56 = scmp.eq.s32.totalorder %s34, 1
      %p57 = por %p55, %p56
      %p59 = scmp.ne.s32.totalorder %s42, %s58
      %p60 = scmp.eq.s32.totalorder %s34, 0
      %p61 = por %p59, %p60
      %s63 = sadd.s32 %s62, 1
      %p66 = scmp.eq.s32.totalorder %s28, 1
      %p67 = scmp.ne.s32.totalorder %s62, %s64
      %p68 = scmp.eq.s32.totalorder %s28, 0
      %p69 = por %p67, %p68
      %p70 = scmp.ne.s32.totalorder %s62, %s64
      %p71 = scmp.eq.s32.totalorder %s33, 1
      %p72 = por %p70, %p71
      %p73 = scmp.ne.s32.totalorder %s64, %s65
      %p74 = scmp.eq.s32.totalorder %s33, 0
      %p75 = por %p73, %p74
      %p76 = scmp.ne.s32.totalorder %s64, %s65
      %p77 = scmp.eq.s32.totalorder %s34, 1
      %p78 = por %p76, %p77
      %p80 = scmp.ne.s32.totalorder %s65, %s79
      %p81 = scmp.eq.s32.totalorder %s34, 0
      %p82 = por %p80, %p81
      %s84 = sadd.s32 %s83, 1
      %p87 = scmp.eq.s32.totalorder %s28, 1
      %p88 = scmp.ne.s32.totalorder %s83, %s85
      %p89 = scmp.eq.s32.totalorder %s28, 0
      %p90 = por %p88, %p89
      %p91 = scmp.ne.s32.totalorder %s83, %s85
      %p92 = scmp.eq.s32.totalorder %s33, 1
      %p93 = por %p91, %p92
      %p94 = scmp.ne.s32.totalorder %s85, %s86
      %p95 = scmp.eq.s32.totalorder %s33, 0
      %p96 = por %p94, %p95
      %p97 = scmp.ne.s32.totalorder %s85, %s86
      %p98 = scmp.eq.s32.totalorder %s34, 1
      %p99 = por %p97, %p98
      %p101 = scmp.ne.s32.totalorder %s86, %s100
      %p102 = scmp.eq.s32.totalorder %s34, 0
      %p103 = por %p101, %p102
      %s105 = sadd.s32 %s104, 1
      %p108 = scmp.eq.s32.totalorder %s28, 1
      %p109 = scmp.ne.s32.totalorder %s104, %s106
      %p110 = scmp.eq.s32.totalorder %s28, 0
      %p111 = por %p109, %p110
      %p112 = scmp.ne.s32.totalorder %s104, %s106
      %p113 = scmp.eq.s32.totalorder %s33, 1
      %p114 = por %p112, %p113
      %p115 = scmp.ne.s32.totalorder %s106, %s107
      %p116 = scmp.eq.s32.totalorder %s33, 0
      %p117 = por %p115, %p116
      %p118 = scmp.ne.s32.totalorder %s106, %s107
      %p119 = scmp.eq.s32.totalorder %s34, 1
      %p120 = por %p118, %p119
      %p122 = scmp.ne.s32.totalorder %s107, %s121
      %p123 = scmp.eq.s32.totalorder %s34, 0
      %p124 = por %p122, %p123
      %s126 = sadd.s32 %s125, 1
      %p129 = scmp.eq.s32.totalorder %s28, 1
      %p130 = scmp.ne.s32.totalorder %s125, %s127
      %p131 = scmp.eq.s32.totalorder %s28, 0
      %p132 = por %p130, %p131
      %p133 = scmp.ne.s32.totalorder %s125, %s127
      %p134 = scmp.eq.s32.totalorder %s33, 1
      %p135 = por %p133, %p134
      %p136 = scmp.ne.s32.totalorder %s127, %s128
      %p137 = scmp.eq.s32.totalorder %s33, 0
      %p138 = por %p136, %p137
      %p139 = scmp.ne.s32.totalorder %s127, %s128
      %p140 = scmp.eq.s32.totalorder %s34, 1
      %p141 = por %p139, %p140
      %p143 = scmp.ne.s32.totalorder %s128, %s142
      %p144 = scmp.eq.s32.totalorder %s34, 0
      %p145 = por %p143, %p144
      %s147 = sadd.s32 %s146, 1
      %p150 = scmp.eq.s32.totalorder %s28, 1
      %p151 = scmp.ne.s32.totalorder %s146, %s148
      %p152 = scmp.eq.s32.totalorder %s28, 0
      %p153 = por %p151, %p152
      %p154 = scmp.ne.s32.totalorder %s146, %s148
      %p155 = scmp.eq.s32.totalorder %s33, 1
      %p156 = por %p154, %p155
      %p157 = scmp.ne.s32.totalorder %s148, %s149
      %p158 = scmp.eq.s32.totalorder %s33, 0
      %p159 = por %p157, %p158
      %p160 = scmp.ne.s32.totalorder %s148, %s149
      %p161 = scmp.eq.s32.totalorder %s34, 1
      %p162 = por %p160, %p161
      %p164 = scmp.ne.s32.totalorder %s149, %s163
      %p165 = scmp.eq.s32.totalorder %s34, 0
      %p166 = por %p164, %p165
      %s168 = sadd.s32 %s167, 1
      %p171 = scmp.eq.s32.totalorder %s28, 1
      %p172 = scmp.ne.s32.totalorder %s167, %s169
      %p173 = scmp.eq.s32.totalorder %s28, 0
      %p174 = por %p172, %p173
      %p175 = scmp.ne.s32.totalorder %s167, %s169
      %p176 = scmp.eq.s32.totalorder %s33, 1
      %p177 = por %p175, %p176
      %p178 = scmp.ne.s32.totalorder %s169, %s170
      %p179 = scmp.eq.s32.totalorder %s33, 0
      %p180 = por %p178, %p179
      %p181 = scmp.ne.s32.totalorder %s169, %s170
      %p182 = scmp.eq.s32.totalorder %s34, 1
      %p183 = por %p181, %p182
      %p185 = scmp.ne.s32.totalorder %s170, %s184
      %p186 = scmp.eq.s32.totalorder %s34, 0
      %p187 = por %p185, %p186
      %s189 = sadd.s32 %s188, 1
      %p192 = scmp.eq.s32.totalorder %s28, 1
      %p193 = scmp.ne.s32.totalorder %s188, %s190
      %p194 = scmp.eq.s32.totalorder %s28, 0
      %p195 = por %p193, %p194
      %p196 = scmp.ne.s32.totalorder %s188, %s190
      %p197 = scmp.eq.s32.totalorder %s33, 1
      %p198 = por %p196, %p197
      %p199 = scmp.ne.s32.totalorder %s190, %s191
      %p200 = scmp.eq.s32.totalorder %s33, 0
      %p201 = por %p199, %p200
      %p202 = scmp.ne.s32.totalorder %s190, %s191
      %p203 = scmp.eq.s32.totalorder %s34, 1
      %p204 = por %p202, %p203
      %p206 = scmp.ne.s32.totalorder %s191, %s205
      %p207 = scmp.eq.s32.totalorder %s34, 0
      %p208 = por %p206, %p207
      %s210 = sadd.s32 %s209, 1
      %p213 = scmp.eq.s32.totalorder %s28, 1
      %p214 = scmp.ne.s32.totalorder %s209, %s211
      %p215 = scmp.eq.s32.totalorder %s28, 0
      %p216 = por %p214, %p215
      %p217 = scmp.ne.s32.totalorder %s209, %s211
      %p218 = scmp.eq.s32.totalorder %s33, 1
      %p219 = por %p217, %p218
      %p220 = scmp.ne.s32.totalorder %s211, %s212
      %p221 = scmp.eq.s32.totalorder %s33, 0
      %p222 = por %p220, %p221
      %p223 = scmp.ne.s32.totalorder %s211, %s212
      %p224 = scmp.eq.s32.totalorder %s34, 1
      %p225 = por %p223, %p224
      %p227 = scmp.ne.s32.totalorder %s212, %s226
      %p228 = scmp.eq.s32.totalorder %s34, 0
      %p229 = por %p227, %p228
      %s231 = sadd.s32 %s230, 1
      %p234 = scmp.eq.s32.totalorder %s28, 1
      %p235 = scmp.ne.s32.totalorder %s230, %s232
      %p236 = scmp.eq.s32.totalorder %s28, 0
      %p237 = por %p235, %p236
      %p238 = scmp.ne.s32.totalorder %s230, %s232
      %p239 = scmp.eq.s32.totalorder %s33, 1
      %p240 = por %p238, %p239
      %p241 = scmp.ne.s32.totalorder %s232, %s233
      %p242 = scmp.eq.s32.totalorder %s33, 0
      %p243 = por %p241, %p242
      %p244 = scmp.ne.s32.totalorder %s232, %s233
      %p245 = scmp.eq.s32.totalorder %s34, 1
      %p246 = por %p244, %p245
      %p248 = scmp.ne.s32.totalorder %s233, %s247
      %p249 = scmp.eq.s32.totalorder %s34, 0
      %p250 = por %p248, %p249
      %s252 = sadd.s32 %s251, 1
      %p255 = scmp.eq.s32.totalorder %s28, 1
      %p256 = scmp.ne.s32.totalorder %s251, %s253
      %p257 = scmp.eq.s32.totalorder %s28, 0
      %p258 = por %p256, %p257
      %p259 = scmp.ne.s32.totalorder %s251, %s253
      %p260 = scmp.eq.s32.totalorder %s33, 1
      %p261 = por %p259, %p260
      %p262 = scmp.ne.s32.totalorder %s253, %s254
      %p263 = scmp.eq.s32.totalorder %s33, 0
      %p264 = por %p262, %p263
      %p265 = scmp.ne.s32.totalorder %s253, %s254
      %p266 = scmp.eq.s32.totalorder %s34, 1
      %p267 = por %p265, %p266
      %p269 = scmp.ne.s32.totalorder %s254, %s268
      %p270 = scmp.eq.s32.totalorder %s34, 0
      %p271 = por %p269, %p270
      %s273 = sadd.s32 %s272, 1
      %p276 = scmp.eq.s32.totalorder %s28, 1
      %p277 = scmp.ne.s32.totalorder %s272, %s274
      %p278 = scmp.eq.s32.totalorder %s28, 0
      %p279 = por %p277, %p278
      %p280 = scmp.ne.s32.totalorder %s272, %s274
      %p281 = scmp.eq.s32.totalorder %s33, 1
      %p282 = por %p280, %p281
      %p283 = scmp.ne.s32.totalorder %s274, %s275
      %p284 = scmp.eq.s32.totalorder %s33, 0
      %p285 = por %p283, %p284
      %p286 = scmp.ne.s32.totalorder %s274, %s275
      %p287 = scmp.eq.s32.totalorder %s34, 1
      %p288 = por %p286, %p287
      %p290 = scmp.ne.s32.totalorder %s275, %s289
      %p291 = scmp.eq.s32.totalorder %s34, 0
      %p292 = por %p290, %p291
      %s294 = sadd.s32 %s293, 1
      %p297 = scmp.eq.s32.totalorder %s28, 1
      %p298 = scmp.ne.s32.totalorder %s293, %s295
      %p299 = scmp.eq.s32.totalorder %s28, 0
      %p300 = por %p298, %p299
      %p301 = scmp.ne.s32.totalorder %s293, %s295
      %p302 = scmp.eq.s32.totalorder %s33, 1
      %p303 = por %p301, %p302
      %p304 = scmp.ne.s32.totalorder %s295, %s296
      %p305 = scmp.eq.s32.totalorder %s33, 0
      %p306 = por %p304, %p305
      %p307 = scmp.ne.s32.totalorder %s295, %s296
      %p308 = scmp.eq.s32.totalorder %s34, 1
      %p309 = por %p307, %p308
      %p311 = scmp.ne.s32.totalorder %s296, %s310
      %p312 = scmp.eq.s32.totalorder %s34, 0
      %p313 = por %p311, %p312
      %s314 = ssub.s32 %s28, %s35
      %p315 = scmp.eq.s32.totalorder %s314, 0
      %s317 = sadd.s32 %s316, 1
      %s318 = scalar_select %p315, %s316, %s317
      %p321 = pneg %p315
      %p322 = scmp.eq.s32.totalorder %s28, 1
      %p323 = por %p321, %p322
      %p324 = scmp.ne.s32.totalorder %s316, %s319
      %p325 = scmp.eq.s32.totalorder %s28, 0
      %p326 = por %p324, %p325
      %p327 = scmp.ne.s32.totalorder %s316, %s319
      %p328 = scmp.eq.s32.totalorder %s33, 1
      %p329 = por %p327, %p328
      %p330 = scmp.ne.s32.totalorder %s319, %s320
      %p331 = scmp.eq.s32.totalorder %s33, 0
      %p332 = por %p330, %p331
      %p333 = scmp.ne.s32.totalorder %s319, %s320
      %p334 = scmp.eq.s32.totalorder %s34, 1
      %p335 = por %p333, %p334
      %p337 = scmp.ne.s32.totalorder %s320, %s336
      %p338 = scmp.eq.s32.totalorder %s34, 0
      %p339 = por %p337, %p338
      %p340 = scmp.le.s32.totalorder 1, %s28
      %p341 = scmp.lt.s32.totalorder %s28, 3
      %p342 = pnand %p340, %p341
      %p343 = pneg %p342
      // Predicated region
      $region9: #{tpu_custom_call.1} parent=5 // pred_check
        _
      $region10: #{tpu_custom_call.1} parent=5 // pred_check_branch
        %345 = sbr.rel (%p342) target = $region12
      $region11: #{tpu_custom_call.1} parent=5 // pred_region
        %s346 = ssub.s32 %s28, 1
        // Predicated region
        $region13: #{tpu_custom_call.1} parent=11 // pred_check
          %p347 = pneg %p75
        $region14: #{tpu_custom_call.1} parent=11 // pred_check_branch
          %349 = sbr.rel (%p347) target = $region16
        $region15: #{tpu_custom_call.1} parent=11 // pred_region
          %351 = vsyncadd [#allocation6], 0
          %s352 = sshll.u32 %s1, 4
          %s353 = int_to_ptr.hbm [resolvable:$true] %s352
          %s354 = sshll.u32 [#allocation5], 4
          %s355 = int_to_ptr.vmem [resolvable:$true] %s354
          %360 = dma.hbm_to_vmem [thread:$0]  %s353, 4096, %s355, [#allocation6], 128, 128, 8
        $region16: #{tpu_custom_call.1} parent=11 // pred_fallthru
          _
        // Predicated region
        $region17: #{tpu_custom_call.1} parent=11 // pred_check
          %p361 = pneg %p96
        $region18: #{tpu_custom_call.1} parent=11 // pred_check_branch
          %363 = sbr.rel (%p361) target = $region20
        $region19: #{tpu_custom_call.1} parent=11 // pred_region
          _
        $region20: #{tpu_custom_call.1} parent=11 // pred_fallthru
          _
        // Predicated region
        $region21: #{tpu_custom_call.1} parent=11 // pred_check
          %p364 = pneg %p117
        $region22: #{tpu_custom_call.1} parent=11 // pred_check_branch
          %366 = sbr.rel (%p364) target = $region24
        $region23: #{tpu_custom_call.1} parent=11 // pred_region
          %368 = vsyncadd [#allocation6], 0
          %s369 = sshll.u32 %s3, 4
          %s370 = int_to_ptr.hbm [resolvable:$true] %s369
          %s371 = sshll.u32 [#allocation7], 4
          %s372 = int_to_ptr.vmem [resolvable:$true] %s371
          %377 = dma.hbm_to_vmem [thread:$0]  %s370, 4096, %s372, [#allocation6], 128, 128, 8
        $region24: #{tpu_custom_call.1} parent=11 // pred_fallthru
          _
        // Predicated region
        $region25: #{tpu_custom_call.1} parent=11 // pred_check
          %p378 = pneg %p138
        $region26: #{tpu_custom_call.1} parent=11 // pred_check_branch
          %380 = sbr.rel (%p378) target = $region28
        $region27: #{tpu_custom_call.1} parent=11 // pred_region
          _
        $region28: #{tpu_custom_call.1} parent=11 // pred_fallthru
          _
        // Predicated region
        $region29: #{tpu_custom_call.1} parent=11 // pred_check
          %p381 = pneg %p159
        $region30: #{tpu_custom_call.1} parent=11 // pred_check_branch
          %383 = sbr.rel (%p381) target = $region32
        $region31: #{tpu_custom_call.1} parent=11 // pred_region
          %385 = vsyncadd [#allocation9], 0
          %s386 = sshll.u32 %s5, 4
          %s387 = int_to_ptr.hbm [resolvable:$true] %s386
          %s388 = sshll.u32 [#allocation8], 4
          %s389 = int_to_ptr.vmem [resolvable:$true] %s388
          %394 = dma.hbm_to_vmem [thread:$0]  %s387, 2048, %s389, [#allocation9], 128, 128, 8
        $region32: #{tpu_custom_call.1} parent=11 // pred_fallthru
          _
        // Predicated region
        $region33: #{tpu_custom_call.1} parent=11 // pred_check
          %p395 = pneg %p180
        $region34: #{tpu_custom_call.1} parent=11 // pred_check_branch
          %397 = sbr.rel (%p395) target = $region36
        $region35: #{tpu_custom_call.1} parent=11 // pred_region
          _
        $region36: #{tpu_custom_call.1} parent=11 // pred_fallthru
          _
        // Predicated region
        $region37: #{tpu_custom_call.1} parent=11 // pred_check
          %p398 = pneg %p201
        $region38: #{tpu_custom_call.1} parent=11 // pred_check_branch
          %400 = sbr.rel (%p398) target = $region40
        $region39: #{tpu_custom_call.1} parent=11 // pred_region
          %402 = vsyncadd [#allocation9], 0
          %s403 = sshll.u32 %s7, 4
          %s404 = int_to_ptr.hbm [resolvable:$true] %s403
          %s405 = sshll.u32 [#allocation10], 4
          %s406 = int_to_ptr.vmem [resolvable:$true] %s405
          %411 = dma.hbm_to_vmem [thread:$0]  %s404, 4096, %s406, [#allocation9], 128, 128, 8
        $region40: #{tpu_custom_call.1} parent=11 // pred_fallthru
          _
        // Predicated region
        $region41: #{tpu_custom_call.1} parent=11 // pred_check
          %p412 = pneg %p222
        $region42: #{tpu_custom_call.1} parent=11 // pred_check_branch
          %414 = sbr.rel (%p412) target = $region44
        $region43: #{tpu_custom_call.1} parent=11 // pred_region
          _
        $region44: #{tpu_custom_call.1} parent=11 // pred_fallthru
          _
        // Predicated region
        $region45: #{tpu_custom_call.1} parent=11 // pred_check
          %p415 = pneg %p243
        $region46: #{tpu_custom_call.1} parent=11 // pred_check_branch
          %417 = sbr.rel (%p415) target = $region48
        $region47: #{tpu_custom_call.1} parent=11 // pred_region
          %419 = vsyncadd [#allocation12], 0
          %s420 = sshll.u32 %s9, 4
          %s421 = int_to_ptr.hbm [resolvable:$true] %s420
          %s422 = sshll.u32 [#allocation11], 4
          %s423 = int_to_ptr.vmem [resolvable:$true] %s422
          %428 = dma.hbm_to_vmem [thread:$0]  %s421, 4096, %s423, [#allocation12], 128, 128, 8
        $region48: #{tpu_custom_call.1} parent=11 // pred_fallthru
          _
        // Predicated region
        $region49: #{tpu_custom_call.1} parent=11 // pred_check
          %p429 = pneg %p264
        $region50: #{tpu_custom_call.1} parent=11 // pred_check_branch
          %431 = sbr.rel (%p429) target = $region52
        $region51: #{tpu_custom_call.1} parent=11 // pred_region
          _
        $region52: #{tpu_custom_call.1} parent=11 // pred_fallthru
          _
        // Predicated region
        $region53: #{tpu_custom_call.1} parent=11 // pred_check
          %p432 = pneg %p285
        $region54: #{tpu_custom_call.1} parent=11 // pred_check_branch
          %434 = sbr.rel (%p432) target = $region56
        $region55: #{tpu_custom_call.1} parent=11 // pred_region
          %436 = vsyncadd [#allocation12], 0
          %s437 = sshll.u32 %s11, 4
          %s438 = int_to_ptr.hbm [resolvable:$true] %s437
          %s439 = sshll.u32 [#allocation13], 4
          %s440 = int_to_ptr.vmem [resolvable:$true] %s439
          %445 = dma.hbm_to_vmem [thread:$0]  %s438, 2048, %s440, [#allocation12], 128, 128, 8
        $region56: #{tpu_custom_call.1} parent=11 // pred_fallthru
          _
        // Predicated region
        $region57: #{tpu_custom_call.1} parent=11 // pred_check
          %p446 = pneg %p306
        $region58: #{tpu_custom_call.1} parent=11 // pred_check_branch
          %448 = sbr.rel (%p446) target = $region60
        $region59: #{tpu_custom_call.1} parent=11 // pred_region
          _
        $region60: #{tpu_custom_call.1} parent=11 // pred_fallthru
          _
      $region12: #{tpu_custom_call.1} parent=5 // pred_fallthru
        _
      %p449 = scmp.lt.s32.totalorder %s28, 2
      // Predicated region
      $region61: #{tpu_custom_call.1} parent=5 // pred_check
        %p450 = pneg %p449
      $region62: #{tpu_custom_call.1} parent=5 // pred_check_branch
        %452 = sbr.rel (%p450) target = $region64
      $region63: #{tpu_custom_call.1} parent=5 // pred_region
        // Predicated region
        $region65: #{tpu_custom_call.1} parent=63 // pred_check
          %p453 = pneg %p48
        $region66: #{tpu_custom_call.1} parent=63 // pred_check_branch
          %455 = sbr.rel (%p453) target = $region68
        $region67: #{tpu_custom_call.1} parent=63 // pred_region
          %s456 = sand.u32 %s38, 1
          %s457 = scalar_lea.sflag [#allocation3], %s456
          %s458 = sand.u32 %s38, 1
          %s459 = smul.addr %s458, 16
          %s460 = scalar_lea.vmem [#allocation2], %s459
          %s461 = smul.u32 2, %s28
          %463 = vsyncadd %s457, 0
          %s464 = smul.addr %s461, 8
          %s465 = scalar_lea.hbm %s0, %s464
          %s466 = sshll.u32 %s465, 4
          %s467 = int_to_ptr.hbm [resolvable:$true] %s466
          %s468 = sshll.u32 %s460, 4
          %s469 = int_to_ptr.vmem [resolvable:$true] %s468
          %474 = dma.hbm_to_vmem [thread:$0]  %s467, 256, %s469, %s457, 128, 128, 8
        $region68: #{tpu_custom_call.1} parent=63 // pred_fallthru
          _
      $region64: #{tpu_custom_call.1} parent=5 // pred_fallthru
        _
      %p475 = scmp.le.s32.totalorder 1, %s28
      %p476 = scmp.lt.s32.totalorder %s28, 3
      %p477 = pnand %p475, %p476
      %p478 = pneg %p477
      // Predicated region
      $region69: #{tpu_custom_call.1} parent=5 // pred_check
        _
      $region70: #{tpu_custom_call.1} parent=5 // pred_check_branch
        %480 = sbr.rel (%p477) target = $region72
      $region71: #{tpu_custom_call.1} parent=5 // pred_region
        %s481 = ssub.s32 %s28, 1
        %s482 = sand.u32 %s41, 1
        %s483 = scalar_lea.sflag [#allocation3], %s482
        %s484 = sand.u32 %s41, 1
        %s485 = smul.addr %s484, 16
        %s486 = scalar_lea.vmem [#allocation2], %s485
        // Predicated region
        $region73: #{tpu_custom_call.1} parent=71 // pred_check
          %p487 = pneg %p54
        $region74: #{tpu_custom_call.1} parent=71 // pred_check_branch
          %489 = sbr.rel (%p487) target = $region76
        $region75: #{tpu_custom_call.1} parent=71 // pred_region
          %491 = dma.done %s483, 256
        $region76: #{tpu_custom_call.1} parent=71 // pred_fallthru
          _
        // Predicated region
        $region77: #{tpu_custom_call.1} parent=71 // pred_check
          %p492 = pneg %p75
        $region78: #{tpu_custom_call.1} parent=71 // pred_check_branch
          %494 = sbr.rel (%p492) target = $region80
        $region79: #{tpu_custom_call.1} parent=71 // pred_region
          %496 = dma.done [#allocation6], 4096
        $region80: #{tpu_custom_call.1} parent=71 // pred_fallthru
          _
        // Predicated region
        $region81: #{tpu_custom_call.1} parent=71 // pred_check
          %p497 = pneg %p117
        $region82: #{tpu_custom_call.1} parent=71 // pred_check_branch
          %499 = sbr.rel (%p497) target = $region84
        $region83: #{tpu_custom_call.1} parent=71 // pred_region
          %501 = dma.done [#allocation6], 4096
        $region84: #{tpu_custom_call.1} parent=71 // pred_fallthru
          _
        // Predicated region
        $region85: #{tpu_custom_call.1} parent=71 // pred_check
          %p502 = pneg %p159
        $region86: #{tpu_custom_call.1} parent=71 // pred_check_branch
          %504 = sbr.rel (%p502) target = $region88
        $region87: #{tpu_custom_call.1} parent=71 // pred_region
          %506 = dma.done [#allocation9], 2048
        $region88: #{tpu_custom_call.1} parent=71 // pred_fallthru
          _
        // Predicated region
        $region89: #{tpu_custom_call.1} parent=71 // pred_check
          %p507 = pneg %p201
        $region90: #{tpu_custom_call.1} parent=71 // pred_check_branch
          %509 = sbr.rel (%p507) target = $region92
        $region91: #{tpu_custom_call.1} parent=71 // pred_region
          %511 = dma.done [#allocation9], 4096
        $region92: #{tpu_custom_call.1} parent=71 // pred_fallthru
          _
        // Predicated region
        $region93: #{tpu_custom_call.1} parent=71 // pred_check
          %p512 = pneg %p243
        $region94: #{tpu_custom_call.1} parent=71 // pred_check_branch
          %514 = sbr.rel (%p512) target = $region96
        $region95: #{tpu_custom_call.1} parent=71 // pred_region
          %516 = dma.done [#allocation12], 4096
        $region96: #{tpu_custom_call.1} parent=71 // pred_fallthru
          _
        // Predicated region
        $region97: #{tpu_custom_call.1} parent=71 // pred_check
          %p517 = pneg %p285
        $region98: #{tpu_custom_call.1} parent=71 // pred_check_branch
          %519 = sbr.rel (%p517) target = $region100
        $region99: #{tpu_custom_call.1} parent=71 // pred_region
          %521 = dma.done [#allocation12], 2048
        $region100: #{tpu_custom_call.1} parent=71 // pred_fallthru
          _
        %s522 = sand.u32 %s41, 1
        %s523 = scalar_lea.sflag [#allocation3], %s522
        %s524 = sand.u32 %s41, 1
        %s525 = smul.addr %s524, 16
        %s526 = scalar_lea.vmem [#allocation2], %s525
        %p527 = pneg %p54
        %p528 = pneg %p51
        %p529 = pneg %p75
        %p530 = pneg %p72
        %p531 = pneg %p96
        %p532 = pneg %p93
        %p533 = pneg %p117
        %p534 = pneg %p114
        %p535 = pneg %p138
        %p536 = pneg %p135
        %p537 = pneg %p159
        %p538 = pneg %p156
        %p539 = pneg %p180
        %p540 = pneg %p177
        %p541 = pneg %p201
        %p542 = pneg %p198
        %p543 = pneg %p222
        %p544 = pneg %p219
        %p545 = pneg %p243
        %p546 = pneg %p240
        %p547 = pneg %p264
        %p548 = pneg %p261
        %p549 = pneg %p285
        %p550 = pneg %p282
        %p551 = pneg %p306
        %p552 = pneg %p303
        %p553 = pneg %p332
        %p554 = pneg %p329
        %s555 = sand.u32 %s319, 1
        %s556 = scalar_lea.sflag [#allocation4], %s555
        %s557 = sand.u32 %s319, 1
        %s558 = smul.addr %s557, 16
        %s559 = scalar_lea.vmem [#allocation14], %s558
        %s560 = smul.u32 2, %s33
        %s561 = smul.u32 2, %s33
        %v562 = vlaneseq
        %v563 = vshrl.u32 %v562, 7
        %v564 = vadd.s32 %v563, 8
        %vm565 = vcmp.lt.s32.totalorder %v563, 0
        %v566 = vsub.s32 0, %v563
        %v567 = vsel %vm565, %v566, %v563
        %v568 = vshrl.u32 %v567, 4
        %v569 = vand.u32 %v567, 15
        %v570 = vsub.s32 0, %v569
        %v571 = vsel %vm565, %v570, %v569
        %vm572 = vcmp.lt.s32.totalorder %v564, 0
        %v573 = vsub.s32 0, %v564
        %v574 = vsel %vm572, %v573, %v564
        %v575 = vshrl.u32 %v574, 4
        %v576 = vand.u32 %v574, 15
        %v577 = vsub.s32 0, %v576
        %v578 = vsel %vm572, %v577, %v576
        %vm579 = vcmp.ne.s32.totalorder %v571, 0
        %vm580 = vcmp.ne.s32.totalorder %v578, 0
        %vm581 = vcmp.lt.s32.totalorder %v571, 0
        %vm582 = vcmp.lt.s32.totalorder %v578, 0
        %vm583 = vmand %vm581, %vm579
        %vm584 = vmand %vm582, %vm580
        %v585 = vadd.s32 %v571, 16
        %v586 = vadd.s32 %v578, 16
        %v587 = vsel %vm583, %v585, %v571
        %v588 = vsel %vm584, %v586, %v578
        %v589 = vld [vmem:[%s486] sm:$0xff]
        %v590 = vld [vmem:[%s486 + $0x8] sm:$0xff]
        %v591 = vrot.slane %v589, 7
        %v592 = vrot.slane %v590, 7
        %vm593 = vcmp.lt.s32.totalorder %v563, 1
        %v594 = vsel %vm593, %v591, %v592
        %v595 = vsel %vm593, %v592, %v591
        %vm596 = vcmp.ge.s32.totalorder %v587, 1
        %vm597 = vcmp.ge.s32.totalorder %v588, 1
        %v598 = vsel %vm596, 1, 0
        %v599 = vsel %vm597, 1, 0
        %vm600 = vcmp.eq.s32.totalorder %v598, 1
        %vm601 = vcmp.eq.s32.totalorder %v599, 1
        %v602 = vsel %vm600, %v595, 0.0
        %v603 = vsel %vm601, %v594, 0.0
        %v604 = vld [vmem:[#allocation5] sm:$0xff]
        %v605 = vld [vmem:[#allocation5 + $0x8] sm:$0xff]
        %v606 = vld [vmem:[#allocation5 + $0x10] sm:$0xff]
        %v607 = vld [vmem:[#allocation5 + $0x18] sm:$0xff]
        %v608 = vld [vmem:[#allocation5 + $0x20] sm:$0xff]
        %v609 = vld [vmem:[#allocation5 + $0x28] sm:$0xff]
        %v610 = vld [vmem:[#allocation5 + $0x30] sm:$0xff]
        %v611 = vld [vmem:[#allocation5 + $0x38] sm:$0xff]
        %v612 = vld [vmem:[#allocation5 + $0x40] sm:$0xff]
        %v613 = vld [vmem:[#allocation5 + $0x48] sm:$0xff]
        %v614 = vld [vmem:[#allocation5 + $0x50] sm:$0xff]
        %v615 = vld [vmem:[#allocation5 + $0x58] sm:$0xff]
        %v616 = vld [vmem:[#allocation5 + $0x60] sm:$0xff]
        %v617 = vld [vmem:[#allocation5 + $0x68] sm:$0xff]
        %v618 = vld [vmem:[#allocation5 + $0x70] sm:$0xff]
        %v619 = vld [vmem:[#allocation5 + $0x78] sm:$0xff]
        %s620 = scalar_lea.vmem [#allocation5], 128
        %v621 = vld [vmem:[%s620] sm:$0xff]
        %v622 = vld [vmem:[%s620 + $0x8] sm:$0xff]
        %v623 = vld [vmem:[%s620 + $0x10] sm:$0xff]
        %v624 = vld [vmem:[%s620 + $0x18] sm:$0xff]
        %v625 = vld [vmem:[%s620 + $0x20] sm:$0xff]
        %v626 = vld [vmem:[%s620 + $0x28] sm:$0xff]
        %v627 = vld [vmem:[%s620 + $0x30] sm:$0xff]
        %v628 = vld [vmem:[%s620 + $0x38] sm:$0xff]
        %v629 = vld [vmem:[%s620 + $0x40] sm:$0xff]
        %v630 = vld [vmem:[%s620 + $0x48] sm:$0xff]
        %v631 = vld [vmem:[%s620 + $0x50] sm:$0xff]
        %v632 = vld [vmem:[%s620 + $0x58] sm:$0xff]
        %v633 = vld [vmem:[%s620 + $0x60] sm:$0xff]
        %v634 = vld [vmem:[%s620 + $0x68] sm:$0xff]
        %v635 = vld [vmem:[%s620 + $0x70] sm:$0xff]
        %v636 = vld [vmem:[%s620 + $0x78] sm:$0xff]
        %637 = vmatpush.msra.mxu0 %v636
        %638 = vmatpush.msra.mxu0 %v635
        %639 = vmatpush.msra.mxu0 %v634
        %640 = vmatpush.msra.mxu0 %v633
        %641 = vmatpush.msra.mxu0 %v632
        %642 = vmatpush.msra.mxu0 %v631
        %643 = vmatpush.msra.mxu0 %v630
        %644 = vmatpush.msra.mxu0 %v629
        %645 = vmatpush.msra.mxu0 %v628
        %646 = vmatpush.msra.mxu0 %v627
        %647 = vmatpush.msra.mxu0 %v626
        %648 = vmatpush.msra.mxu0 %v625
        %649 = vmatpush.msra.mxu0 %v624
        %650 = vmatpush.msra.mxu0 %v623
        %651 = vmatpush.msra.mxu0 %v622
        %652 = vmatpush.msra.mxu0 %v621
        %653 = vmatmul.f32.gmra.mxu0 %v589
        %v654 = vpop.f32.mrf.mxu0
        %v655 = vadd.f32 0.0, %v654
        %656 = vmatmul.f32.gmra.mxu0 %v590
        %v657 = vpop.f32.mrf.mxu0
        %v658 = vadd.f32 0.0, %v657
        %659 = vdwg.mxu0
        %660 = vmatpush.msra.mxu0 %v619
        %661 = vmatpush.msra.mxu0 %v618
        %662 = vmatpush.msra.mxu0 %v617
        %663 = vmatpush.msra.mxu0 %v616
        %664 = vmatpush.msra.mxu0 %v615
        %665 = vmatpush.msra.mxu0 %v614
        %666 = vmatpush.msra.mxu0 %v613
        %667 = vmatpush.msra.mxu0 %v612
        %668 = vmatpush.msra.mxu0 %v611
        %669 = vmatpush.msra.mxu0 %v610
        %670 = vmatpush.msra.mxu0 %v609
        %671 = vmatpush.msra.mxu0 %v608
        %672 = vmatpush.msra.mxu0 %v607
        %673 = vmatpush.msra.mxu0 %v606
        %674 = vmatpush.msra.mxu0 %v605
        %675 = vmatpush.msra.mxu0 %v604
        %676 = vmatmul.f32.gmra.mxu0 %v602
        %v677 = vpop.f32.mrf.mxu0
        %v678 = vadd.f32 %v655, %v677
        %679 = vmatmul.f32.gmra.mxu0 %v603
        %v680 = vpop.f32.mrf.mxu0
        %v681 = vadd.f32 %v658, %v680
        %682 = vdwg.mxu0
        %v683 = vld [vmem:[%s2] sm:$0x1]
        %v685 = vperm.slane %v683, 0
        %v687 = vadd.f32 %v678, %v685
        %v688 = vadd.f32 %v681, %v685
        %v689 = vmax.f32 %v687, 0.0
        %v690 = vmax.f32 %v688, 0.0
        %v691 = vrot.slane %v689, 7
        %v692 = vrot.slane %v690, 7
        %v693 = vsel %vm593, %v691, %v692
        %v694 = vsel %vm593, %v692, %v691
        %v695 = vsel %vm600, %v694, 0.0
        %v696 = vsel %vm601, %v693, 0.0
        %v697 = vld [vmem:[#allocation7] sm:$0xff]
        %v698 = vld [vmem:[#allocation7 + $0x8] sm:$0xff]
        %v699 = vld [vmem:[#allocation7 + $0x10] sm:$0xff]
        %v700 = vld [vmem:[#allocation7 + $0x18] sm:$0xff]
        %v701 = vld [vmem:[#allocation7 + $0x20] sm:$0xff]
        %v702 = vld [vmem:[#allocation7 + $0x28] sm:$0xff]
        %v703 = vld [vmem:[#allocation7 + $0x30] sm:$0xff]
        %v704 = vld [vmem:[#allocation7 + $0x38] sm:$0xff]
        %v705 = vld [vmem:[#allocation7 + $0x40] sm:$0xff]
        %v706 = vld [vmem:[#allocation7 + $0x48] sm:$0xff]
        %v707 = vld [vmem:[#allocation7 + $0x50] sm:$0xff]
        %v708 = vld [vmem:[#allocation7 + $0x58] sm:$0xff]
        %v709 = vld [vmem:[#allocation7 + $0x60] sm:$0xff]
        %v710 = vld [vmem:[#allocation7 + $0x68] sm:$0xff]
        %v711 = vld [vmem:[#allocation7 + $0x70] sm:$0xff]
        %v712 = vld [vmem:[#allocation7 + $0x78] sm:$0xff]
        %s713 = scalar_lea.vmem [#allocation7], 128
        %v714 = vld [vmem:[%s713] sm:$0xff]
        %v715 = vld [vmem:[%s713 + $0x8] sm:$0xff]
        %v716 = vld [vmem:[%s713 + $0x10] sm:$0xff]
        %v717 = vld [vmem:[%s713 + $0x18] sm:$0xff]
        %v718 = vld [vmem:[%s713 + $0x20] sm:$0xff]
        %v719 = vld [vmem:[%s713 + $0x28] sm:$0xff]
        %v720 = vld [vmem:[%s713 + $0x30] sm:$0xff]
        %v721 = vld [vmem:[%s713 + $0x38] sm:$0xff]
        %v722 = vld [vmem:[%s713 + $0x40] sm:$0xff]
        %v723 = vld [vmem:[%s713 + $0x48] sm:$0xff]
        %v724 = vld [vmem:[%s713 + $0x50] sm:$0xff]
        %v725 = vld [vmem:[%s713 + $0x58] sm:$0xff]
        %v726 = vld [vmem:[%s713 + $0x60] sm:$0xff]
        %v727 = vld [vmem:[%s713 + $0x68] sm:$0xff]
        %v728 = vld [vmem:[%s713 + $0x70] sm:$0xff]
        %v729 = vld [vmem:[%s713 + $0x78] sm:$0xff]
        %730 = vmatpush.msra.mxu0 %v729
        %731 = vmatpush.msra.mxu0 %v728
        %732 = vmatpush.msra.mxu0 %v727
        %733 = vmatpush.msra.mxu0 %v726
        %734 = vmatpush.msra.mxu0 %v725
        %735 = vmatpush.msra.mxu0 %v724
        %736 = vmatpush.msra.mxu0 %v723
        %737 = vmatpush.msra.mxu0 %v722
        %738 = vmatpush.msra.mxu0 %v721
        %739 = vmatpush.msra.mxu0 %v720
        %740 = vmatpush.msra.mxu0 %v719
        %741 = vmatpush.msra.mxu0 %v718
        %742 = vmatpush.msra.mxu0 %v717
        %743 = vmatpush.msra.mxu0 %v716
        %744 = vmatpush.msra.mxu0 %v715
        %745 = vmatpush.msra.mxu0 %v714
        %746 = vmatmul.f32.gmra.mxu0 %v689
        %v747 = vpop.f32.mrf.mxu0
        %v748 = vadd.f32 0.0, %v747
        %749 = vmatmul.f32.gmra.mxu0 %v690
        %v750 = vpop.f32.mrf.mxu0
        %v751 = vadd.f32 0.0, %v750
        %752 = vdwg.mxu0
        %753 = vmatpush.msra.mxu0 %v712
        %754 = vmatpush.msra.mxu0 %v711
        %755 = vmatpush.msra.mxu0 %v710
        %756 = vmatpush.msra.mxu0 %v709
        %757 = vmatpush.msra.mxu0 %v708
        %758 = vmatpush.msra.mxu0 %v707
        %759 = vmatpush.msra.mxu0 %v706
        %760 = vmatpush.msra.mxu0 %v705
        %761 = vmatpush.msra.mxu0 %v704
        %762 = vmatpush.msra.mxu0 %v703
        %763 = vmatpush.msra.mxu0 %v702
        %764 = vmatpush.msra.mxu0 %v701
        %765 = vmatpush.msra.mxu0 %v700
        %766 = vmatpush.msra.mxu0 %v699
        %767 = vmatpush.msra.mxu0 %v698
        %768 = vmatpush.msra.mxu0 %v697
        %769 = vmatmul.f32.gmra.mxu0 %v695
        %v770 = vpop.f32.mrf.mxu0
        %v771 = vadd.f32 %v748, %v770
        %772 = vmatmul.f32.gmra.mxu0 %v696
        %v773 = vpop.f32.mrf.mxu0
        %v774 = vadd.f32 %v751, %v773
        %775 = vdwg.mxu0
        %v776 = vld [vmem:[%s4] sm:$0x1]
        %v778 = vperm.slane %v776, 0
        %v780 = vadd.f32 %v771, %v778
        %v781 = vadd.f32 %v774, %v778
        %v782 = vmax.f32 %v780, 0.0
        %v783 = vmax.f32 %v781, 0.0
        %v784 = vld [vmem:[#allocation8] sm:$0xff]
        %v785 = vld [vmem:[#allocation8 + $0x8] sm:$0xff]
        %v786 = vld [vmem:[#allocation8 + $0x10] sm:$0xff]
        %v787 = vld [vmem:[#allocation8 + $0x18] sm:$0xff]
        %v788 = vld [vmem:[#allocation8 + $0x20] sm:$0xff]
        %v789 = vld [vmem:[#allocation8 + $0x28] sm:$0xff]
        %v790 = vld [vmem:[#allocation8 + $0x30] sm:$0xff]
        %v791 = vld [vmem:[#allocation8 + $0x38] sm:$0xff]
        %v792 = vld [vmem:[#allocation8 + $0x40] sm:$0xff]
        %v793 = vld [vmem:[#allocation8 + $0x48] sm:$0xff]
        %v794 = vld [vmem:[#allocation8 + $0x50] sm:$0xff]
        %v795 = vld [vmem:[#allocation8 + $0x58] sm:$0xff]
        %v796 = vld [vmem:[#allocation8 + $0x60] sm:$0xff]
        %v797 = vld [vmem:[#allocation8 + $0x68] sm:$0xff]
        %v798 = vld [vmem:[#allocation8 + $0x70] sm:$0xff]
        %v799 = vld [vmem:[#allocation8 + $0x78] sm:$0xff]
        %v800 = vld [vmem:[%s6] sm:$0x1]
        %v802 = vperm.slane %v800, 0
        %804 = vmatpush.msra.mxu0 %v799
        %805 = vmatpush.msra.mxu0 %v798
        %806 = vmatpush.msra.mxu0 %v797
        %807 = vmatpush.msra.mxu0 %v796
        %808 = vmatpush.msra.mxu0 %v795
        %809 = vmatpush.msra.mxu0 %v794
        %810 = vmatpush.msra.mxu0 %v793
        %811 = vmatpush.msra.mxu0 %v792
        %812 = vmatpush.msra.mxu0 %v791
        %813 = vmatpush.msra.mxu0 %v790
        %814 = vmatpush.msra.mxu0 %v789
        %815 = vmatpush.msra.mxu0 %v788
        %816 = vmatpush.msra.mxu0 %v787
        %817 = vmatpush.msra.mxu0 %v786
        %818 = vmatpush.msra.mxu0 %v785
        %819 = vmatpush.msra.mxu0 %v784
        %820 = vmatmul.f32.gmra.mxu0 %v589
        %v821 = vpop.f32.mrf.mxu0
        %v822 = vadd.f32 %v802, %v821
        %823 = vmatmul.f32.gmra.mxu0 %v590
        %v824 = vpop.f32.mrf.mxu0
        %v825 = vadd.f32 %v802, %v824
        %826 = vdwg.mxu0
        %v827 = vadd.f32 %v782, %v822
        %v828 = vadd.f32 %v783, %v825
        %v829 = vmax.f32 %v827, 0.0
        %v830 = vmax.f32 %v828, 0.0
        %v831 = vrot.slane %v829, 6
        %v832 = vrot.slane %v830, 6
        %vm833 = vcmp.lt.s32.totalorder %v563, 2
        %v834 = vsel %vm833, %v831, %v832
        %v835 = vsel %vm833, %v832, %v831
        %vm836 = vcmp.ge.s32.totalorder %v587, 2
        %vm837 = vcmp.ge.s32.totalorder %v588, 2
        %v838 = vsel %vm836, 1, 0
        %v839 = vsel %vm837, 1, 0
        %vm840 = vcmp.eq.s32.totalorder %v838, 1
        %vm841 = vcmp.eq.s32.totalorder %v839, 1
        %v842 = vsel %vm840, %v835, 0.0
        %v843 = vsel %vm841, %v834, 0.0
        %v844 = vld [vmem:[#allocation10] sm:$0xff]
        %v845 = vld [vmem:[#allocation10 + $0x8] sm:$0xff]
        %v846 = vld [vmem:[#allocation10 + $0x10] sm:$0xff]
        %v847 = vld [vmem:[#allocation10 + $0x18] sm:$0xff]
        %v848 = vld [vmem:[#allocation10 + $0x20] sm:$0xff]
        %v849 = vld [vmem:[#allocation10 + $0x28] sm:$0xff]
        %v850 = vld [vmem:[#allocation10 + $0x30] sm:$0xff]
        %v851 = vld [vmem:[#allocation10 + $0x38] sm:$0xff]
        %v852 = vld [vmem:[#allocation10 + $0x40] sm:$0xff]
        %v853 = vld [vmem:[#allocation10 + $0x48] sm:$0xff]
        %v854 = vld [vmem:[#allocation10 + $0x50] sm:$0xff]
        %v855 = vld [vmem:[#allocation10 + $0x58] sm:$0xff]
        %v856 = vld [vmem:[#allocation10 + $0x60] sm:$0xff]
        %v857 = vld [vmem:[#allocation10 + $0x68] sm:$0xff]
        %v858 = vld [vmem:[#allocation10 + $0x70] sm:$0xff]
        %v859 = vld [vmem:[#allocation10 + $0x78] sm:$0xff]
        %s860 = scalar_lea.vmem [#allocation10], 128
        %v861 = vld [vmem:[%s860] sm:$0xff]
        %v862 = vld [vmem:[%s860 + $0x8] sm:$0xff]
        %v863 = vld [vmem:[%s860 + $0x10] sm:$0xff]
        %v864 = vld [vmem:[%s860 + $0x18] sm:$0xff]
        %v865 = vld [vmem:[%s860 + $0x20] sm:$0xff]
        %v866 = vld [vmem:[%s860 + $0x28] sm:$0xff]
        %v867 = vld [vmem:[%s860 + $0x30] sm:$0xff]
        %v868 = vld [vmem:[%s860 + $0x38] sm:$0xff]
        %v869 = vld [vmem:[%s860 + $0x40] sm:$0xff]
        %v870 = vld [vmem:[%s860 + $0x48] sm:$0xff]
        %v871 = vld [vmem:[%s860 + $0x50] sm:$0xff]
        %v872 = vld [vmem:[%s860 + $0x58] sm:$0xff]
        %v873 = vld [vmem:[%s860 + $0x60] sm:$0xff]
        %v874 = vld [vmem:[%s860 + $0x68] sm:$0xff]
        %v875 = vld [vmem:[%s860 + $0x70] sm:$0xff]
        %v876 = vld [vmem:[%s860 + $0x78] sm:$0xff]
        %877 = vmatpush.msra.mxu0 %v876
        %878 = vmatpush.msra.mxu0 %v875
        %879 = vmatpush.msra.mxu0 %v874
        %880 = vmatpush.msra.mxu0 %v873
        %881 = vmatpush.msra.mxu0 %v872
        %882 = vmatpush.msra.mxu0 %v871
        %883 = vmatpush.msra.mxu0 %v870
        %884 = vmatpush.msra.mxu0 %v869
        %885 = vmatpush.msra.mxu0 %v868
        %886 = vmatpush.msra.mxu0 %v867
        %887 = vmatpush.msra.mxu0 %v866
        %888 = vmatpush.msra.mxu0 %v865
        %889 = vmatpush.msra.mxu0 %v864
        %890 = vmatpush.msra.mxu0 %v863
        %891 = vmatpush.msra.mxu0 %v862
        %892 = vmatpush.msra.mxu0 %v861
        %893 = vmatmul.f32.gmra.mxu0 %v829
        %v894 = vpop.f32.mrf.mxu0
        %v895 = vadd.f32 0.0, %v894
        %896 = vmatmul.f32.gmra.mxu0 %v830
        %v897 = vpop.f32.mrf.mxu0
        %v898 = vadd.f32 0.0, %v897
        %899 = vdwg.mxu0
        %900 = vmatpush.msra.mxu0 %v859
        %901 = vmatpush.msra.mxu0 %v858
        %902 = vmatpush.msra.mxu0 %v857
        %903 = vmatpush.msra.mxu0 %v856
        %904 = vmatpush.msra.mxu0 %v855
        %905 = vmatpush.msra.mxu0 %v854
        %906 = vmatpush.msra.mxu0 %v853
        %907 = vmatpush.msra.mxu0 %v852
        %908 = vmatpush.msra.mxu0 %v851
        %909 = vmatpush.msra.mxu0 %v850
        %910 = vmatpush.msra.mxu0 %v849
        %911 = vmatpush.msra.mxu0 %v848
        %912 = vmatpush.msra.mxu0 %v847
        %913 = vmatpush.msra.mxu0 %v846
        %914 = vmatpush.msra.mxu0 %v845
        %915 = vmatpush.msra.mxu0 %v844
        %916 = vmatmul.f32.gmra.mxu0 %v842
        %v917 = vpop.f32.mrf.mxu0
        %v918 = vadd.f32 %v895, %v917
        %919 = vmatmul.f32.gmra.mxu0 %v843
        %v920 = vpop.f32.mrf.mxu0
        %v921 = vadd.f32 %v898, %v920
        %922 = vdwg.mxu0
        %v923 = vld [vmem:[%s8] sm:$0x1]
        %v925 = vperm.slane %v923, 0
        %v927 = vadd.f32 %v918, %v925
        %v928 = vadd.f32 %v921, %v925
        %v929 = vmax.f32 %v927, 0.0
        %v930 = vmax.f32 %v928, 0.0
        %v931 = vrot.slane %v929, 6
        %v932 = vrot.slane %v930, 6
        %v933 = vsel %vm833, %v931, %v932
        %v934 = vsel %vm833, %v932, %v931
        %v935 = vsel %vm840, %v934, 0.0
        %v936 = vsel %vm841, %v933, 0.0
        %v937 = vld [vmem:[#allocation11] sm:$0xff]
        %v938 = vld [vmem:[#allocation11 + $0x8] sm:$0xff]
        %v939 = vld [vmem:[#allocation11 + $0x10] sm:$0xff]
        %v940 = vld [vmem:[#allocation11 + $0x18] sm:$0xff]
        %v941 = vld [vmem:[#allocation11 + $0x20] sm:$0xff]
        %v942 = vld [vmem:[#allocation11 + $0x28] sm:$0xff]
        %v943 = vld [vmem:[#allocation11 + $0x30] sm:$0xff]
        %v944 = vld [vmem:[#allocation11 + $0x38] sm:$0xff]
        %v945 = vld [vmem:[#allocation11 + $0x40] sm:$0xff]
        %v946 = vld [vmem:[#allocation11 + $0x48] sm:$0xff]
        %v947 = vld [vmem:[#allocation11 + $0x50] sm:$0xff]
        %v948 = vld [vmem:[#allocation11 + $0x58] sm:$0xff]
        %v949 = vld [vmem:[#allocation11 + $0x60] sm:$0xff]
        %v950 = vld [vmem:[#allocation11 + $0x68] sm:$0xff]
        %v951 = vld [vmem:[#allocation11 + $0x70] sm:$0xff]
        %v952 = vld [vmem:[#allocation11 + $0x78] sm:$0xff]
        %s953 = scalar_lea.vmem [#allocation11], 128
        %v954 = vld [vmem:[%s953] sm:$0xff]
        %v955 = vld [vmem:[%s953 + $0x8] sm:$0xff]
        %v956 = vld [vmem:[%s953 + $0x10] sm:$0xff]
        %v957 = vld [vmem:[%s953 + $0x18] sm:$0xff]
        %v958 = vld [vmem:[%s953 + $0x20] sm:$0xff]
        %v959 = vld [vmem:[%s953 + $0x28] sm:$0xff]
        %v960 = vld [vmem:[%s953 + $0x30] sm:$0xff]
        %v961 = vld [vmem:[%s953 + $0x38] sm:$0xff]
        %v962 = vld [vmem:[%s953 + $0x40] sm:$0xff]
        %v963 = vld [vmem:[%s953 + $0x48] sm:$0xff]
        %v964 = vld [vmem:[%s953 + $0x50] sm:$0xff]
        %v965 = vld [vmem:[%s953 + $0x58] sm:$0xff]
        %v966 = vld [vmem:[%s953 + $0x60] sm:$0xff]
        %v967 = vld [vmem:[%s953 + $0x68] sm:$0xff]
        %v968 = vld [vmem:[%s953 + $0x70] sm:$0xff]
        %v969 = vld [vmem:[%s953 + $0x78] sm:$0xff]
        %970 = vmatpush.msra.mxu0 %v969
        %971 = vmatpush.msra.mxu0 %v968
        %972 = vmatpush.msra.mxu0 %v967
        %973 = vmatpush.msra.mxu0 %v966
        %974 = vmatpush.msra.mxu0 %v965
        %975 = vmatpush.msra.mxu0 %v964
        %976 = vmatpush.msra.mxu0 %v963
        %977 = vmatpush.msra.mxu0 %v962
        %978 = vmatpush.msra.mxu0 %v961
        %979 = vmatpush.msra.mxu0 %v960
        %980 = vmatpush.msra.mxu0 %v959
        %981 = vmatpush.msra.mxu0 %v958
        %982 = vmatpush.msra.mxu0 %v957
        %983 = vmatpush.msra.mxu0 %v956
        %984 = vmatpush.msra.mxu0 %v955
        %985 = vmatpush.msra.mxu0 %v954
        %986 = vmatmul.f32.gmra.mxu0 %v929
        %v987 = vpop.f32.mrf.mxu0
        %v988 = vadd.f32 0.0, %v987
        %989 = vmatmul.f32.gmra.mxu0 %v930
        %v990 = vpop.f32.mrf.mxu0
        %v991 = vadd.f32 0.0, %v990
        %992 = vdwg.mxu0
        %993 = vmatpush.msra.mxu0 %v952
        %994 = vmatpush.msra.mxu0 %v951
        %995 = vmatpush.msra.mxu0 %v950
        %996 = vmatpush.msra.mxu0 %v949
        %997 = vmatpush.msra.mxu0 %v948
        %998 = vmatpush.msra.mxu0 %v947
        %999 = vmatpush.msra.mxu0 %v946
        %1000 = vmatpush.msra.mxu0 %v945
        %1001 = vmatpush.msra.mxu0 %v944
        %1002 = vmatpush.msra.mxu0 %v943
        %1003 = vmatpush.msra.mxu0 %v942
        %1004 = vmatpush.msra.mxu0 %v941
        %1005 = vmatpush.msra.mxu0 %v940
        %1006 = vmatpush.msra.mxu0 %v939
        %1007 = vmatpush.msra.mxu0 %v938
        %1008 = vmatpush.msra.mxu0 %v937
        %1009 = vmatmul.f32.gmra.mxu0 %v935
        %v1010 = vpop.f32.mrf.mxu0
        %v1011 = vadd.f32 %v988, %v1010
        %1012 = vmatmul.f32.gmra.mxu0 %v936
        %v1013 = vpop.f32.mrf.mxu0
        %v1014 = vadd.f32 %v991, %v1013
        %1015 = vdwg.mxu0
        %v1016 = vld [vmem:[%s10] sm:$0x1]
        %v1018 = vperm.slane %v1016, 0
        %v1020 = vadd.f32 %v1011, %v1018
        %v1021 = vadd.f32 %v1014, %v1018
        %v1022 = vmax.f32 %v1020, 0.0
        %v1023 = vmax.f32 %v1021, 0.0
        %v1024 = vadd.f32 %v1022, %v829
        %v1025 = vadd.f32 %v1023, %v830
        %v1026 = vmax.f32 %v1024, 0.0
        %v1027 = vmax.f32 %v1025, 0.0
        %v1028 = vld [vmem:[#allocation13] sm:$0xff]
        %v1029 = vld [vmem:[#allocation13 + $0x8] sm:$0xff]
        %v1030 = vld [vmem:[#allocation13 + $0x10] sm:$0xff]
        %v1031 = vld [vmem:[#allocation13 + $0x18] sm:$0xff]
        %v1032 = vld [vmem:[#allocation13 + $0x20] sm:$0xff]
        %v1033 = vld [vmem:[#allocation13 + $0x28] sm:$0xff]
        %v1034 = vld [vmem:[#allocation13 + $0x30] sm:$0xff]
        %v1035 = vld [vmem:[#allocation13 + $0x38] sm:$0xff]
        %v1036 = vld [vmem:[#allocation13 + $0x40] sm:$0xff]
        %v1037 = vld [vmem:[#allocation13 + $0x48] sm:$0xff]
        %v1038 = vld [vmem:[#allocation13 + $0x50] sm:$0xff]
        %v1039 = vld [vmem:[#allocation13 + $0x58] sm:$0xff]
        %v1040 = vld [vmem:[#allocation13 + $0x60] sm:$0xff]
        %v1041 = vld [vmem:[#allocation13 + $0x68] sm:$0xff]
        %v1042 = vld [vmem:[#allocation13 + $0x70] sm:$0xff]
        %v1043 = vld [vmem:[#allocation13 + $0x78] sm:$0xff]
        %v1044 = vld [vmem:[%s12] sm:$0x1]
        %v1046 = vperm.slane %v1044, 0
        %1048 = vmatpush.msra.mxu0 %v1043
        %1049 = vmatpush.msra.mxu0 %v1042
        %1050 = vmatpush.msra.mxu0 %v1041
        %1051 = vmatpush.msra.mxu0 %v1040
        %1052 = vmatpush.msra.mxu0 %v1039
        %1053 = vmatpush.msra.mxu0 %v1038
        %1054 = vmatpush.msra.mxu0 %v1037
        %1055 = vmatpush.msra.mxu0 %v1036
        %1056 = vmatpush.msra.mxu0 %v1035
        %1057 = vmatpush.msra.mxu0 %v1034
        %1058 = vmatpush.msra.mxu0 %v1033
        %1059 = vmatpush.msra.mxu0 %v1032
        %1060 = vmatpush.msra.mxu0 %v1031
        %1061 = vmatpush.msra.mxu0 %v1030
        %1062 = vmatpush.msra.mxu0 %v1029
        %1063 = vmatpush.msra.mxu0 %v1028
        %1064 = vmatmul.f32.gmra.mxu0 %v1026
        %v1065 = vpop.f32.mrf.mxu0
        %v1066 = vadd.f32 %v1046, %v1065
        %1067 = vmatmul.f32.gmra.mxu0 %v1027
        %v1068 = vpop.f32.mrf.mxu0
        %v1069 = vadd.f32 %v1046, %v1068
        %1070 = vdwg.mxu0
        %1071 = vst [vmem:[%s559] sm:$0xff] %v1066
        %1072 = vst [vmem:[%s559 + $0x8] sm:$0xff] %v1069
        %s1073 = sand.u32 %s319, 1
        %s1074 = scalar_lea.sflag [#allocation4], %s1073
        %s1075 = sand.u32 %s319, 1
        %s1076 = smul.addr %s1075, 16
        %s1077 = scalar_lea.vmem [#allocation14], %s1076
        // Predicated region
        $region101: #{tpu_custom_call.1} parent=71 // pred_check
          %p1078 = pneg %p329
        $region102: #{tpu_custom_call.1} parent=71 // pred_check_branch
          %1080 = sbr.rel (%p1078) target = $region104
        $region103: #{tpu_custom_call.1} parent=71 // pred_region
          %s1081 = smul.u32 2, %s33
          %1083 = vsyncadd %s1074, 0
          %s1084 = smul.addr %s1081, 8
          %s1085 = scalar_lea.hbm %s13, %s1084
          %s1086 = sshll.u32 %s1077, 4
          %s1087 = int_to_ptr.vmem [resolvable:$true] %s1086
          %s1088 = sshll.u32 %s1085, 4
          %s1089 = int_to_ptr.hbm [resolvable:$true] %s1088
          %1094 = dma.vmem_to_hbm [thread:$0]  %s1087, 256, %s1089, %s1074, 128, 128, 8
        $region104: #{tpu_custom_call.1} parent=71 // pred_fallthru
          _
      $region72: #{tpu_custom_call.1} parent=5 // pred_fallthru
        _
      %p1095 = scmp.le.s32.totalorder 2, %s28
      // Predicated region
      $region105: #{tpu_custom_call.1} parent=5 // pred_check
        %p1096 = pneg %p1095
      $region106: #{tpu_custom_call.1} parent=5 // pred_check_branch
        %1098 = sbr.rel (%p1096) target = $region108
      $region107: #{tpu_custom_call.1} parent=5 // pred_region
        %s1099 = ssub.s32 %s28, 2
        // Predicated region
        $region109: #{tpu_custom_call.1} parent=107 // pred_check
          %p1100 = pneg %p335
        $region110: #{tpu_custom_call.1} parent=107 // pred_check_branch
          %1102 = sbr.rel (%p1100) target = $region112
        $region111: #{tpu_custom_call.1} parent=107 // pred_region
          %s1103 = sand.u32 %s320, 1
          %s1104 = scalar_lea.sflag [#allocation4], %s1103
          %s1105 = sand.u32 %s320, 1
          %s1106 = smul.addr %s1105, 16
          %s1107 = scalar_lea.vmem [#allocation14], %s1106
          %1109 = dma.done %s1104, 256
        $region112: #{tpu_custom_call.1} parent=107 // pred_fallthru
          _
      $region108: #{tpu_custom_call.1} parent=5 // pred_fallthru
        _
    $region6: #{tpu_custom_call.1} parent=1 // loop_footer
      %s32 = sadd.s32 1, %s28
    $region7: #{tpu_custom_call.1} parent=1 // loop_footer_branch
      %27 = sbr.rel target = $region3
    $region8: #{tpu_custom_call.1} parent=1 // loop_exit
      _
    %1110 = vsyncpa [#allocation3], 1
    %s1111 = scalar_lea.sflag [#allocation3], 1
    %1112 = vsyncpa %s1111, 1
    %1113 = vsyncpa [#allocation6], 1
    %1114 = vsyncpa [#allocation9], 1
    %1115 = vsyncpa [#allocation12], 1
    %1116 = vsyncpa [#allocation4], 1
    %s1117 = scalar_lea.sflag [#allocation4], 1
    %1118 = vsyncpa %s1117, 1

</llo_original>
